<compile_context>
chip_gen: v7x
topology: tpu7x:2x2x1
jax: 0.10.0
libtpu: 0.0.40
codegen_flags: <defaults>
</compile_context>

<pallas_src>
import functools

import jax
import jax.numpy as jnp
from jax import lax
from jax.experimental import pallas as pl
from jax.experimental.pallas import tpu as pltpu

BN_EPS = 1e-5
VMEM_LIMIT = 32 * 1024 * 1024  # explicit scoped-VMEM budget (safe on v5e/v6e/v7x)


def _round_up(x, m):
    return (x + m - 1) // m * m


# ---------------------------------------------------------------------------
# Pallas kernels
# ---------------------------------------------------------------------------
def _affine_act_matmul_kernel(x_ref, scale_ref, shift_ref, w_ref, o_ref, *,
                              apply_affine, apply_relu):
    # x: (TM, K) f32, scale/shift: (1, K) f32, w: (K, C) bf16, o: (TM, C) f32.
    # Fused epilogue of the *previous* layer (BatchNorm affine + ReLU) feeding
    # this layer's MXU matmul; matmul operands bf16, accumulation f32.
    x = x_ref[...]
    if apply_affine:
        x = x * scale_ref[...] + shift_ref[...]
    if apply_relu:
        x = jnp.maximum(x, 0.0)
    o_ref[...] = jnp.dot(x.astype(jnp.bfloat16), w_ref[...],
                         preferred_element_type=jnp.float32)


def _bias_tanh_kernel(y_ref, b_ref, o_ref):
    # Elementwise epilogue of the last layer on a lane-dense (R, C) slab.
    o_ref[...] = jnp.tanh(y_ref[...] + b_ref[...])


# ---------------------------------------------------------------------------
# Pallas wrappers (grid / BlockSpec plumbing)
# ---------------------------------------------------------------------------
def _row_tile(m, target=512):
    return target if m >= target else _round_up(m, 8)


def _pad_rows(a, rp):
    if a.shape[0] == rp:
        return a
    return jnp.pad(a, ((0, rp - a.shape[0]),) + ((0, 0),) * (a.ndim - 1))


def fused_affine_matmul(x, scale, shift, w_bf16, *, apply_affine, apply_relu):
    """(relu?(affine?(x))) @ w, tiled over rows, weight block resident."""
    m, k = x.shape
    c = w_bf16.shape[1]
    tm = _row_tile(m)
    mp = _round_up(m, tm)
    xp = _pad_rows(x, mp)
    out = pl.pallas_call(
        functools.partial(_affine_act_matmul_kernel,
                          apply_affine=apply_affine, apply_relu=apply_relu),
        out_shape=jax.ShapeDtypeStruct((mp, c), jnp.float32),
        grid=(mp // tm,),
        in_specs=[
            pl.BlockSpec((tm, k), lambda i: (i, 0)),
            pl.BlockSpec((1, k), lambda i: (0, 0)),
            pl.BlockSpec((1, k), lambda i: (0, 0)),
            pl.BlockSpec((k, c), lambda i: (0, 0)),   # weight stays resident
        ],
        out_specs=pl.BlockSpec((tm, c), lambda i: (i, 0)),
        compiler_params=pltpu.CompilerParams(
            dimension_semantics=("parallel",),
            vmem_limit_bytes=VMEM_LIMIT),
        cost_estimate=pl.CostEstimate(
            flops=2 * mp * k * c,
            transcendentals=0,
            bytes_accessed=xp.size * 4 + w_bf16.size * 2 + 2 * k * 4 + mp * c * 4),
    )(xp, scale.reshape(1, k), shift.reshape(1, k), w_bf16)
    return out[:m]


def bias_tanh(a, b):
    """tanh(a + bias) with a lane-dense layout when possible. a: (N,OH,OW,OC)."""
    n, oh, ow, oc = a.shape
    t = a.size
    if t % 128 == 0 and 128 % oc == 0:
        y = a.reshape(t // 128, 128)                 # lane-dense spatial layout
        bt = jnp.tile(b, 128 // oc).reshape(1, 128)  # channel pattern per lane
    else:
        y = a.reshape(n * oh * ow, oc)
        bt = b.reshape(1, oc)
    r, c = y.shape
    tr = _row_tile(r)
    rp = _round_up(r, tr)
    yp = _pad_rows(y, rp)
    out = pl.pallas_call(
        _bias_tanh_kernel,
        out_shape=jax.ShapeDtypeStruct((rp, c), jnp.float32),
        grid=(rp // tr,),
        in_specs=[pl.BlockSpec((tr, c), lambda i: (i, 0)),
                  pl.BlockSpec((1, c), lambda i: (0, 0))],
        out_specs=pl.BlockSpec((tr, c), lambda i: (i, 0)),
        compiler_params=pltpu.CompilerParams(
            dimension_semantics=("parallel",),
            vmem_limit_bytes=VMEM_LIMIT),
    )(yp, bt)
    return out[:r].reshape(n, oh, ow, oc)


# ---------------------------------------------------------------------------
# Glue (pure data rearrangement, left to XLA)
# ---------------------------------------------------------------------------
def _weight_matrix(w):
    # PyTorch ConvTranspose2d weight (IC, OC, k, k) -> (IC, k*k*OC).
    # No spatial flip in the direct scatter (col2im) formulation.
    ic, oc, k, _ = w.shape
    return w.transpose(0, 2, 3, 1).reshape(ic, k * k * oc)


def _col2im_add(y_cols, n, ih, iw, oc, k, s, p):
    # y_cols: (n*ih*iw, k*k*oc) -> (n, OH, OW, oc) via overlap-add (col2im).
    y = y_cols.reshape(n, ih, iw, k, k, oc)
    hp = (ih - 1) * s + k
    wp = (iw - 1) * s + k
    out = jnp.zeros((n, hp, wp, oc), y_cols.dtype)
    for kh in range(k):
        for kw in range(k):
            out = out.at[:, kh:kh + s * (ih - 1) + 1:s,
                         kw:kw + s * (iw - 1) + 1:s, :].add(y[:, :, :, kh, kw, :])
    oh = (ih - 1) * s + k - 2 * p
    ow = (iw - 1) * s + k - 2 * p
    return out[:, p:p + oh, p:p + ow, :]


# ---------------------------------------------------------------------------
# Generator: init + forward (+ pure-JAX reference)
# ---------------------------------------------------------------------------
def make_generator(z_dim, img_channels, features_g):
    # Static layer configs — Python ints in a closure, never traced under jit.
    bn_cfgs = (
        (z_dim,           features_g * 16, 4, 1, 0),
        (features_g * 16, features_g * 8,  4, 2, 1),
        (features_g * 8,  features_g * 4,  4, 2, 1),
        (features_g * 4,  features_g * 4,  4, 2, 1),
    )
    last_cfg = (features_g * 4, img_channels, 4, 2, 1)

    def init(key):
        keys = jax.random.split(key, len(bn_cfgs) + 2)
        blocks = []
        for kk, (ic, oc, k, _, _) in zip(keys, bn_cfgs):
            blocks.append(dict(
                W=jax.random.normal(kk, (ic, oc, k, k), jnp.float32) * 0.02,
                gamma=jnp.ones((oc,), jnp.float32),
                beta=jnp.zeros((oc,), jnp.float32)))
        ic, oc, k, _, _ = last_cfg
        last = dict(
            W=jax.random.normal(keys[-2], (ic, oc, k, k), jnp.float32) * 0.02,
            b=jax.random.normal(keys[-1], (oc,), jnp.float32) * 0.02)
        # TODO(synk): BatchNorm running-mean/var updates (training-time side
        # effect) are not tracked; they do not affect the training-mode forward.
        return dict(blocks=blocks, last=last)

    def _prep_operands(x_nhwc, scale, shift, wm):
        n, ih, iw, ic = x_nhwc.shape
        xm = x_nhwc.reshape(n * ih * iw, ic)
        # Pad the contraction dim to a lane-aligned 128 when needed (z_dim=100).
        kp = ic if ic % 8 == 0 else _round_up(ic, 128)
        if kp != ic:
            xm = jnp.pad(xm, ((0, 0), (0, kp - ic)))
            wm = jnp.pad(wm, ((0, kp - ic), (0, 0)))
            scale = jnp.pad(scale, (0, kp - ic))
            shift = jnp.pad(shift, (0, kp - ic))
        return xm, scale, shift, wm

    def forward(params, z):
        n = z.shape[0]
        x = z.reshape(n, 1, 1, z_dim).astype(jnp.float32)       # NHWC
        # Pending epilogue of the previous layer, fused into the next matmul.
        scale = jnp.ones((z_dim,), jnp.float32)
        shift = jnp.zeros((z_dim,), jnp.float32)
        affine = False
        relu = False
        for blk, (ic, oc, k, s, p) in zip(params["blocks"], bn_cfgs):
            ih, iw = x.shape[1], x.shape[2]
            wm = _weight_matrix(blk["W"]).astype(jnp.bfloat16)
            xm, sc, sh, wmk = _prep_operands(x, scale, shift, wm)
            y = fused_affine_matmul(xm, sc, sh, wmk,
                                    apply_affine=affine, apply_relu=relu)
            a = _col2im_add(y, n, ih, iw, oc, k, s, p)
            # BatchNorm2d (training mode): global batch stats over (N, OH, OW).
            mean = jnp.mean(a, axis=(0, 1, 2))
            var = jnp.mean(jnp.square(a - mean), axis=(0, 1, 2))
            inv = lax.rsqrt(var + BN_EPS)
            scale = blk["gamma"] * inv
            shift = blk["beta"] - mean * scale
            affine = True
            relu = True
            x = a
        # Final ConvTranspose2d (+bias) + Tanh.
        ic, oc, k, s, p = last_cfg
        ih, iw = x.shape[1], x.shape[2]
        w = params["last"]["W"]
        ocp = oc
        if (k * k * oc) % 128 != 0 and 128 % (k * k) == 0:
            ocp = _round_up(oc, 128 // (k * k))      # lane-dense matmul output
            w = jnp.pad(w, ((0, 0), (0, ocp - oc), (0, 0), (0, 0)))
        wm = _weight_matrix(w).astype(jnp.bfloat16)
        xm, sc, sh, wmk = _prep_operands(x, scale, shift, wm)
        y = fused_affine_matmul(xm, sc, sh, wmk,
                                apply_affine=True, apply_relu=True)
        if ocp != oc:
            m = y.shape[0]
            y = y.reshape(m, k, k, ocp)[..., :oc].reshape(m, k * k * oc)
        a = _col2im_add(y, n, ih, iw, oc, k, s, p)
        out = bias_tanh(a, params["last"]["b"])
        return out.transpose(0, 3, 1, 2)             # back to NCHW

    # ---- pure-JAX reference (HIGHEST precision) for correctness checks ----
    def _ref_convt(x, w, s, p):
        k = w.shape[2]
        wf = jnp.flip(w, axis=(2, 3)).transpose(1, 0, 2, 3)      # (OC, IC, k, k)
        return lax.conv_general_dilated(
            x, wf, window_strides=(1, 1),
            padding=[(k - 1 - p, k - 1 - p)] * 2, lhs_dilation=(s, s),
            dimension_numbers=("NCHW", "OIHW", "NCHW"),
            precision=lax.Precision.HIGHEST)

    def forward_ref(params, z):
        x = z
        for blk, (ic, oc, k, s, p) in zip(params["blocks"], bn_cfgs):
            y = _ref_convt(x, blk["W"], s, p)
            mean = jnp.mean(y, axis=(0, 2, 3), keepdims=True)
            var = jnp.mean(jnp.square(y - mean), axis=(0, 2, 3), keepdims=True)
            y = (y - mean) * lax.rsqrt(var + BN_EPS)
            y = y * blk["gamma"].reshape(1, -1, 1, 1) + blk["beta"].reshape(1, -1, 1, 1)
            x = jnp.maximum(y, 0.0)
        ic, oc, k, s, p = last_cfg
        y = _ref_convt(x, params["last"]["W"], s, p)
        y = y + params["last"]["b"].reshape(1, -1, 1, 1)
        return jnp.tanh(y)

    return init, forward, forward_ref


if __name__ == "__main__":
    z_dim, img_channels, features_g, batch = 100, 1, 8, 2
    init, forward, forward_ref = make_generator(z_dim, img_channels, features_g)

    root = jax.random.PRNGKey(0)
    kp, kz = jax.random.split(root)
    params = init(kp)
    z = jax.random.normal(kz, (batch, z_dim, 1, 1), jnp.float32)

    out = jax.block_until_ready(jax.jit(forward)(params, z))
    assert out.shape == (batch, img_channels, 64, 64), out.shape
    assert bool(jnp.all(jnp.isfinite(out)))

    ref = jax.block_until_ready(jax.jit(forward_ref)(params, z))
    max_err = float(jnp.max(jnp.abs(out - ref)))
    mean_err = float(jnp.mean(jnp.abs(out - ref)))
    # bf16 MXU operands vs f32-HIGHEST reference: allow small numerical drift.
    assert max_err < 5e-2, f"max err vs reference: {max_err}"
    assert mean_err < 5e-3, f"mean err vs reference: {mean_err}"

    print("KERNEL_OK")
</pallas_src>

<mosaic_0001>
module attributes {stable_mosaic.version = 11 : i64} {
  func.func @_affine_act_matmul_kernel(%arg0: i32, %arg1: memref<8x128xf32, #tpu.memory_space<vmem>>, %arg2: memref<1x128xf32, #tpu.memory_space<vmem>>, %arg3: memref<1x128xf32, #tpu.memory_space<vmem>>, %arg4: memref<128x2048xbf16, #tpu.memory_space<vmem>>, %arg5: memref<8x2048xf32, #tpu.memory_space<vmem>>) attributes {dimension_semantics = [#tpu.dimension_semantics<parallel>], iteration_bounds = array<i64: 1>, scalar_prefetch = 0 : i64, scratch_operands = 0 : i64, tpu.core_type = #tpu.core_type<tc>, window_params = [{transform_indices = @transform_0, window_bounds = array<i64: 8, 128>}, {pipeline_mode = #tpu.pipeline_mode<synchronous>, transform_indices = @transform_1, window_bounds = array<i64: 1, 128>}, {pipeline_mode = #tpu.pipeline_mode<synchronous>, transform_indices = @transform_2, window_bounds = array<i64: 1, 128>}, {pipeline_mode = #tpu.pipeline_mode<synchronous>, transform_indices = @transform_3, window_bounds = array<i64: 128, 2048>}, {transform_indices = @transform_4, window_bounds = array<i64: 8, 2048>}]} {
    %c0 = arith.constant 0 : index
    %c0_0 = arith.constant 0 : index
    %0 = vector.load %arg1[%c0, %c0_0] : memref<8x128xf32, #tpu.memory_space<vmem>>, vector<8x128xf32>
    %1 = arith.truncf %0 : vector<8x128xf32> to vector<8x128xbf16>
    %c0_1 = arith.constant 0 : index
    %c0_2 = arith.constant 0 : index
    %2 = vector.load %arg4[%c0_1, %c0_2] : memref<128x2048xbf16, #tpu.memory_space<vmem>>, vector<128x2048xbf16>
    %cst = arith.constant dense<0.000000e+00> : vector<8x2048xf32>
    %3 = tpu.matmul %1, %2, %cst {dimension_numbers = #tpu.dot_dimension_numbers<[1], [0], [0], [1], [0, 0, 1, 1], [], []>} : vector<8x128xbf16>, vector<128x2048xbf16>, vector<8x2048xf32> -> vector<8x2048xf32>
    %c0_3 = arith.constant 0 : index
    %c0_4 = arith.constant 0 : index
    %4 = vector.load %arg5[%c0_3, %c0_4] : memref<8x2048xf32, #tpu.memory_space<vmem>>, vector<8x2048xf32>
    tpu.vector_store %arg5[%c0_3, %c0_4], %3 {strides = array<i32>} : memref<8x2048xf32, #tpu.memory_space<vmem>>, vector<8x2048xf32>,
    return
  }
  func.func @transform_0(%arg0: i32) -> (i32, i32) {
    %c0_i32 = arith.constant 0 : i32
    %c0_i32_0 = arith.constant 0 : i32
    return %arg0, %c0_i32 : i32, i32
  }
  func.func @transform_1(%arg0: i32) -> (i32, i32) {
    %c0_i32 = arith.constant 0 : i32
    %c0_i32_0 = arith.constant 0 : i32
    %c0_i32_1 = arith.constant 0 : i32
    return %c0_i32, %c0_i32_0 : i32, i32
  }
  func.func @transform_2(%arg0: i32) -> (i32, i32) {
    %c0_i32 = arith.constant 0 : i32
    %c0_i32_0 = arith.constant 0 : i32
    %c0_i32_1 = arith.constant 0 : i32
    return %c0_i32, %c0_i32_0 : i32, i32
  }
  func.func @transform_3(%arg0: i32) -> (i32, i32) {
    %c0_i32 = arith.constant 0 : i32
    %c0_i32_0 = arith.constant 0 : i32
    %c0_i32_1 = arith.constant 0 : i32
    return %c0_i32, %c0_i32_0 : i32, i32
  }
  func.func @transform_4(%arg0: i32) -> (i32, i32) {
    %c0_i32 = arith.constant 0 : i32
    %c0_i32_0 = arith.constant 0 : i32
    return %arg0, %c0_i32 : i32, i32
  }
}

module attributes {stable_mosaic.version = 11 : i64} {
  func.func @_affine_act_matmul_kernel(%arg0: i32, %arg1: memref<32x128xf32, #tpu.memory_space<vmem>>, %arg2: memref<1x128xf32, #tpu.memory_space<vmem>>, %arg3: memref<1x128xf32, #tpu.memory_space<vmem>>, %arg4: memref<128x1024xbf16, #tpu.memory_space<vmem>>, %arg5: memref<32x1024xf32, #tpu.memory_space<vmem>>) attributes {dimension_semantics = [#tpu.dimension_semantics<parallel>], iteration_bounds = array<i64: 1>, scalar_prefetch = 0 : i64, scratch_operands = 0 : i64, tpu.core_type = #tpu.core_type<tc>, window_params = [{transform_indices = @transform_0, window_bounds = array<i64: 32, 128>}, {pipeline_mode = #tpu.pipeline_mode<synchronous>, transform_indices = @transform_1, window_bounds = array<i64: 1, 128>}, {pipeline_mode = #tpu.pipeline_mode<synchronous>, transform_indices = @transform_2, window_bounds = array<i64: 1, 128>}, {pipeline_mode = #tpu.pipeline_mode<synchronous>, transform_indices = @transform_3, window_bounds = array<i64: 128, 1024>}, {transform_indices = @transform_4, window_bounds = array<i64: 32, 1024>}]} {
    %c0 = arith.constant 0 : index
    %c0_0 = arith.constant 0 : index
    %0 = vector.load %arg1[%c0, %c0_0] : memref<32x128xf32, #tpu.memory_space<vmem>>, vector<32x128xf32>
    %c0_1 = arith.constant 0 : index
    %c0_2 = arith.constant 0 : index
    %1 = vector.load %arg2[%c0_1, %c0_2] : memref<1x128xf32, #tpu.memory_space<vmem>>, vector<1x128xf32>
    %2 = vector.broadcast %1 : vector<1x128xf32> to vector<32x128xf32>
    %3 = arith.mulf %0, %2 : vector<32x128xf32>
    %c0_3 = arith.constant 0 : index
    %c0_4 = arith.constant 0 : index
    %4 = vector.load %arg3[%c0_3, %c0_4] : memref<1x128xf32, #tpu.memory_space<vmem>>, vector<1x128xf32>
    %5 = vector.broadcast %4 : vector<1x128xf32> to vector<32x128xf32>
    %6 = arith.addf %3, %5 : vector<32x128xf32>
    %cst = arith.constant 0.000000e+00 : f32
    %7 = vector.broadcast %cst : f32 to vector<32x128xf32>
    %8 = arith.maximumf %6, %7 : vector<32x128xf32>
    %9 = arith.truncf %8 : vector<32x128xf32> to vector<32x128xbf16>
    %c0_5 = arith.constant 0 : index
    %c0_6 = arith.constant 0 : index
    %10 = vector.load %arg4[%c0_5, %c0_6] : memref<128x1024xbf16, #tpu.memory_space<vmem>>, vector<128x1024xbf16>
    %cst_7 = arith.constant dense<0.000000e+00> : vector<32x1024xf32>
    %11 = tpu.matmul %9, %10, %cst_7 {dimension_numbers = #tpu.dot_dimension_numbers<[1], [0], [0], [1], [0, 0, 1, 1], [], []>} : vector<32x128xbf16>, vector<128x1024xbf16>, vector<32x1024xf32> -> vector<32x1024xf32>
    %c0_8 = arith.constant 0 : index
    %c0_9 = arith.constant 0 : index
    %12 = vector.load %arg5[%c0_8, %c0_9] : memref<32x1024xf32, #tpu.memory_space<vmem>>, vector<32x1024xf32>
    tpu.vector_store %arg5[%c0_8, %c0_9], %11 {strides = array<i32>} : memref<32x1024xf32, #tpu.memory_space<vmem>>, vector<32x1024xf32>,
    return
  }
  func.func @transform_0(%arg0: i32) -> (i32, i32) {
    %c0_i32 = arith.constant 0 : i32
    %c0_i32_0 = arith.constant 0 : i32
    return %arg0, %c0_i32 : i32, i32
  }
  func.func @transform_1(%arg0: i32) -> (i32, i32) {
    %c0_i32 = arith.constant 0 : i32
    %c0_i32_0 = arith.constant 0 : i32
    %c0_i32_1 = arith.constant 0 : i32
    return %c0_i32, %c0_i32_0 : i32, i32
  }
  func.func @transform_2(%arg0: i32) -> (i32, i32) {
    %c0_i32 = arith.constant 0 : i32
    %c0_i32_0 = arith.constant 0 : i32
    %c0_i32_1 = arith.constant 0 : i32
    return %c0_i32, %c0_i32_0 : i32, i32
  }
  func.func @transform_3(%arg0: i32) -> (i32, i32) {
    %c0_i32 = arith.constant 0 : i32
    %c0_i32_0 = arith.constant 0 : i32
    %c0_i32_1 = arith.constant 0 : i32
    return %c0_i32, %c0_i32_0 : i32, i32
  }
  func.func @transform_4(%arg0: i32) -> (i32, i32) {
    %c0_i32 = arith.constant 0 : i32
    %c0_i32_0 = arith.constant 0 : i32
    return %arg0, %c0_i32 : i32, i32
  }
}

module attributes {stable_mosaic.version = 11 : i64} {
  func.func @_affine_act_matmul_kernel(%arg0: i32, %arg1: memref<128x64xf32, #tpu.memory_space<vmem>>, %arg2: memref<1x64xf32, #tpu.memory_space<vmem>>, %arg3: memref<1x64xf32, #tpu.memory_space<vmem>>, %arg4: memref<64x512xbf16, #tpu.memory_space<vmem>>, %arg5: memref<128x512xf32, #tpu.memory_space<vmem>>) attributes {dimension_semantics = [#tpu.dimension_semantics<parallel>], iteration_bounds = array<i64: 1>, scalar_prefetch = 0 : i64, scratch_operands = 0 : i64, tpu.core_type = #tpu.core_type<tc>, window_params = [{transform_indices = @transform_0, window_bounds = array<i64: 128, 64>}, {pipeline_mode = #tpu.pipeline_mode<synchronous>, transform_indices = @transform_1, window_bounds = array<i64: 1, 64>}, {pipeline_mode = #tpu.pipeline_mode<synchronous>, transform_indices = @transform_2, window_bounds = array<i64: 1, 64>}, {pipeline_mode = #tpu.pipeline_mode<synchronous>, transform_indices = @transform_3, window_bounds = array<i64: 64, 512>}, {transform_indices = @transform_4, window_bounds = array<i64: 128, 512>}]} {
    %c0 = arith.constant 0 : index
    %c0_0 = arith.constant 0 : index
    %0 = vector.load %arg1[%c0, %c0_0] : memref<128x64xf32, #tpu.memory_space<vmem>>, vector<128x64xf32>
    %c0_1 = arith.constant 0 : index
    %c0_2 = arith.constant 0 : index
    %1 = vector.load %arg2[%c0_1, %c0_2] : memref<1x64xf32, #tpu.memory_space<vmem>>, vector<1x64xf32>
    %2 = vector.broadcast %1 : vector<1x64xf32> to vector<128x64xf32>
    %3 = arith.mulf %0, %2 : vector<128x64xf32>
    %c0_3 = arith.constant 0 : index
    %c0_4 = arith.constant 0 : index
    %4 = vector.load %arg3[%c0_3, %c0_4] : memref<1x64xf32, #tpu.memory_space<vmem>>, vector<1x64xf32>
    %5 = vector.broadcast %4 : vector<1x64xf32> to vector<128x64xf32>
    %6 = arith.addf %3, %5 : vector<128x64xf32>
    %cst = arith.constant 0.000000e+00 : f32
    %7 = vector.broadcast %cst : f32 to vector<128x64xf32>
    %8 = arith.maximumf %6, %7 : vector<128x64xf32>
    %9 = arith.truncf %8 : vector<128x64xf32> to vector<128x64xbf16>
    %c0_5 = arith.constant 0 : index
    %c0_6 = arith.constant 0 : index
    %10 = vector.load %arg4[%c0_5, %c0_6] : memref<64x512xbf16, #tpu.memory_space<vmem>>, vector<64x512xbf16>
    %cst_7 = arith.constant dense<0.000000e+00> : vector<128x512xf32>
    %11 = tpu.matmul %9, %10, %cst_7 {dimension_numbers = #tpu.dot_dimension_numbers<[1], [0], [0], [1], [0, 0, 1, 1], [], []>} : vector<128x64xbf16>, vector<64x512xbf16>, vector<128x512xf32> -> vector<128x512xf32>
    %c0_8 = arith.constant 0 : index
    %c0_9 = arith.constant 0 : index
    %12 = vector.load %arg5[%c0_8, %c0_9] : memref<128x512xf32, #tpu.memory_space<vmem>>, vector<128x512xf32>
    tpu.vector_store %arg5[%c0_8, %c0_9], %11 {strides = array<i32>} : memref<128x512xf32, #tpu.memory_space<vmem>>, vector<128x512xf32>,
    return
  }
  func.func @transform_0(%arg0: i32) -> (i32, i32) {
    %c0_i32 = arith.constant 0 : i32
    %c0_i32_0 = arith.constant 0 : i32
    return %arg0, %c0_i32 : i32, i32
  }
  func.func @transform_1(%arg0: i32) -> (i32, i32) {
    %c0_i32 = arith.constant 0 : i32
    %c0_i32_0 = arith.constant 0 : i32
    %c0_i32_1 = arith.constant 0 : i32
    return %c0_i32, %c0_i32_0 : i32, i32
  }
  func.func @transform_2(%arg0: i32) -> (i32, i32) {
    %c0_i32 = arith.constant 0 : i32
    %c0_i32_0 = arith.constant 0 : i32
    %c0_i32_1 = arith.constant 0 : i32
    return %c0_i32, %c0_i32_0 : i32, i32
  }
  func.func @transform_3(%arg0: i32) -> (i32, i32) {
    %c0_i32 = arith.constant 0 : i32
    %c0_i32_0 = arith.constant 0 : i32
    %c0_i32_1 = arith.constant 0 : i32
    return %c0_i32, %c0_i32_0 : i32, i32
  }
  func.func @transform_4(%arg0: i32) -> (i32, i32) {
    %c0_i32 = arith.constant 0 : i32
    %c0_i32_0 = arith.constant 0 : i32
    return %arg0, %c0_i32 : i32, i32
  }
}

module attributes {stable_mosaic.version = 11 : i64} {
  func.func @_affine_act_matmul_kernel(%arg0: i32, %arg1: memref<512x32xf32, #tpu.memory_space<vmem>>, %arg2: memref<1x32xf32, #tpu.memory_space<vmem>>, %arg3: memref<1x32xf32, #tpu.memory_space<vmem>>, %arg4: memref<32x512xbf16, #tpu.memory_space<vmem>>, %arg5: memref<512x512xf32, #tpu.memory_space<vmem>>) attributes {dimension_semantics = [#tpu.dimension_semantics<parallel>], iteration_bounds = array<i64: 1>, scalar_prefetch = 0 : i64, scratch_operands = 0 : i64, tpu.core_type = #tpu.core_type<tc>, window_params = [{transform_indices = @transform_0, window_bounds = array<i64: 512, 32>}, {pipeline_mode = #tpu.pipeline_mode<synchronous>, transform_indices = @transform_1, window_bounds = array<i64: 1, 32>}, {pipeline_mode = #tpu.pipeline_mode<synchronous>, transform_indices = @transform_2, window_bounds = array<i64: 1, 32>}, {pipeline_mode = #tpu.pipeline_mode<synchronous>, transform_indices = @transform_3, window_bounds = array<i64: 32, 512>}, {transform_indices = @transform_4, window_bounds = array<i64: 512, 512>}]} {
    %c0 = arith.constant 0 : index
    %c0_0 = arith.constant 0 : index
    %0 = vector.load %arg1[%c0, %c0_0] : memref<512x32xf32, #tpu.memory_space<vmem>>, vector<512x32xf32>
    %c0_1 = arith.constant 0 : index
    %c0_2 = arith.constant 0 : index
    %1 = vector.load %arg2[%c0_1, %c0_2] : memref<1x32xf32, #tpu.memory_space<vmem>>, vector<1x32xf32>
    %2 = vector.broadcast %1 : vector<1x32xf32> to vector<512x32xf32>
    %3 = arith.mulf %0, %2 : vector<512x32xf32>
    %c0_3 = arith.constant 0 : index
    %c0_4 = arith.constant 0 : index
    %4 = vector.load %arg3[%c0_3, %c0_4] : memref<1x32xf32, #tpu.memory_space<vmem>>, vector<1x32xf32>
    %5 = vector.broadcast %4 : vector<1x32xf32> to vector<512x32xf32>
    %6 = arith.addf %3, %5 : vector<512x32xf32>
    %cst = arith.constant 0.000000e+00 : f32
    %7 = vector.broadcast %cst : f32 to vector<512x32xf32>
    %8 = arith.maximumf %6, %7 : vector<512x32xf32>
    %9 = arith.truncf %8 : vector<512x32xf32> to vector<512x32xbf16>
    %c0_5 = arith.constant 0 : index
    %c0_6 = arith.constant 0 : index
    %10 = vector.load %arg4[%c0_5, %c0_6] : memref<32x512xbf16, #tpu.memory_space<vmem>>, vector<32x512xbf16>
    %cst_7 = arith.constant dense<0.000000e+00> : vector<512x512xf32>
    %11 = tpu.matmul %9, %10, %cst_7 {dimension_numbers = #tpu.dot_dimension_numbers<[1], [0], [0], [1], [0, 0, 1, 1], [], []>} : vector<512x32xbf16>, vector<32x512xbf16>, vector<512x512xf32> -> vector<512x512xf32>
    %c0_8 = arith.constant 0 : index
    %c0_9 = arith.constant 0 : index
    %12 = vector.load %arg5[%c0_8, %c0_9] : memref<512x512xf32, #tpu.memory_space<vmem>>, vector<512x512xf32>
    tpu.vector_store %arg5[%c0_8, %c0_9], %11 {strides = array<i32>} : memref<512x512xf32, #tpu.memory_space<vmem>>, vector<512x512xf32>,
    return
  }
  func.func @transform_0(%arg0: i32) -> (i32, i32) {
    %c0_i32 = arith.constant 0 : i32
    %c0_i32_0 = arith.constant 0 : i32
    return %arg0, %c0_i32 : i32, i32
  }
  func.func @transform_1(%arg0: i32) -> (i32, i32) {
    %c0_i32 = arith.constant 0 : i32
    %c0_i32_0 = arith.constant 0 : i32
    %c0_i32_1 = arith.constant 0 : i32
    return %c0_i32, %c0_i32_0 : i32, i32
  }
  func.func @transform_2(%arg0: i32) -> (i32, i32) {
    %c0_i32 = arith.constant 0 : i32
    %c0_i32_0 = arith.constant 0 : i32
    %c0_i32_1 = arith.constant 0 : i32
    return %c0_i32, %c0_i32_0 : i32, i32
  }
  func.func @transform_3(%arg0: i32) -> (i32, i32) {
    %c0_i32 = arith.constant 0 : i32
    %c0_i32_0 = arith.constant 0 : i32
    %c0_i32_1 = arith.constant 0 : i32
    return %c0_i32, %c0_i32_0 : i32, i32
  }
  func.func @transform_4(%arg0: i32) -> (i32, i32) {
    %c0_i32 = arith.constant 0 : i32
    %c0_i32_0 = arith.constant 0 : i32
    return %arg0, %c0_i32 : i32, i32
  }
}

module attributes {stable_mosaic.version = 11 : i64} {
  func.func @_affine_act_matmul_kernel(%arg0: i32, %arg1: memref<512x32xf32, #tpu.memory_space<vmem>>, %arg2: memref<1x32xf32, #tpu.memory_space<vmem>>, %arg3: memref<1x32xf32, #tpu.memory_space<vmem>>, %arg4: memref<32x128xbf16, #tpu.memory_space<vmem>>, %arg5: memref<512x128xf32, #tpu.memory_space<vmem>>) attributes {dimension_semantics = [#tpu.dimension_semantics<parallel>], iteration_bounds = array<i64: 4>, scalar_prefetch = 0 : i64, scratch_operands = 0 : i64, tpu.core_type = #tpu.core_type<tc>, window_params = [{transform_indices = @transform_0, window_bounds = array<i64: 512, 32>}, {pipeline_mode = #tpu.pipeline_mode<synchronous>, transform_indices = @transform_1, window_bounds = array<i64: 1, 32>}, {pipeline_mode = #tpu.pipeline_mode<synchronous>, transform_indices = @transform_2, window_bounds = array<i64: 1, 32>}, {pipeline_mode = #tpu.pipeline_mode<synchronous>, transform_indices = @transform_3, window_bounds = array<i64: 32, 128>}, {transform_indices = @transform_4, window_bounds = array<i64: 512, 128>}]} {
    %c0 = arith.constant 0 : index
    %c0_0 = arith.constant 0 : index
    %0 = vector.load %arg1[%c0, %c0_0] : memref<512x32xf32, #tpu.memory_space<vmem>>, vector<512x32xf32>
    %c0_1 = arith.constant 0 : index
    %c0_2 = arith.constant 0 : index
    %1 = vector.load %arg2[%c0_1, %c0_2] : memref<1x32xf32, #tpu.memory_space<vmem>>, vector<1x32xf32>
    %2 = vector.broadcast %1 : vector<1x32xf32> to vector<512x32xf32>
    %3 = arith.mulf %0, %2 : vector<512x32xf32>
    %c0_3 = arith.constant 0 : index
    %c0_4 = arith.constant 0 : index
    %4 = vector.load %arg3[%c0_3, %c0_4] : memref<1x32xf32, #tpu.memory_space<vmem>>, vector<1x32xf32>
    %5 = vector.broadcast %4 : vector<1x32xf32> to vector<512x32xf32>
    %6 = arith.addf %3, %5 : vector<512x32xf32>
    %cst = arith.constant 0.000000e+00 : f32
    %7 = vector.broadcast %cst : f32 to vector<512x32xf32>
    %8 = arith.maximumf %6, %7 : vector<512x32xf32>
    %9 = arith.truncf %8 : vector<512x32xf32> to vector<512x32xbf16>
    %c0_5 = arith.constant 0 : index
    %c0_6 = arith.constant 0 : index
    %10 = vector.load %arg4[%c0_5, %c0_6] : memref<32x128xbf16, #tpu.memory_space<vmem>>, vector<32x128xbf16>
    %cst_7 = arith.constant dense<0.000000e+00> : vector<512x128xf32>
    %11 = tpu.matmul %9, %10, %cst_7 {dimension_numbers = #tpu.dot_dimension_numbers<[1], [0], [0], [1], [0, 0, 1, 1], [], []>} : vector<512x32xbf16>, vector<32x128xbf16>, vector<512x128xf32> -> vector<512x128xf32>
    %c0_8 = arith.constant 0 : index
    %c0_9 = arith.constant 0 : index
    %12 = vector.load %arg5[%c0_8, %c0_9] : memref<512x128xf32, #tpu.memory_space<vmem>>, vector<512x128xf32>
    tpu.vector_store %arg5[%c0_8, %c0_9], %11 {strides = array<i32>} : memref<512x128xf32, #tpu.memory_space<vmem>>, vector<512x128xf32>,
    return
  }
  func.func @transform_0(%arg0: i32) -> (i32, i32) {
    %c0_i32 = arith.constant 0 : i32
    %c0_i32_0 = arith.constant 0 : i32
    return %arg0, %c0_i32 : i32, i32
  }
  func.func @transform_1(%arg0: i32) -> (i32, i32) {
    %c0_i32 = arith.constant 0 : i32
    %c0_i32_0 = arith.constant 0 : i32
    %c0_i32_1 = arith.constant 0 : i32
    return %c0_i32, %c0_i32_0 : i32, i32
  }
  func.func @transform_2(%arg0: i32) -> (i32, i32) {
    %c0_i32 = arith.constant 0 : i32
    %c0_i32_0 = arith.constant 0 : i32
    %c0_i32_1 = arith.constant 0 : i32
    return %c0_i32, %c0_i32_0 : i32, i32
  }
  func.func @transform_3(%arg0: i32) -> (i32, i32) {
    %c0_i32 = arith.constant 0 : i32
    %c0_i32_0 = arith.constant 0 : i32
    %c0_i32_1 = arith.constant 0 : i32
    return %c0_i32, %c0_i32_0 : i32, i32
  }
  func.func @transform_4(%arg0: i32) -> (i32, i32) {
    %c0_i32 = arith.constant 0 : i32
    %c0_i32_0 = arith.constant 0 : i32
    return %arg0, %c0_i32 : i32, i32
  }
}

module attributes {stable_mosaic.version = 11 : i64} {
  func.func @_bias_tanh_kernel(%arg0: i32, %arg1: memref<64x128xf32, #tpu.memory_space<vmem>>, %arg2: memref<1x128xf32, #tpu.memory_space<vmem>>, %arg3: memref<64x128xf32, #tpu.memory_space<vmem>>) attributes {dimension_semantics = [#tpu.dimension_semantics<parallel>], iteration_bounds = array<i64: 1>, scalar_prefetch = 0 : i64, scratch_operands = 0 : i64, tpu.core_type = #tpu.core_type<tc>, window_params = [{transform_indices = @transform_0, window_bounds = array<i64: 64, 128>}, {pipeline_mode = #tpu.pipeline_mode<synchronous>, transform_indices = @transform_1, window_bounds = array<i64: 1, 128>}, {transform_indices = @transform_2, window_bounds = array<i64: 64, 128>}]} {
    %c0 = arith.constant 0 : index
    %c0_0 = arith.constant 0 : index
    %0 = vector.load %arg1[%c0, %c0_0] : memref<64x128xf32, #tpu.memory_space<vmem>>, vector<64x128xf32>
    %c0_1 = arith.constant 0 : index
    %c0_2 = arith.constant 0 : index
    %1 = vector.load %arg2[%c0_1, %c0_2] : memref<1x128xf32, #tpu.memory_space<vmem>>, vector<1x128xf32>
    %2 = vector.broadcast %1 : vector<1x128xf32> to vector<64x128xf32>
    %3 = arith.addf %0, %2 : vector<64x128xf32>
    %4 = math.tanh %3 : vector<64x128xf32>
    %c0_3 = arith.constant 0 : index
    %c0_4 = arith.constant 0 : index
    %5 = vector.load %arg3[%c0_3, %c0_4] : memref<64x128xf32, #tpu.memory_space<vmem>>, vector<64x128xf32>
    tpu.vector_store %arg3[%c0_3, %c0_4], %4 {strides = array<i32>} : memref<64x128xf32, #tpu.memory_space<vmem>>, vector<64x128xf32>,
    return
  }
  func.func @transform_0(%arg0: i32) -> (i32, i32) {
    %c0_i32 = arith.constant 0 : i32
    %c0_i32_0 = arith.constant 0 : i32
    return %arg0, %c0_i32 : i32, i32
  }
  func.func @transform_1(%arg0: i32) -> (i32, i32) {
    %c0_i32 = arith.constant 0 : i32
    %c0_i32_0 = arith.constant 0 : i32
    %c0_i32_1 = arith.constant 0 : i32
    return %c0_i32, %c0_i32_0 : i32, i32
  }
  func.func @transform_2(%arg0: i32) -> (i32, i32) {
    %c0_i32 = arith.constant 0 : i32
    %c0_i32_0 = arith.constant 0 : i32
    return %arg0, %c0_i32 : i32, i32
  }
}

</mosaic_0001>

<llo_original>
// kernel: forward.6
$region0: #{forward.6}
  #allocation0 [shape = 'u32[]', space=smem, size = 0x4, offset = 0x4, fixed_abs, tag = 'smem constant byte address 0x4 - core index']
  #allocation1 [shape = 'u32[144,128]{1,0:T(1,128)}', space=vmem, size = 0x12000, scoped, tag = 'internal scratch']
  %s0 = inlined_call_operand.vmem [shape: f32[8,128], index: 0, kind: input, shape index: {}]
  %s1 = inlined_call_operand.vmem [shape: f32[1,128], index: 1, kind: input, shape index: {}]
  %s2 = inlined_call_operand.vmem [shape: f32[1,128], index: 2, kind: input, shape index: {}]
  %s3 = inlined_call_operand.vmem [shape: bf16[128,2048], index: 3, kind: input, shape index: {}]
  %s4 = inlined_call_operand.vmem [shape: f32[8,2048], index: 4, kind: output, shape index: {}]
  %s5 = sld [smem:[#allocation0]]
  $region26: #{forward.6} parent=0
    _
  %s7 = ssub.s32 1, %s5
  %s8 = scalar_select 0, %s7, %s5
  // Predicated region
  $region2: #{forward.6} parent=0 // pred_check
    _
  $region3: #{forward.6} parent=0 // pred_check_branch
    %10 = sbr.rel (0) target = $region5
  $region4: #{forward.6} parent=0 // pred_region
    _
  $region5: #{forward.6} parent=0 // pred_fallthru
    _
  // Predicated region
  $region6: #{forward.6} parent=0 // pred_check
    _
  $region7: #{forward.6} parent=0 // pred_check_branch
    %12 = sbr.rel (0) target = $region9
  $region8: #{forward.6} parent=0 // pred_region
    _
  $region9: #{forward.6} parent=0 // pred_fallthru
    _
  // Predicated region
  $region10: #{forward.6} parent=0 // pred_check
    _
  $region11: #{forward.6} parent=0 // pred_check_branch
    %14 = sbr.rel (0) target = $region13
  $region12: #{forward.6} parent=0 // pred_region
    _
  $region13: #{forward.6} parent=0 // pred_fallthru
    _
  // Predicated region
  $region14: #{forward.6} parent=0 // pred_check
    _
  $region15: #{forward.6} parent=0 // pred_check_branch
    %16 = sbr.rel (0) target = $region17
  $region16: #{forward.6} parent=0 // pred_region
    _
  $region17: #{forward.6} parent=0 // pred_fallthru
    _
  %v18 = vld [vmem:[%s0] sm:$0xff]
  %v19 = vpack.c.bf16 %v18, %v18
  %v20 = vld [vmem:[%s3] sm:$0xff]
  %v21 = vld [vmem:[%s3 + $0x8] sm:$0xff]
  %v22 = vld [vmem:[%s3 + $0x10] sm:$0xff]
  %v23 = vld [vmem:[%s3 + $0x18] sm:$0xff]
  %v24 = vld [vmem:[%s3 + $0x20] sm:$0xff]
  %v25 = vld [vmem:[%s3 + $0x28] sm:$0xff]
  %v26 = vld [vmem:[%s3 + $0x30] sm:$0xff]
  %v27 = vld [vmem:[%s3 + $0x38] sm:$0xff]
  %v28 = vld [vmem:[%s3 + $0x40] sm:$0xff]
  %v29 = vld [vmem:[%s3 + $0x48] sm:$0xff]
  %v30 = vld [vmem:[%s3 + $0x50] sm:$0xff]
  %v31 = vld [vmem:[%s3 + $0x58] sm:$0xff]
  %v32 = vld [vmem:[%s3 + $0x60] sm:$0xff]
  %v33 = vld [vmem:[%s3 + $0x68] sm:$0xff]
  %v34 = vld [vmem:[%s3 + $0x70] sm:$0xff]
  %v35 = vld [vmem:[%s3 + $0x78] sm:$0xff]
  %v36 = vld [vmem:[%s3 + $0x80] sm:$0xff]
  %v37 = vld [vmem:[%s3 + $0x88] sm:$0xff]
  %v38 = vld [vmem:[%s3 + $0x90] sm:$0xff]
  %v39 = vld [vmem:[%s3 + $0x98] sm:$0xff]
  %v40 = vld [vmem:[%s3 + $0xa0] sm:$0xff]
  %v41 = vld [vmem:[%s3 + $0xa8] sm:$0xff]
  %v42 = vld [vmem:[%s3 + $0xb0] sm:$0xff]
  %v43 = vld [vmem:[%s3 + $0xb8] sm:$0xff]
  %v44 = vld [vmem:[%s3 + $0xc0] sm:$0xff]
  %v45 = vld [vmem:[%s3 + $0xc8] sm:$0xff]
  %v46 = vld [vmem:[%s3 + $0xd0] sm:$0xff]
  %v47 = vld [vmem:[%s3 + $0xd8] sm:$0xff]
  %v48 = vld [vmem:[%s3 + $0xe0] sm:$0xff]
  %v49 = vld [vmem:[%s3 + $0xe8] sm:$0xff]
  %v50 = vld [vmem:[%s3 + $0xf0] sm:$0xff]
  %v51 = vld [vmem:[%s3 + $0xf8] sm:$0xff]
  %v52 = vld [vmem:[%s3 + $0x100] sm:$0xff]
  %v53 = vld [vmem:[%s3 + $0x108] sm:$0xff]
  %v54 = vld [vmem:[%s3 + $0x110] sm:$0xff]
  %v55 = vld [vmem:[%s3 + $0x118] sm:$0xff]
  %v56 = vld [vmem:[%s3 + $0x120] sm:$0xff]
  %v57 = vld [vmem:[%s3 + $0x128] sm:$0xff]
  %v58 = vld [vmem:[%s3 + $0x130] sm:$0xff]
  %v59 = vld [vmem:[%s3 + $0x138] sm:$0xff]
  %v60 = vld [vmem:[%s3 + $0x140] sm:$0xff]
  %v61 = vld [vmem:[%s3 + $0x148] sm:$0xff]
  %v62 = vld [vmem:[%s3 + $0x150] sm:$0xff]
  %v63 = vld [vmem:[%s3 + $0x158] sm:$0xff]
  %v64 = vld [vmem:[%s3 + $0x160] sm:$0xff]
  %v65 = vld [vmem:[%s3 + $0x168] sm:$0xff]
  %v66 = vld [vmem:[%s3 + $0x170] sm:$0xff]
  %v67 = vld [vmem:[%s3 + $0x178] sm:$0xff]
  %v68 = vld [vmem:[%s3 + $0x180] sm:$0xff]
  %v69 = vld [vmem:[%s3 + $0x188] sm:$0xff]
  %v70 = vld [vmem:[%s3 + $0x190] sm:$0xff]
  %v71 = vld [vmem:[%s3 + $0x198] sm:$0xff]
  %v72 = vld [vmem:[%s3 + $0x1a0] sm:$0xff]
  %v73 = vld [vmem:[%s3 + $0x1a8] sm:$0xff]
  %v74 = vld [vmem:[%s3 + $0x1b0] sm:$0xff]
  %v75 = vld [vmem:[%s3 + $0x1b8] sm:$0xff]
  %v76 = vld [vmem:[%s3 + $0x1c0] sm:$0xff]
  %v77 = vld [vmem:[%s3 + $0x1c8] sm:$0xff]
  %v78 = vld [vmem:[%s3 + $0x1d0] sm:$0xff]
  %v79 = vld [vmem:[%s3 + $0x1d8] sm:$0xff]
  %v80 = vld [vmem:[%s3 + $0x1e0] sm:$0xff]
  %v81 = vld [vmem:[%s3 + $0x1e8] sm:$0xff]
  %v82 = vld [vmem:[%s3 + $0x1f0] sm:$0xff]
  %v83 = vld [vmem:[%s3 + $0x1f8] sm:$0xff]
  %v84 = vld [vmem:[%s3 + $0x200] sm:$0xff]
  %v85 = vld [vmem:[%s3 + $0x208] sm:$0xff]
  %v86 = vld [vmem:[%s3 + $0x210] sm:$0xff]
  %v87 = vld [vmem:[%s3 + $0x218] sm:$0xff]
  %v88 = vld [vmem:[%s3 + $0x220] sm:$0xff]
  %v89 = vld [vmem:[%s3 + $0x228] sm:$0xff]
  %v90 = vld [vmem:[%s3 + $0x230] sm:$0xff]
  %v91 = vld [vmem:[%s3 + $0x238] sm:$0xff]
  %v92 = vld [vmem:[%s3 + $0x240] sm:$0xff]
  %v93 = vld [vmem:[%s3 + $0x248] sm:$0xff]
  %v94 = vld [vmem:[%s3 + $0x250] sm:$0xff]
  %v95 = vld [vmem:[%s3 + $0x258] sm:$0xff]
  %v96 = vld [vmem:[%s3 + $0x260] sm:$0xff]
  %v97 = vld [vmem:[%s3 + $0x268] sm:$0xff]
  %v98 = vld [vmem:[%s3 + $0x270] sm:$0xff]
  %v99 = vld [vmem:[%s3 + $0x278] sm:$0xff]
  %v100 = vld [vmem:[%s3 + $0x280] sm:$0xff]
  %v101 = vld [vmem:[%s3 + $0x288] sm:$0xff]
  %v102 = vld [vmem:[%s3 + $0x290] sm:$0xff]
  %v103 = vld [vmem:[%s3 + $0x298] sm:$0xff]
  %v104 = vld [vmem:[%s3 + $0x2a0] sm:$0xff]
  %v105 = vld [vmem:[%s3 + $0x2a8] sm:$0xff]
  %v106 = vld [vmem:[%s3 + $0x2b0] sm:$0xff]
  %v107 = vld [vmem:[%s3 + $0x2b8] sm:$0xff]
  %v108 = vld [vmem:[%s3 + $0x2c0] sm:$0xff]
  %v109 = vld [vmem:[%s3 + $0x2c8] sm:$0xff]
  %v110 = vld [vmem:[%s3 + $0x2d0] sm:$0xff]
  %v111 = vld [vmem:[%s3 + $0x2d8] sm:$0xff]
  %v112 = vld [vmem:[%s3 + $0x2e0] sm:$0xff]
  %v113 = vld [vmem:[%s3 + $0x2e8] sm:$0xff]
  %v114 = vld [vmem:[%s3 + $0x2f0] sm:$0xff]
  %v115 = vld [vmem:[%s3 + $0x2f8] sm:$0xff]
  %v116 = vld [vmem:[%s3 + $0x300] sm:$0xff]
  %v117 = vld [vmem:[%s3 + $0x308] sm:$0xff]
  %v118 = vld [vmem:[%s3 + $0x310] sm:$0xff]
  %v119 = vld [vmem:[%s3 + $0x318] sm:$0xff]
  %v120 = vld [vmem:[%s3 + $0x320] sm:$0xff]
  %v121 = vld [vmem:[%s3 + $0x328] sm:$0xff]
  %v122 = vld [vmem:[%s3 + $0x330] sm:$0xff]
  %v123 = vld [vmem:[%s3 + $0x338] sm:$0xff]
  %v124 = vld [vmem:[%s3 + $0x340] sm:$0xff]
  %v125 = vld [vmem:[%s3 + $0x348] sm:$0xff]
  %v126 = vld [vmem:[%s3 + $0x350] sm:$0xff]
  %v127 = vld [vmem:[%s3 + $0x358] sm:$0xff]
  %v128 = vld [vmem:[%s3 + $0x360] sm:$0xff]
  %v129 = vld [vmem:[%s3 + $0x368] sm:$0xff]
  %v130 = vld [vmem:[%s3 + $0x370] sm:$0xff]
  %v131 = vld [vmem:[%s3 + $0x378] sm:$0xff]
  %v132 = vld [vmem:[%s3 + $0x380] sm:$0xff]
  %v133 = vld [vmem:[%s3 + $0x388] sm:$0xff]
  %v134 = vld [vmem:[%s3 + $0x390] sm:$0xff]
  %v135 = vld [vmem:[%s3 + $0x398] sm:$0xff]
  %v136 = vld [vmem:[%s3 + $0x3a0] sm:$0xff]
  %v137 = vld [vmem:[%s3 + $0x3a8] sm:$0xff]
  %v138 = vld [vmem:[%s3 + $0x3b0] sm:$0xff]
  %v139 = vld [vmem:[%s3 + $0x3b8] sm:$0xff]
  %v140 = vld [vmem:[%s3 + $0x3c0] sm:$0xff]
  %v141 = vld [vmem:[%s3 + $0x3c8] sm:$0xff]
  %v142 = vld [vmem:[%s3 + $0x3d0] sm:$0xff]
  %v143 = vld [vmem:[%s3 + $0x3d8] sm:$0xff]
  %v144 = vld [vmem:[%s3 + $0x3e0] sm:$0xff]
  %v145 = vld [vmem:[%s3 + $0x3e8] sm:$0xff]
  %v146 = vld [vmem:[%s3 + $0x3f0] sm:$0xff]
  %v147 = vld [vmem:[%s3 + $0x3f8] sm:$0xff]
  %v276 = vunpack.c.l.b16 %v20
  %v277 = vunpack.c.h.b16 %v20
  %v278 = vunpack.c.l.b16 %v21
  %v279 = vunpack.c.h.b16 %v21
  %v280 = vunpack.c.l.b16 %v22
  %v281 = vunpack.c.h.b16 %v22
  %v282 = vunpack.c.l.b16 %v23
  %v283 = vunpack.c.h.b16 %v23
  %v284 = vunpack.c.l.b16 %v24
  %v285 = vunpack.c.h.b16 %v24
  %v286 = vunpack.c.l.b16 %v25
  %v287 = vunpack.c.h.b16 %v25
  %v288 = vunpack.c.l.b16 %v26
  %v289 = vunpack.c.h.b16 %v26
  %v290 = vunpack.c.l.b16 %v27
  %v291 = vunpack.c.h.b16 %v27
  %v292 = vunpack.c.l.b16 %v28
  %v293 = vunpack.c.h.b16 %v28
  %v294 = vunpack.c.l.b16 %v29
  %v295 = vunpack.c.h.b16 %v29
  %v296 = vunpack.c.l.b16 %v30
  %v297 = vunpack.c.h.b16 %v30
  %v298 = vunpack.c.l.b16 %v31
  %v299 = vunpack.c.h.b16 %v31
  %v300 = vunpack.c.l.b16 %v32
  %v301 = vunpack.c.h.b16 %v32
  %v302 = vunpack.c.l.b16 %v33
  %v303 = vunpack.c.h.b16 %v33
  %v304 = vunpack.c.l.b16 %v34
  %v305 = vunpack.c.h.b16 %v34
  %v306 = vunpack.c.l.b16 %v35
  %v307 = vunpack.c.h.b16 %v35
  %v308 = vunpack.c.l.b16 %v36
  %v309 = vunpack.c.h.b16 %v36
  %v310 = vunpack.c.l.b16 %v37
  %v311 = vunpack.c.h.b16 %v37
  %v312 = vunpack.c.l.b16 %v38
  %v313 = vunpack.c.h.b16 %v38
  %v314 = vunpack.c.l.b16 %v39
  %v315 = vunpack.c.h.b16 %v39
  %v316 = vunpack.c.l.b16 %v40
  %v317 = vunpack.c.h.b16 %v40
  %v318 = vunpack.c.l.b16 %v41
  %v319 = vunpack.c.h.b16 %v41
  %v320 = vunpack.c.l.b16 %v42
  %v321 = vunpack.c.h.b16 %v42
  %v322 = vunpack.c.l.b16 %v43
  %v323 = vunpack.c.h.b16 %v43
  %v324 = vunpack.c.l.b16 %v44
  %v325 = vunpack.c.h.b16 %v44
  %v326 = vunpack.c.l.b16 %v45
  %v327 = vunpack.c.h.b16 %v45
  %v328 = vunpack.c.l.b16 %v46
  %v329 = vunpack.c.h.b16 %v46
  %v330 = vunpack.c.l.b16 %v47
  %v331 = vunpack.c.h.b16 %v47
  %v332 = vunpack.c.l.b16 %v48
  %v333 = vunpack.c.h.b16 %v48
  %v334 = vunpack.c.l.b16 %v49
  %v335 = vunpack.c.h.b16 %v49
  %v336 = vunpack.c.l.b16 %v50
  %v337 = vunpack.c.h.b16 %v50
  %v338 = vunpack.c.l.b16 %v51
  %v339 = vunpack.c.h.b16 %v51
  %v340 = vunpack.c.l.b16 %v52
  %v341 = vunpack.c.h.b16 %v52
  %v342 = vunpack.c.l.b16 %v53
  %v343 = vunpack.c.h.b16 %v53
  %v344 = vunpack.c.l.b16 %v54
  %v345 = vunpack.c.h.b16 %v54
  %v346 = vunpack.c.l.b16 %v55
  %v347 = vunpack.c.h.b16 %v55
  %v348 = vunpack.c.l.b16 %v56
  %v349 = vunpack.c.h.b16 %v56
  %v350 = vunpack.c.l.b16 %v57
  %v351 = vunpack.c.h.b16 %v57
  %v352 = vunpack.c.l.b16 %v58
  %v353 = vunpack.c.h.b16 %v58
  %v354 = vunpack.c.l.b16 %v59
  %v355 = vunpack.c.h.b16 %v59
  %v356 = vunpack.c.l.b16 %v60
  %v357 = vunpack.c.h.b16 %v60
  %v358 = vunpack.c.l.b16 %v61
  %v359 = vunpack.c.h.b16 %v61
  %v360 = vunpack.c.l.b16 %v62
  %v361 = vunpack.c.h.b16 %v62
  %v362 = vunpack.c.l.b16 %v63
  %v363 = vunpack.c.h.b16 %v63
  %v364 = vunpack.c.l.b16 %v64
  %v365 = vunpack.c.h.b16 %v64
  %v366 = vunpack.c.l.b16 %v65
  %v367 = vunpack.c.h.b16 %v65
  %v368 = vunpack.c.l.b16 %v66
  %v369 = vunpack.c.h.b16 %v66
  %v370 = vunpack.c.l.b16 %v67
  %v371 = vunpack.c.h.b16 %v67
  %v372 = vunpack.c.l.b16 %v68
  %v373 = vunpack.c.h.b16 %v68
  %v374 = vunpack.c.l.b16 %v69
  %v375 = vunpack.c.h.b16 %v69
  %v376 = vunpack.c.l.b16 %v70
  %v377 = vunpack.c.h.b16 %v70
  %v378 = vunpack.c.l.b16 %v71
  %v379 = vunpack.c.h.b16 %v71
  %v380 = vunpack.c.l.b16 %v72
  %v381 = vunpack.c.h.b16 %v72
  %v382 = vunpack.c.l.b16 %v73
  %v383 = vunpack.c.h.b16 %v73
  %v384 = vunpack.c.l.b16 %v74
  %v385 = vunpack.c.h.b16 %v74
  %v386 = vunpack.c.l.b16 %v75
  %v387 = vunpack.c.h.b16 %v75
  %v388 = vunpack.c.l.b16 %v76
  %v389 = vunpack.c.h.b16 %v76
  %v390 = vunpack.c.l.b16 %v77
  %v391 = vunpack.c.h.b16 %v77
  %v392 = vunpack.c.l.b16 %v78
  %v393 = vunpack.c.h.b16 %v78
  %v394 = vunpack.c.l.b16 %v79
  %v395 = vunpack.c.h.b16 %v79
  %v396 = vunpack.c.l.b16 %v80
  %v397 = vunpack.c.h.b16 %v80
  %v398 = vunpack.c.l.b16 %v81
  %v399 = vunpack.c.h.b16 %v81
  %v400 = vunpack.c.l.b16 %v82
  %v401 = vunpack.c.h.b16 %v82
  %v402 = vunpack.c.l.b16 %v83
  %v403 = vunpack.c.h.b16 %v83
  %v404 = vunpack.c.l.b16 %v84
  %v405 = vunpack.c.h.b16 %v84
  %v406 = vunpack.c.l.b16 %v85
  %v407 = vunpack.c.h.b16 %v85
  %v408 = vunpack.c.l.b16 %v86
  %v409 = vunpack.c.h.b16 %v86
  %v410 = vunpack.c.l.b16 %v87
  %v411 = vunpack.c.h.b16 %v87
  %v412 = vunpack.c.l.b16 %v88
  %v413 = vunpack.c.h.b16 %v88
  %v414 = vunpack.c.l.b16 %v89
  %v415 = vunpack.c.h.b16 %v89
  %v416 = vunpack.c.l.b16 %v90
  %v417 = vunpack.c.h.b16 %v90
  %v418 = vunpack.c.l.b16 %v91
  %v419 = vunpack.c.h.b16 %v91
  %v420 = vunpack.c.l.b16 %v92
  %v421 = vunpack.c.h.b16 %v92
  %v422 = vunpack.c.l.b16 %v93
  %v423 = vunpack.c.h.b16 %v93
  %v424 = vunpack.c.l.b16 %v94
  %v425 = vunpack.c.h.b16 %v94
  %v426 = vunpack.c.l.b16 %v95
  %v427 = vunpack.c.h.b16 %v95
  %v428 = vunpack.c.l.b16 %v96
  %v429 = vunpack.c.h.b16 %v96
  %v430 = vunpack.c.l.b16 %v97
  %v431 = vunpack.c.h.b16 %v97
  %v432 = vunpack.c.l.b16 %v98
  %v433 = vunpack.c.h.b16 %v98
  %v434 = vunpack.c.l.b16 %v99
  %v435 = vunpack.c.h.b16 %v99
  %v436 = vunpack.c.l.b16 %v100
  %v437 = vunpack.c.h.b16 %v100
  %v438 = vunpack.c.l.b16 %v101
  %v439 = vunpack.c.h.b16 %v101
  %v440 = vunpack.c.l.b16 %v102
  %v441 = vunpack.c.h.b16 %v102
  %v442 = vunpack.c.l.b16 %v103
  %v443 = vunpack.c.h.b16 %v103
  %v444 = vunpack.c.l.b16 %v104
  %v445 = vunpack.c.h.b16 %v104
  %v446 = vunpack.c.l.b16 %v105
  %v447 = vunpack.c.h.b16 %v105
  %v448 = vunpack.c.l.b16 %v106
  %v449 = vunpack.c.h.b16 %v106
  %v450 = vunpack.c.l.b16 %v107
  %v451 = vunpack.c.h.b16 %v107
  %v452 = vunpack.c.l.b16 %v108
  %v453 = vunpack.c.h.b16 %v108
  %v454 = vunpack.c.l.b16 %v109
  %v455 = vunpack.c.h.b16 %v109
  %v456 = vunpack.c.l.b16 %v110
  %v457 = vunpack.c.h.b16 %v110
  %v458 = vunpack.c.l.b16 %v111
  %v459 = vunpack.c.h.b16 %v111
  %v460 = vunpack.c.l.b16 %v112
  %v461 = vunpack.c.h.b16 %v112
  %v462 = vunpack.c.l.b16 %v113
  %v463 = vunpack.c.h.b16 %v113
  %v464 = vunpack.c.l.b16 %v114
  %v465 = vunpack.c.h.b16 %v114
  %v466 = vunpack.c.l.b16 %v115
  %v467 = vunpack.c.h.b16 %v115
  %v468 = vunpack.c.l.b16 %v116
  %v469 = vunpack.c.h.b16 %v116
  %v470 = vunpack.c.l.b16 %v117
  %v471 = vunpack.c.h.b16 %v117
  %v472 = vunpack.c.l.b16 %v118
  %v473 = vunpack.c.h.b16 %v118
  %v474 = vunpack.c.l.b16 %v119
  %v475 = vunpack.c.h.b16 %v119
  %v476 = vunpack.c.l.b16 %v120
  %v477 = vunpack.c.h.b16 %v120
  %v478 = vunpack.c.l.b16 %v121
  %v479 = vunpack.c.h.b16 %v121
  %v480 = vunpack.c.l.b16 %v122
  %v481 = vunpack.c.h.b16 %v122
  %v482 = vunpack.c.l.b16 %v123
  %v483 = vunpack.c.h.b16 %v123
  %v484 = vunpack.c.l.b16 %v124
  %v485 = vunpack.c.h.b16 %v124
  %v486 = vunpack.c.l.b16 %v125
  %v487 = vunpack.c.h.b16 %v125
  %v488 = vunpack.c.l.b16 %v126
  %v489 = vunpack.c.h.b16 %v126
  %v490 = vunpack.c.l.b16 %v127
  %v491 = vunpack.c.h.b16 %v127
  %v492 = vunpack.c.l.b16 %v128
  %v493 = vunpack.c.h.b16 %v128
  %v494 = vunpack.c.l.b16 %v129
  %v495 = vunpack.c.h.b16 %v129
  %v496 = vunpack.c.l.b16 %v130
  %v497 = vunpack.c.h.b16 %v130
  %v498 = vunpack.c.l.b16 %v131
  %v499 = vunpack.c.h.b16 %v131
  %v500 = vunpack.c.l.b16 %v132
  %v501 = vunpack.c.h.b16 %v132
  %v502 = vunpack.c.l.b16 %v133
  %v503 = vunpack.c.h.b16 %v133
  %v504 = vunpack.c.l.b16 %v134
  %v505 = vunpack.c.h.b16 %v134
  %v506 = vunpack.c.l.b16 %v135
  %v507 = vunpack.c.h.b16 %v135
  %v508 = vunpack.c.l.b16 %v136
  %v509 = vunpack.c.h.b16 %v136
  %v510 = vunpack.c.l.b16 %v137
  %v511 = vunpack.c.h.b16 %v137
  %v512 = vunpack.c.l.b16 %v138
  %v513 = vunpack.c.h.b16 %v138
  %v514 = vunpack.c.l.b16 %v139
  %v515 = vunpack.c.h.b16 %v139
  %v516 = vunpack.c.l.b16 %v140
  %v517 = vunpack.c.h.b16 %v140
  %v518 = vunpack.c.l.b16 %v141
  %v519 = vunpack.c.h.b16 %v141
  %v520 = vunpack.c.l.b16 %v142
  %v521 = vunpack.c.h.b16 %v142
  %v522 = vunpack.c.l.b16 %v143
  %v523 = vunpack.c.h.b16 %v143
  %v524 = vunpack.c.l.b16 %v144
  %v525 = vunpack.c.h.b16 %v144
  %v526 = vunpack.c.l.b16 %v145
  %v527 = vunpack.c.h.b16 %v145
  %v528 = vunpack.c.l.b16 %v146
  %v529 = vunpack.c.h.b16 %v146
  %v530 = vunpack.c.l.b16 %v147
  %v531 = vunpack.c.h.b16 %v147
  %v532 = vpack.c.b16 %v292, %v276
  %v533 = vpack.c.b16 %v293, %v277
  %v534 = vpack.c.b16 %v294, %v278
  %v535 = vpack.c.b16 %v295, %v279
  %v536 = vpack.c.b16 %v296, %v280
  %v537 = vpack.c.b16 %v297, %v281
  %v538 = vpack.c.b16 %v298, %v282
  %v539 = vpack.c.b16 %v299, %v283
  %v540 = vpack.c.b16 %v300, %v284
  %v541 = vpack.c.b16 %v301, %v285
  %v542 = vpack.c.b16 %v302, %v286
  %v543 = vpack.c.b16 %v303, %v287
  %v544 = vpack.c.b16 %v304, %v288
  %v545 = vpack.c.b16 %v305, %v289
  %v546 = vpack.c.b16 %v306, %v290
  %v547 = vpack.c.b16 %v307, %v291
  %v548 = vpack.c.b16 %v324, %v308
  %v549 = vpack.c.b16 %v325, %v309
  %v550 = vpack.c.b16 %v326, %v310
  %v551 = vpack.c.b16 %v327, %v311
  %v552 = vpack.c.b16 %v328, %v312
  %v553 = vpack.c.b16 %v329, %v313
  %v554 = vpack.c.b16 %v330, %v314
  %v555 = vpack.c.b16 %v331, %v315
  %v556 = vpack.c.b16 %v332, %v316
  %v557 = vpack.c.b16 %v333, %v317
  %v558 = vpack.c.b16 %v334, %v318
  %v559 = vpack.c.b16 %v335, %v319
  %v560 = vpack.c.b16 %v336, %v320
  %v561 = vpack.c.b16 %v337, %v321
  %v562 = vpack.c.b16 %v338, %v322
  %v563 = vpack.c.b16 %v339, %v323
  %v564 = vpack.c.b16 %v356, %v340
  %v565 = vpack.c.b16 %v357, %v341
  %v566 = vpack.c.b16 %v358, %v342
  %v567 = vpack.c.b16 %v359, %v343
  %v568 = vpack.c.b16 %v360, %v344
  %v569 = vpack.c.b16 %v361, %v345
  %v570 = vpack.c.b16 %v362, %v346
  %v571 = vpack.c.b16 %v363, %v347
  %v572 = vpack.c.b16 %v364, %v348
  %v573 = vpack.c.b16 %v365, %v349
  %v574 = vpack.c.b16 %v366, %v350
  %v575 = vpack.c.b16 %v367, %v351
  %v576 = vpack.c.b16 %v368, %v352
  %v577 = vpack.c.b16 %v369, %v353
  %v578 = vpack.c.b16 %v370, %v354
  %v579 = vpack.c.b16 %v371, %v355
  %v580 = vpack.c.b16 %v388, %v372
  %v581 = vpack.c.b16 %v389, %v373
  %v582 = vpack.c.b16 %v390, %v374
  %v583 = vpack.c.b16 %v391, %v375
  %v584 = vpack.c.b16 %v392, %v376
  %v585 = vpack.c.b16 %v393, %v377
  %v586 = vpack.c.b16 %v394, %v378
  %v587 = vpack.c.b16 %v395, %v379
  %v588 = vpack.c.b16 %v396, %v380
  %v589 = vpack.c.b16 %v397, %v381
  %v590 = vpack.c.b16 %v398, %v382
  %v591 = vpack.c.b16 %v399, %v383
  %v592 = vpack.c.b16 %v400, %v384
  %v593 = vpack.c.b16 %v401, %v385
  %v594 = vpack.c.b16 %v402, %v386
  %v595 = vpack.c.b16 %v403, %v387
  %v596 = vpack.c.b16 %v420, %v404
  %v597 = vpack.c.b16 %v421, %v405
  %v598 = vpack.c.b16 %v422, %v406
  %v599 = vpack.c.b16 %v423, %v407
  %v600 = vpack.c.b16 %v424, %v408
  %v601 = vpack.c.b16 %v425, %v409
  %v602 = vpack.c.b16 %v426, %v410
  %v603 = vpack.c.b16 %v427, %v411
  %v604 = vpack.c.b16 %v428, %v412
  %v605 = vpack.c.b16 %v429, %v413
  %v606 = vpack.c.b16 %v430, %v414
  %v607 = vpack.c.b16 %v431, %v415
  %v608 = vpack.c.b16 %v432, %v416
  %v609 = vpack.c.b16 %v433, %v417
  %v610 = vpack.c.b16 %v434, %v418
  %v611 = vpack.c.b16 %v435, %v419
  %v612 = vpack.c.b16 %v452, %v436
  %v613 = vpack.c.b16 %v453, %v437
  %v614 = vpack.c.b16 %v454, %v438
  %v615 = vpack.c.b16 %v455, %v439
  %v616 = vpack.c.b16 %v456, %v440
  %v617 = vpack.c.b16 %v457, %v441
  %v618 = vpack.c.b16 %v458, %v442
  %v619 = vpack.c.b16 %v459, %v443
  %v620 = vpack.c.b16 %v460, %v444
  %v621 = vpack.c.b16 %v461, %v445
  %v622 = vpack.c.b16 %v462, %v446
  %v623 = vpack.c.b16 %v463, %v447
  %v624 = vpack.c.b16 %v464, %v448
  %v625 = vpack.c.b16 %v465, %v449
  %v626 = vpack.c.b16 %v466, %v450
  %v627 = vpack.c.b16 %v467, %v451
  %v628 = vpack.c.b16 %v484, %v468
  %v629 = vpack.c.b16 %v485, %v469
  %v630 = vpack.c.b16 %v486, %v470
  %v631 = vpack.c.b16 %v487, %v471
  %v632 = vpack.c.b16 %v488, %v472
  %v633 = vpack.c.b16 %v489, %v473
  %v634 = vpack.c.b16 %v490, %v474
  %v635 = vpack.c.b16 %v491, %v475
  %v636 = vpack.c.b16 %v492, %v476
  %v637 = vpack.c.b16 %v493, %v477
  %v638 = vpack.c.b16 %v494, %v478
  %v639 = vpack.c.b16 %v495, %v479
  %v640 = vpack.c.b16 %v496, %v480
  %v641 = vpack.c.b16 %v497, %v481
  %v642 = vpack.c.b16 %v498, %v482
  %v643 = vpack.c.b16 %v499, %v483
  %v644 = vpack.c.b16 %v516, %v500
  %v645 = vpack.c.b16 %v517, %v501
  %v646 = vpack.c.b16 %v518, %v502
  %v647 = vpack.c.b16 %v519, %v503
  %v648 = vpack.c.b16 %v520, %v504
  %v649 = vpack.c.b16 %v521, %v505
  %v650 = vpack.c.b16 %v522, %v506
  %v651 = vpack.c.b16 %v523, %v507
  %v652 = vpack.c.b16 %v524, %v508
  %v653 = vpack.c.b16 %v525, %v509
  %v654 = vpack.c.b16 %v526, %v510
  %v655 = vpack.c.b16 %v527, %v511
  %v656 = vpack.c.b16 %v528, %v512
  %v657 = vpack.c.b16 %v529, %v513
  %v658 = vpack.c.b16 %v530, %v514
  %v659 = vpack.c.b16 %v531, %v515
  %788 = vmatprep.subr.bf16.mxu0 %v533
  %789 = vmatpush1.bf16.msra.mxu0 %v532
  %790 = vmatprep.subr.bf16.mxu0 %v549
  %791 = vmatpush1.bf16.msra.mxu0 %v548
  %792 = vmatprep.subr.bf16.mxu0 %v565
  %793 = vmatpush1.bf16.msra.mxu0 %v564
  %794 = vmatprep.subr.bf16.mxu0 %v581
  %795 = vmatpush1.bf16.msra.mxu0 %v580
  %796 = vmatprep.subr.bf16.mxu0 %v597
  %797 = vmatpush1.bf16.msra.mxu0 %v596
  %798 = vmatprep.subr.bf16.mxu0 %v613
  %799 = vmatpush1.bf16.msra.mxu0 %v612
  %800 = vmatprep.subr.bf16.mxu0 %v629
  %801 = vmatpush1.bf16.msra.mxu0 %v628
  %802 = vmatprep.subr.bf16.mxu0 %v645
  %803 = vmatpush1.bf16.msra.mxu0 %v644
  %804 = vmatprep.subr.bf16.mxu0 0
  %805 = vmatpush1.bf16.msra.mxu0 0
  %806 = vmatprep.subr.bf16.mxu0 0
  %807 = vmatpush1.bf16.msra.mxu0 0
  %808 = vmatprep.subr.bf16.mxu0 0
  %809 = vmatpush1.bf16.msra.mxu0 0
  %810 = vmatprep.subr.bf16.mxu0 0
  %811 = vmatpush1.bf16.msra.mxu0 0
  %812 = vmatprep.subr.bf16.mxu0 0
  %813 = vmatpush1.bf16.msra.mxu0 0
  %814 = vmatprep.subr.bf16.mxu0 0
  %815 = vmatpush1.bf16.msra.mxu0 0
  %816 = vmatprep.subr.bf16.mxu0 0
  %817 = vmatpush1.bf16.msra.mxu0 0
  %818 = vmatprep.subr.bf16.mxu0 0
  %819 = vmatpush1.bf16.msra.mxu0 0
  %820 = vmatprep.mubr.bf16.mxu0 0
  %821 = vmatmul.mubr.bf16.gmra.mrb[0].mxu0 %v19
  %v822 = vpop.f32.mrb[0].mxu0
  %v823 = vadd.f32 0.0, %v822
  %v824 = vpop.f32.mrb[0].mxu0
  %v825 = vadd.f32 0.0, %v824
  %v826 = vpop.f32.mrb[0].mxu0
  %v827 = vpop.f32.mrb[0].mxu0
  %828 = vdwg.mxu0
  %829 = vmatprep.subr.bf16.mxu0 %v535
  %830 = vmatpush1.bf16.msra.mxu0 %v534
  %831 = vmatprep.subr.bf16.mxu0 %v551
  %832 = vmatpush1.bf16.msra.mxu0 %v550
  %833 = vmatprep.subr.bf16.mxu0 %v567
  %834 = vmatpush1.bf16.msra.mxu0 %v566
  %835 = vmatprep.subr.bf16.mxu0 %v583
  %836 = vmatpush1.bf16.msra.mxu0 %v582
  %837 = vmatprep.subr.bf16.mxu0 %v599
  %838 = vmatpush1.bf16.msra.mxu0 %v598
  %839 = vmatprep.subr.bf16.mxu0 %v615
  %840 = vmatpush1.bf16.msra.mxu0 %v614
  %841 = vmatprep.subr.bf16.mxu0 %v631
  %842 = vmatpush1.bf16.msra.mxu0 %v630
  %843 = vmatprep.subr.bf16.mxu0 %v647
  %844 = vmatpush1.bf16.msra.mxu0 %v646
  %845 = vmatprep.subr.bf16.mxu0 0
  %846 = vmatpush1.bf16.msra.mxu0 0
  %847 = vmatprep.subr.bf16.mxu0 0
  %848 = vmatpush1.bf16.msra.mxu0 0
  %849 = vmatprep.subr.bf16.mxu0 0
  %850 = vmatpush1.bf16.msra.mxu0 0
  %851 = vmatprep.subr.bf16.mxu0 0
  %852 = vmatpush1.bf16.msra.mxu0 0
  %853 = vmatprep.subr.bf16.mxu0 0
  %854 = vmatpush1.bf16.msra.mxu0 0
  %855 = vmatprep.subr.bf16.mxu0 0
  %856 = vmatpush1.bf16.msra.mxu0 0
  %857 = vmatprep.subr.bf16.mxu0 0
  %858 = vmatpush1.bf16.msra.mxu0 0
  %859 = vmatprep.subr.bf16.mxu0 0
  %860 = vmatpush1.bf16.msra.mxu0 0
  %861 = vmatprep.mubr.bf16.mxu0 0
  %862 = vmatmul.mubr.bf16.gmra.mrb[0].mxu0 %v19
  %v863 = vpop.f32.mrb[0].mxu0
  %v864 = vadd.f32 0.0, %v863
  %v865 = vpop.f32.mrb[0].mxu0
  %v866 = vadd.f32 0.0, %v865
  %v867 = vpop.f32.mrb[0].mxu0
  %v868 = vpop.f32.mrb[0].mxu0
  %869 = vdwg.mxu0
  %870 = vmatprep.subr.bf16.mxu0 %v537
  %871 = vmatpush1.bf16.msra.mxu0 %v536
  %872 = vmatprep.subr.bf16.mxu0 %v553
  %873 = vmatpush1.bf16.msra.mxu0 %v552
  %874 = vmatprep.subr.bf16.mxu0 %v569
  %875 = vmatpush1.bf16.msra.mxu0 %v568
  %876 = vmatprep.subr.bf16.mxu0 %v585
  %877 = vmatpush1.bf16.msra.mxu0 %v584
  %878 = vmatprep.subr.bf16.mxu0 %v601
  %879 = vmatpush1.bf16.msra.mxu0 %v600
  %880 = vmatprep.subr.bf16.mxu0 %v617
  %881 = vmatpush1.bf16.msra.mxu0 %v616
  %882 = vmatprep.subr.bf16.mxu0 %v633
  %883 = vmatpush1.bf16.msra.mxu0 %v632
  %884 = vmatprep.subr.bf16.mxu0 %v649
  %885 = vmatpush1.bf16.msra.mxu0 %v648
  %886 = vmatprep.subr.bf16.mxu0 0
  %887 = vmatpush1.bf16.msra.mxu0 0
  %888 = vmatprep.subr.bf16.mxu0 0
  %889 = vmatpush1.bf16.msra.mxu0 0
  %890 = vmatprep.subr.bf16.mxu0 0
  %891 = vmatpush1.bf16.msra.mxu0 0
  %892 = vmatprep.subr.bf16.mxu0 0
  %893 = vmatpush1.bf16.msra.mxu0 0
  %894 = vmatprep.subr.bf16.mxu0 0
  %895 = vmatpush1.bf16.msra.mxu0 0
  %896 = vmatprep.subr.bf16.mxu0 0
  %897 = vmatpush1.bf16.msra.mxu0 0
  %898 = vmatprep.subr.bf16.mxu0 0
  %899 = vmatpush1.bf16.msra.mxu0 0
  %900 = vmatprep.subr.bf16.mxu0 0
  %901 = vmatpush1.bf16.msra.mxu0 0
  %902 = vmatprep.mubr.bf16.mxu0 0
  %903 = vmatmul.mubr.bf16.gmra.mrb[0].mxu0 %v19
  %v904 = vpop.f32.mrb[0].mxu0
  %v905 = vadd.f32 0.0, %v904
  %v906 = vpop.f32.mrb[0].mxu0
  %v907 = vadd.f32 0.0, %v906
  %v908 = vpop.f32.mrb[0].mxu0
  %v909 = vpop.f32.mrb[0].mxu0
  %910 = vdwg.mxu0
  %911 = vmatprep.subr.bf16.mxu0 %v539
  %912 = vmatpush1.bf16.msra.mxu0 %v538
  %913 = vmatprep.subr.bf16.mxu0 %v555
  %914 = vmatpush1.bf16.msra.mxu0 %v554
  %915 = vmatprep.subr.bf16.mxu0 %v571
  %916 = vmatpush1.bf16.msra.mxu0 %v570
  %917 = vmatprep.subr.bf16.mxu0 %v587
  %918 = vmatpush1.bf16.msra.mxu0 %v586
  %919 = vmatprep.subr.bf16.mxu0 %v603
  %920 = vmatpush1.bf16.msra.mxu0 %v602
  %921 = vmatprep.subr.bf16.mxu0 %v619
  %922 = vmatpush1.bf16.msra.mxu0 %v618
  %923 = vmatprep.subr.bf16.mxu0 %v635
  %924 = vmatpush1.bf16.msra.mxu0 %v634
  %925 = vmatprep.subr.bf16.mxu0 %v651
  %926 = vmatpush1.bf16.msra.mxu0 %v650
  %927 = vmatprep.subr.bf16.mxu0 0
  %928 = vmatpush1.bf16.msra.mxu0 0
  %929 = vmatprep.subr.bf16.mxu0 0
  %930 = vmatpush1.bf16.msra.mxu0 0
  %931 = vmatprep.subr.bf16.mxu0 0
  %932 = vmatpush1.bf16.msra.mxu0 0
  %933 = vmatprep.subr.bf16.mxu0 0
  %934 = vmatpush1.bf16.msra.mxu0 0
  %935 = vmatprep.subr.bf16.mxu0 0
  %936 = vmatpush1.bf16.msra.mxu0 0
  %937 = vmatprep.subr.bf16.mxu0 0
  %938 = vmatpush1.bf16.msra.mxu0 0
  %939 = vmatprep.subr.bf16.mxu0 0
  %940 = vmatpush1.bf16.msra.mxu0 0
  %941 = vmatprep.subr.bf16.mxu0 0
  %942 = vmatpush1.bf16.msra.mxu0 0
  %943 = vmatprep.mubr.bf16.mxu0 0
  %944 = vmatmul.mubr.bf16.gmra.mrb[0].mxu0 %v19
  %v945 = vpop.f32.mrb[0].mxu0
  %v946 = vadd.f32 0.0, %v945
  %v947 = vpop.f32.mrb[0].mxu0
  %v948 = vadd.f32 0.0, %v947
  %v949 = vpop.f32.mrb[0].mxu0
  %v950 = vpop.f32.mrb[0].mxu0
  %951 = vdwg.mxu0
  %952 = vmatprep.subr.bf16.mxu0 %v541
  %953 = vmatpush1.bf16.msra.mxu0 %v540
  %954 = vmatprep.subr.bf16.mxu0 %v557
  %955 = vmatpush1.bf16.msra.mxu0 %v556
  %956 = vmatprep.subr.bf16.mxu0 %v573
  %957 = vmatpush1.bf16.msra.mxu0 %v572
  %958 = vmatprep.subr.bf16.mxu0 %v589
  %959 = vmatpush1.bf16.msra.mxu0 %v588
  %960 = vmatprep.subr.bf16.mxu0 %v605
  %961 = vmatpush1.bf16.msra.mxu0 %v604
  %962 = vmatprep.subr.bf16.mxu0 %v621
  %963 = vmatpush1.bf16.msra.mxu0 %v620
  %964 = vmatprep.subr.bf16.mxu0 %v637
  %965 = vmatpush1.bf16.msra.mxu0 %v636
  %966 = vmatprep.subr.bf16.mxu0 %v653
  %967 = vmatpush1.bf16.msra.mxu0 %v652
  %968 = vmatprep.subr.bf16.mxu0 0
  %969 = vmatpush1.bf16.msra.mxu0 0
  %970 = vmatprep.subr.bf16.mxu0 0
  %971 = vmatpush1.bf16.msra.mxu0 0
  %972 = vmatprep.subr.bf16.mxu0 0
  %973 = vmatpush1.bf16.msra.mxu0 0
  %974 = vmatprep.subr.bf16.mxu0 0
  %975 = vmatpush1.bf16.msra.mxu0 0
  %976 = vmatprep.subr.bf16.mxu0 0
  %977 = vmatpush1.bf16.msra.mxu0 0
  %978 = vmatprep.subr.bf16.mxu0 0
  %979 = vmatpush1.bf16.msra.mxu0 0
  %980 = vmatprep.subr.bf16.mxu0 0
  %981 = vmatpush1.bf16.msra.mxu0 0
  %982 = vmatprep.subr.bf16.mxu0 0
  %983 = vmatpush1.bf16.msra.mxu0 0
  %984 = vmatprep.mubr.bf16.mxu0 0
  %985 = vmatmul.mubr.bf16.gmra.mrb[0].mxu0 %v19
  %v986 = vpop.f32.mrb[0].mxu0
  %v987 = vadd.f32 0.0, %v986
  %v988 = vpop.f32.mrb[0].mxu0
  %v989 = vadd.f32 0.0, %v988
  %v990 = vpop.f32.mrb[0].mxu0
  %v991 = vpop.f32.mrb[0].mxu0
  %992 = vdwg.mxu0
  %993 = vmatprep.subr.bf16.mxu0 %v543
  %994 = vmatpush1.bf16.msra.mxu0 %v542
  %995 = vmatprep.subr.bf16.mxu0 %v559
  %996 = vmatpush1.bf16.msra.mxu0 %v558
  %997 = vmatprep.subr.bf16.mxu0 %v575
  %998 = vmatpush1.bf16.msra.mxu0 %v574
  %999 = vmatprep.subr.bf16.mxu0 %v591
  %1000 = vmatpush1.bf16.msra.mxu0 %v590
  %1001 = vmatprep.subr.bf16.mxu0 %v607
  %1002 = vmatpush1.bf16.msra.mxu0 %v606
  %1003 = vmatprep.subr.bf16.mxu0 %v623
  %1004 = vmatpush1.bf16.msra.mxu0 %v622
  %1005 = vmatprep.subr.bf16.mxu0 %v639
  %1006 = vmatpush1.bf16.msra.mxu0 %v638
  %1007 = vmatprep.subr.bf16.mxu0 %v655
  %1008 = vmatpush1.bf16.msra.mxu0 %v654
  %1009 = vmatprep.subr.bf16.mxu0 0
  %1010 = vmatpush1.bf16.msra.mxu0 0
  %1011 = vmatprep.subr.bf16.mxu0 0
  %1012 = vmatpush1.bf16.msra.mxu0 0
  %1013 = vmatprep.subr.bf16.mxu0 0
  %1014 = vmatpush1.bf16.msra.mxu0 0
  %1015 = vmatprep.subr.bf16.mxu0 0
  %1016 = vmatpush1.bf16.msra.mxu0 0
  %1017 = vmatprep.subr.bf16.mxu0 0
  %1018 = vmatpush1.bf16.msra.mxu0 0
  %1019 = vmatprep.subr.bf16.mxu0 0
  %1020 = vmatpush1.bf16.msra.mxu0 0
  %1021 = vmatprep.subr.bf16.mxu0 0
  %1022 = vmatpush1.bf16.msra.mxu0 0
  %1023 = vmatprep.subr.bf16.mxu0 0
  %1024 = vmatpush1.bf16.msra.mxu0 0
  %1025 = vmatprep.mubr.bf16.mxu0 0
  %1026 = vmatmul.mubr.bf16.gmra.mrb[0].mxu0 %v19
  %v1027 = vpop.f32.mrb[0].mxu0
  %v1028 = vadd.f32 0.0, %v1027
  %v1029 = vpop.f32.mrb[0].mxu0
  %v1030 = vadd.f32 0.0, %v1029
  %v1031 = vpop.f32.mrb[0].mxu0
  %v1032 = vpop.f32.mrb[0].mxu0
  %1033 = vdwg.mxu0
  %1034 = vmatprep.subr.bf16.mxu0 %v545
  %1035 = vmatpush1.bf16.msra.mxu0 %v544
  %1036 = vmatprep.subr.bf16.mxu0 %v561
  %1037 = vmatpush1.bf16.msra.mxu0 %v560
  %1038 = vmatprep.subr.bf16.mxu0 %v577
  %1039 = vmatpush1.bf16.msra.mxu0 %v576
  %1040 = vmatprep.subr.bf16.mxu0 %v593
  %1041 = vmatpush1.bf16.msra.mxu0 %v592
  %1042 = vmatprep.subr.bf16.mxu0 %v609
  %1043 = vmatpush1.bf16.msra.mxu0 %v608
  %1044 = vmatprep.subr.bf16.mxu0 %v625
  %1045 = vmatpush1.bf16.msra.mxu0 %v624
  %1046 = vmatprep.subr.bf16.mxu0 %v641
  %1047 = vmatpush1.bf16.msra.mxu0 %v640
  %1048 = vmatprep.subr.bf16.mxu0 %v657
  %1049 = vmatpush1.bf16.msra.mxu0 %v656
  %1050 = vmatprep.subr.bf16.mxu0 0
  %1051 = vmatpush1.bf16.msra.mxu0 0
  %1052 = vmatprep.subr.bf16.mxu0 0
  %1053 = vmatpush1.bf16.msra.mxu0 0
  %1054 = vmatprep.subr.bf16.mxu0 0
  %1055 = vmatpush1.bf16.msra.mxu0 0
  %1056 = vmatprep.subr.bf16.mxu0 0
  %1057 = vmatpush1.bf16.msra.mxu0 0
  %1058 = vmatprep.subr.bf16.mxu0 0
  %1059 = vmatpush1.bf16.msra.mxu0 0
  %1060 = vmatprep.subr.bf16.mxu0 0
  %1061 = vmatpush1.bf16.msra.mxu0 0
  %1062 = vmatprep.subr.bf16.mxu0 0
  %1063 = vmatpush1.bf16.msra.mxu0 0
  %1064 = vmatprep.subr.bf16.mxu0 0
  %1065 = vmatpush1.bf16.msra.mxu0 0
  %1066 = vmatprep.mubr.bf16.mxu0 0
  %1067 = vmatmul.mubr.bf16.gmra.mrb[0].mxu0 %v19
  %v1068 = vpop.f32.mrb[0].mxu0
  %v1069 = vadd.f32 0.0, %v1068
  %v1070 = vpop.f32.mrb[0].mxu0
  %v1071 = vadd.f32 0.0, %v1070
  %v1072 = vpop.f32.mrb[0].mxu0
  %v1073 = vpop.f32.mrb[0].mxu0
  %1074 = vdwg.mxu0
  %1075 = vmatprep.subr.bf16.mxu0 %v547
  %1076 = vmatpush1.bf16.msra.mxu0 %v546
  %1077 = vmatprep.subr.bf16.mxu0 %v563
  %1078 = vmatpush1.bf16.msra.mxu0 %v562
  %1079 = vmatprep.subr.bf16.mxu0 %v579
  %1080 = vmatpush1.bf16.msra.mxu0 %v578
  %1081 = vmatprep.subr.bf16.mxu0 %v595
  %1082 = vmatpush1.bf16.msra.mxu0 %v594
  %1083 = vmatprep.subr.bf16.mxu0 %v611
  %1084 = vmatpush1.bf16.msra.mxu0 %v610
  %1085 = vmatprep.subr.bf16.mxu0 %v627
  %1086 = vmatpush1.bf16.msra.mxu0 %v626
  %1087 = vmatprep.subr.bf16.mxu0 %v643
  %1088 = vmatpush1.bf16.msra.mxu0 %v642
  %1089 = vmatprep.subr.bf16.mxu0 %v659
  %1090 = vmatpush1.bf16.msra.mxu0 %v658
  %1091 = vmatprep.subr.bf16.mxu0 0
  %1092 = vmatpush1.bf16.msra.mxu0 0
  %1093 = vmatprep.subr.bf16.mxu0 0
  %1094 = vmatpush1.bf16.msra.mxu0 0
  %1095 = vmatprep.subr.bf16.mxu0 0
  %1096 = vmatpush1.bf16.msra.mxu0 0
  %1097 = vmatprep.subr.bf16.mxu0 0
  %1098 = vmatpush1.bf16.msra.mxu0 0
  %1099 = vmatprep.subr.bf16.mxu0 0
  %1100 = vmatpush1.bf16.msra.mxu0 0
  %1101 = vmatprep.subr.bf16.mxu0 0
  %1102 = vmatpush1.bf16.msra.mxu0 0
  %1103 = vmatprep.subr.bf16.mxu0 0
  %1104 = vmatpush1.bf16.msra.mxu0 0
  %1105 = vmatprep.subr.bf16.mxu0 0
  %1106 = vmatpush1.bf16.msra.mxu0 0
  %1107 = vmatprep.mubr.bf16.mxu0 0
  %1108 = vmatmul.mubr.bf16.gmra.mrb[0].mxu0 %v19
  %v1109 = vpop.f32.mrb[0].mxu0
  %v1110 = vadd.f32 0.0, %v1109
  %v1111 = vpop.f32.mrb[0].mxu0
  %v1112 = vadd.f32 0.0, %v1111
  %v1113 = vpop.f32.mrb[0].mxu0
  %v1114 = vpop.f32.mrb[0].mxu0
  %1115 = vdwg.mxu0
  %1116 = vst [vmem:[%s4] sm:$0xff] %v823
  %1117 = vst [vmem:[%s4 + $0x8] sm:$0xff] %v825
  %1118 = vst [vmem:[%s4 + $0x10] sm:$0xff] %v864
  %1119 = vst [vmem:[%s4 + $0x18] sm:$0xff] %v866
  %1120 = vst [vmem:[%s4 + $0x20] sm:$0xff] %v905
  %1121 = vst [vmem:[%s4 + $0x28] sm:$0xff] %v907
  %1122 = vst [vmem:[%s4 + $0x30] sm:$0xff] %v946
  %1123 = vst [vmem:[%s4 + $0x38] sm:$0xff] %v948
  %1124 = vst [vmem:[%s4 + $0x40] sm:$0xff] %v987
  %1125 = vst [vmem:[%s4 + $0x48] sm:$0xff] %v989
  %1126 = vst [vmem:[%s4 + $0x50] sm:$0xff] %v1028
  %1127 = vst [vmem:[%s4 + $0x58] sm:$0xff] %v1030
  %1128 = vst [vmem:[%s4 + $0x60] sm:$0xff] %v1069
  %1129 = vst [vmem:[%s4 + $0x68] sm:$0xff] %v1071
  %1130 = vst [vmem:[%s4 + $0x70] sm:$0xff] %v1110
  %1131 = vst [vmem:[%s4 + $0x78] sm:$0xff] %v1112
  // Predicated region
  $region18: #{forward.6} parent=0 // pred_check
    _
  $region19: #{forward.6} parent=0 // pred_check_branch
    %1133 = sbr.rel (0) target = $region21
  $region20: #{forward.6} parent=0 // pred_region
    _
  $region21: #{forward.6} parent=0 // pred_fallthru
    _
  // Predicated region
  $region22: #{forward.6} parent=0 // pred_check
    _
  $region23: #{forward.6} parent=0 // pred_check_branch
    %1135 = sbr.rel (0) target = $region25
  $region24: #{forward.6} parent=0 // pred_region
    _
  $region25: #{forward.6} parent=0 // pred_fallthru
    _

// kernel: forward.7
$region0: #{forward.7}
  #allocation0 [shape = 'u32[]', space=smem, size = 0x4, offset = 0x4, fixed_abs, tag = 'smem constant byte address 0x4 - core index']
  #allocation1 [shape = 'u32[144,128]{1,0:T(1,128)}', space=vmem, size = 0x12000, scoped, tag = 'internal scratch']
  %s0 = inlined_call_operand.vmem [shape: f32[32,128], index: 0, kind: input, shape index: {}]
  %s1 = inlined_call_operand.vmem [shape: f32[1,128], index: 1, kind: input, shape index: {}]
  %s2 = inlined_call_operand.vmem [shape: f32[1,128], index: 2, kind: input, shape index: {}]
  %s3 = inlined_call_operand.vmem [shape: bf16[128,1024], index: 3, kind: input, shape index: {}]
  %s4 = inlined_call_operand.vmem [shape: f32[32,1024], index: 4, kind: output, shape index: {}]
  %s5 = sld [smem:[#allocation0]]
  $region26: #{forward.7} parent=0
    _
  %s7 = ssub.s32 1, %s5
  %s8 = scalar_select 0, %s7, %s5
  // Predicated region
  $region2: #{forward.7} parent=0 // pred_check
    _
  $region3: #{forward.7} parent=0 // pred_check_branch
    %10 = sbr.rel (0) target = $region5
  $region4: #{forward.7} parent=0 // pred_region
    _
  $region5: #{forward.7} parent=0 // pred_fallthru
    _
  // Predicated region
  $region6: #{forward.7} parent=0 // pred_check
    _
  $region7: #{forward.7} parent=0 // pred_check_branch
    %12 = sbr.rel (0) target = $region9
  $region8: #{forward.7} parent=0 // pred_region
    _
  $region9: #{forward.7} parent=0 // pred_fallthru
    _
  // Predicated region
  $region10: #{forward.7} parent=0 // pred_check
    _
  $region11: #{forward.7} parent=0 // pred_check_branch
    %14 = sbr.rel (0) target = $region13
  $region12: #{forward.7} parent=0 // pred_region
    _
  $region13: #{forward.7} parent=0 // pred_fallthru
    _
  // Predicated region
  $region14: #{forward.7} parent=0 // pred_check
    _
  $region15: #{forward.7} parent=0 // pred_check_branch
    %16 = sbr.rel (0) target = $region17
  $region16: #{forward.7} parent=0 // pred_region
    _
  $region17: #{forward.7} parent=0 // pred_fallthru
    _
  %v18 = vld [vmem:[%s0] sm:$0xff]
  %v19 = vld [vmem:[%s0 + $0x8] sm:$0xff]
  %v20 = vld [vmem:[%s0 + $0x10] sm:$0xff]
  %v21 = vld [vmem:[%s0 + $0x18] sm:$0xff]
  %v22 = vld [vmem:[%s1] sm:$0x1]
  %v24 = vlaneseq
  %v25 = vshrl.u32 %v24, 7
  %v26 = vsub.s32 0, %v25
  %v27 = vrot.slane %v22, %v26
  %v29 = vmul.f32 %v18, %v27
  %v30 = vmul.f32 %v19, %v27
  %v31 = vmul.f32 %v20, %v27
  %v32 = vmul.f32 %v21, %v27
  %v33 = vld [vmem:[%s2] sm:$0x1]
  %v35 = vlaneseq
  %v36 = vshrl.u32 %v35, 7
  %v37 = vsub.s32 0, %v36
  %v38 = vrot.slane %v33, %v37
  %v40 = vadd.f32 %v29, %v38
  %v41 = vadd.f32 %v30, %v38
  %v42 = vadd.f32 %v31, %v38
  %v43 = vadd.f32 %v32, %v38
  %v44 = vmax.f32 %v40, 0.0
  %v45 = vmax.f32 %v41, 0.0
  %v46 = vmax.f32 %v42, 0.0
  %v47 = vmax.f32 %v43, 0.0
  %v48 = vpack.c.bf16 %v45, %v44
  %v49 = vpack.c.bf16 %v47, %v46
  %v50 = vld [vmem:[%s3] sm:$0xff]
  %v51 = vld [vmem:[%s3 + $0x8] sm:$0xff]
  %v52 = vld [vmem:[%s3 + $0x10] sm:$0xff]
  %v53 = vld [vmem:[%s3 + $0x18] sm:$0xff]
  %v54 = vld [vmem:[%s3 + $0x20] sm:$0xff]
  %v55 = vld [vmem:[%s3 + $0x28] sm:$0xff]
  %v56 = vld [vmem:[%s3 + $0x30] sm:$0xff]
  %v57 = vld [vmem:[%s3 + $0x38] sm:$0xff]
  %v58 = vld [vmem:[%s3 + $0x40] sm:$0xff]
  %v59 = vld [vmem:[%s3 + $0x48] sm:$0xff]
  %v60 = vld [vmem:[%s3 + $0x50] sm:$0xff]
  %v61 = vld [vmem:[%s3 + $0x58] sm:$0xff]
  %v62 = vld [vmem:[%s3 + $0x60] sm:$0xff]
  %v63 = vld [vmem:[%s3 + $0x68] sm:$0xff]
  %v64 = vld [vmem:[%s3 + $0x70] sm:$0xff]
  %v65 = vld [vmem:[%s3 + $0x78] sm:$0xff]
  %v66 = vld [vmem:[%s3 + $0x80] sm:$0xff]
  %v67 = vld [vmem:[%s3 + $0x88] sm:$0xff]
  %v68 = vld [vmem:[%s3 + $0x90] sm:$0xff]
  %v69 = vld [vmem:[%s3 + $0x98] sm:$0xff]
  %v70 = vld [vmem:[%s3 + $0xa0] sm:$0xff]
  %v71 = vld [vmem:[%s3 + $0xa8] sm:$0xff]
  %v72 = vld [vmem:[%s3 + $0xb0] sm:$0xff]
  %v73 = vld [vmem:[%s3 + $0xb8] sm:$0xff]
  %v74 = vld [vmem:[%s3 + $0xc0] sm:$0xff]
  %v75 = vld [vmem:[%s3 + $0xc8] sm:$0xff]
  %v76 = vld [vmem:[%s3 + $0xd0] sm:$0xff]
  %v77 = vld [vmem:[%s3 + $0xd8] sm:$0xff]
  %v78 = vld [vmem:[%s3 + $0xe0] sm:$0xff]
  %v79 = vld [vmem:[%s3 + $0xe8] sm:$0xff]
  %v80 = vld [vmem:[%s3 + $0xf0] sm:$0xff]
  %v81 = vld [vmem:[%s3 + $0xf8] sm:$0xff]
  %v82 = vld [vmem:[%s3 + $0x100] sm:$0xff]
  %v83 = vld [vmem:[%s3 + $0x108] sm:$0xff]
  %v84 = vld [vmem:[%s3 + $0x110] sm:$0xff]
  %v85 = vld [vmem:[%s3 + $0x118] sm:$0xff]
  %v86 = vld [vmem:[%s3 + $0x120] sm:$0xff]
  %v87 = vld [vmem:[%s3 + $0x128] sm:$0xff]
  %v88 = vld [vmem:[%s3 + $0x130] sm:$0xff]
  %v89 = vld [vmem:[%s3 + $0x138] sm:$0xff]
  %v90 = vld [vmem:[%s3 + $0x140] sm:$0xff]
  %v91 = vld [vmem:[%s3 + $0x148] sm:$0xff]
  %v92 = vld [vmem:[%s3 + $0x150] sm:$0xff]
  %v93 = vld [vmem:[%s3 + $0x158] sm:$0xff]
  %v94 = vld [vmem:[%s3 + $0x160] sm:$0xff]
  %v95 = vld [vmem:[%s3 + $0x168] sm:$0xff]
  %v96 = vld [vmem:[%s3 + $0x170] sm:$0xff]
  %v97 = vld [vmem:[%s3 + $0x178] sm:$0xff]
  %v98 = vld [vmem:[%s3 + $0x180] sm:$0xff]
  %v99 = vld [vmem:[%s3 + $0x188] sm:$0xff]
  %v100 = vld [vmem:[%s3 + $0x190] sm:$0xff]
  %v101 = vld [vmem:[%s3 + $0x198] sm:$0xff]
  %v102 = vld [vmem:[%s3 + $0x1a0] sm:$0xff]
  %v103 = vld [vmem:[%s3 + $0x1a8] sm:$0xff]
  %v104 = vld [vmem:[%s3 + $0x1b0] sm:$0xff]
  %v105 = vld [vmem:[%s3 + $0x1b8] sm:$0xff]
  %v106 = vld [vmem:[%s3 + $0x1c0] sm:$0xff]
  %v107 = vld [vmem:[%s3 + $0x1c8] sm:$0xff]
  %v108 = vld [vmem:[%s3 + $0x1d0] sm:$0xff]
  %v109 = vld [vmem:[%s3 + $0x1d8] sm:$0xff]
  %v110 = vld [vmem:[%s3 + $0x1e0] sm:$0xff]
  %v111 = vld [vmem:[%s3 + $0x1e8] sm:$0xff]
  %v112 = vld [vmem:[%s3 + $0x1f0] sm:$0xff]
  %v113 = vld [vmem:[%s3 + $0x1f8] sm:$0xff]
  %v178 = vunpack.c.l.b16 %v50
  %v179 = vunpack.c.h.b16 %v50
  %v180 = vunpack.c.l.b16 %v51
  %v181 = vunpack.c.h.b16 %v51
  %v182 = vunpack.c.l.b16 %v52
  %v183 = vunpack.c.h.b16 %v52
  %v184 = vunpack.c.l.b16 %v53
  %v185 = vunpack.c.h.b16 %v53
  %v186 = vunpack.c.l.b16 %v54
  %v187 = vunpack.c.h.b16 %v54
  %v188 = vunpack.c.l.b16 %v55
  %v189 = vunpack.c.h.b16 %v55
  %v190 = vunpack.c.l.b16 %v56
  %v191 = vunpack.c.h.b16 %v56
  %v192 = vunpack.c.l.b16 %v57
  %v193 = vunpack.c.h.b16 %v57
  %v194 = vunpack.c.l.b16 %v58
  %v195 = vunpack.c.h.b16 %v58
  %v196 = vunpack.c.l.b16 %v59
  %v197 = vunpack.c.h.b16 %v59
  %v198 = vunpack.c.l.b16 %v60
  %v199 = vunpack.c.h.b16 %v60
  %v200 = vunpack.c.l.b16 %v61
  %v201 = vunpack.c.h.b16 %v61
  %v202 = vunpack.c.l.b16 %v62
  %v203 = vunpack.c.h.b16 %v62
  %v204 = vunpack.c.l.b16 %v63
  %v205 = vunpack.c.h.b16 %v63
  %v206 = vunpack.c.l.b16 %v64
  %v207 = vunpack.c.h.b16 %v64
  %v208 = vunpack.c.l.b16 %v65
  %v209 = vunpack.c.h.b16 %v65
  %v210 = vunpack.c.l.b16 %v66
  %v211 = vunpack.c.h.b16 %v66
  %v212 = vunpack.c.l.b16 %v67
  %v213 = vunpack.c.h.b16 %v67
  %v214 = vunpack.c.l.b16 %v68
  %v215 = vunpack.c.h.b16 %v68
  %v216 = vunpack.c.l.b16 %v69
  %v217 = vunpack.c.h.b16 %v69
  %v218 = vunpack.c.l.b16 %v70
  %v219 = vunpack.c.h.b16 %v70
  %v220 = vunpack.c.l.b16 %v71
  %v221 = vunpack.c.h.b16 %v71
  %v222 = vunpack.c.l.b16 %v72
  %v223 = vunpack.c.h.b16 %v72
  %v224 = vunpack.c.l.b16 %v73
  %v225 = vunpack.c.h.b16 %v73
  %v226 = vunpack.c.l.b16 %v74
  %v227 = vunpack.c.h.b16 %v74
  %v228 = vunpack.c.l.b16 %v75
  %v229 = vunpack.c.h.b16 %v75
  %v230 = vunpack.c.l.b16 %v76
  %v231 = vunpack.c.h.b16 %v76
  %v232 = vunpack.c.l.b16 %v77
  %v233 = vunpack.c.h.b16 %v77
  %v234 = vunpack.c.l.b16 %v78
  %v235 = vunpack.c.h.b16 %v78
  %v236 = vunpack.c.l.b16 %v79
  %v237 = vunpack.c.h.b16 %v79
  %v238 = vunpack.c.l.b16 %v80
  %v239 = vunpack.c.h.b16 %v80
  %v240 = vunpack.c.l.b16 %v81
  %v241 = vunpack.c.h.b16 %v81
  %v242 = vunpack.c.l.b16 %v82
  %v243 = vunpack.c.h.b16 %v82
  %v244 = vunpack.c.l.b16 %v83
  %v245 = vunpack.c.h.b16 %v83
  %v246 = vunpack.c.l.b16 %v84
  %v247 = vunpack.c.h.b16 %v84
  %v248 = vunpack.c.l.b16 %v85
  %v249 = vunpack.c.h.b16 %v85
  %v250 = vunpack.c.l.b16 %v86
  %v251 = vunpack.c.h.b16 %v86
  %v252 = vunpack.c.l.b16 %v87
  %v253 = vunpack.c.h.b16 %v87
  %v254 = vunpack.c.l.b16 %v88
  %v255 = vunpack.c.h.b16 %v88
  %v256 = vunpack.c.l.b16 %v89
  %v257 = vunpack.c.h.b16 %v89
  %v258 = vunpack.c.l.b16 %v90
  %v259 = vunpack.c.h.b16 %v90
  %v260 = vunpack.c.l.b16 %v91
  %v261 = vunpack.c.h.b16 %v91
  %v262 = vunpack.c.l.b16 %v92
  %v263 = vunpack.c.h.b16 %v92
  %v264 = vunpack.c.l.b16 %v93
  %v265 = vunpack.c.h.b16 %v93
  %v266 = vunpack.c.l.b16 %v94
  %v267 = vunpack.c.h.b16 %v94
  %v268 = vunpack.c.l.b16 %v95
  %v269 = vunpack.c.h.b16 %v95
  %v270 = vunpack.c.l.b16 %v96
  %v271 = vunpack.c.h.b16 %v96
  %v272 = vunpack.c.l.b16 %v97
  %v273 = vunpack.c.h.b16 %v97
  %v274 = vunpack.c.l.b16 %v98
  %v275 = vunpack.c.h.b16 %v98
  %v276 = vunpack.c.l.b16 %v99
  %v277 = vunpack.c.h.b16 %v99
  %v278 = vunpack.c.l.b16 %v100
  %v279 = vunpack.c.h.b16 %v100
  %v280 = vunpack.c.l.b16 %v101
  %v281 = vunpack.c.h.b16 %v101
  %v282 = vunpack.c.l.b16 %v102
  %v283 = vunpack.c.h.b16 %v102
  %v284 = vunpack.c.l.b16 %v103
  %v285 = vunpack.c.h.b16 %v103
  %v286 = vunpack.c.l.b16 %v104
  %v287 = vunpack.c.h.b16 %v104
  %v288 = vunpack.c.l.b16 %v105
  %v289 = vunpack.c.h.b16 %v105
  %v290 = vunpack.c.l.b16 %v106
  %v291 = vunpack.c.h.b16 %v106
  %v292 = vunpack.c.l.b16 %v107
  %v293 = vunpack.c.h.b16 %v107
  %v294 = vunpack.c.l.b16 %v108
  %v295 = vunpack.c.h.b16 %v108
  %v296 = vunpack.c.l.b16 %v109
  %v297 = vunpack.c.h.b16 %v109
  %v298 = vunpack.c.l.b16 %v110
  %v299 = vunpack.c.h.b16 %v110
  %v300 = vunpack.c.l.b16 %v111
  %v301 = vunpack.c.h.b16 %v111
  %v302 = vunpack.c.l.b16 %v112
  %v303 = vunpack.c.h.b16 %v112
  %v304 = vunpack.c.l.b16 %v113
  %v305 = vunpack.c.h.b16 %v113
  %v306 = vpack.c.b16 %v186, %v178
  %v307 = vpack.c.b16 %v187, %v179
  %v308 = vpack.c.b16 %v188, %v180
  %v309 = vpack.c.b16 %v189, %v181
  %v310 = vpack.c.b16 %v190, %v182
  %v311 = vpack.c.b16 %v191, %v183
  %v312 = vpack.c.b16 %v192, %v184
  %v313 = vpack.c.b16 %v193, %v185
  %v314 = vpack.c.b16 %v202, %v194
  %v315 = vpack.c.b16 %v203, %v195
  %v316 = vpack.c.b16 %v204, %v196
  %v317 = vpack.c.b16 %v205, %v197
  %v318 = vpack.c.b16 %v206, %v198
  %v319 = vpack.c.b16 %v207, %v199
  %v320 = vpack.c.b16 %v208, %v200
  %v321 = vpack.c.b16 %v209, %v201
  %v322 = vpack.c.b16 %v218, %v210
  %v323 = vpack.c.b16 %v219, %v211
  %v324 = vpack.c.b16 %v220, %v212
  %v325 = vpack.c.b16 %v221, %v213
  %v326 = vpack.c.b16 %v222, %v214
  %v327 = vpack.c.b16 %v223, %v215
  %v328 = vpack.c.b16 %v224, %v216
  %v329 = vpack.c.b16 %v225, %v217
  %v330 = vpack.c.b16 %v234, %v226
  %v331 = vpack.c.b16 %v235, %v227
  %v332 = vpack.c.b16 %v236, %v228
  %v333 = vpack.c.b16 %v237, %v229
  %v334 = vpack.c.b16 %v238, %v230
  %v335 = vpack.c.b16 %v239, %v231
  %v336 = vpack.c.b16 %v240, %v232
  %v337 = vpack.c.b16 %v241, %v233
  %v338 = vpack.c.b16 %v250, %v242
  %v339 = vpack.c.b16 %v251, %v243
  %v340 = vpack.c.b16 %v252, %v244
  %v341 = vpack.c.b16 %v253, %v245
  %v342 = vpack.c.b16 %v254, %v246
  %v343 = vpack.c.b16 %v255, %v247
  %v344 = vpack.c.b16 %v256, %v248
  %v345 = vpack.c.b16 %v257, %v249
  %v346 = vpack.c.b16 %v266, %v258
  %v347 = vpack.c.b16 %v267, %v259
  %v348 = vpack.c.b16 %v268, %v260
  %v349 = vpack.c.b16 %v269, %v261
  %v350 = vpack.c.b16 %v270, %v262
  %v351 = vpack.c.b16 %v271, %v263
  %v352 = vpack.c.b16 %v272, %v264
  %v353 = vpack.c.b16 %v273, %v265
  %v354 = vpack.c.b16 %v282, %v274
  %v355 = vpack.c.b16 %v283, %v275
  %v356 = vpack.c.b16 %v284, %v276
  %v357 = vpack.c.b16 %v285, %v277
  %v358 = vpack.c.b16 %v286, %v278
  %v359 = vpack.c.b16 %v287, %v279
  %v360 = vpack.c.b16 %v288, %v280
  %v361 = vpack.c.b16 %v289, %v281
  %v362 = vpack.c.b16 %v298, %v290
  %v363 = vpack.c.b16 %v299, %v291
  %v364 = vpack.c.b16 %v300, %v292
  %v365 = vpack.c.b16 %v301, %v293
  %v366 = vpack.c.b16 %v302, %v294
  %v367 = vpack.c.b16 %v303, %v295
  %v368 = vpack.c.b16 %v304, %v296
  %v369 = vpack.c.b16 %v305, %v297
  %434 = vmatprep.subr.bf16.mxu0 %v307
  %435 = vmatpush1.bf16.msra.mxu0 %v306
  %436 = vmatprep.subr.bf16.mxu0 %v315
  %437 = vmatpush1.bf16.msra.mxu0 %v314
  %438 = vmatprep.subr.bf16.mxu0 %v323
  %439 = vmatpush1.bf16.msra.mxu0 %v322
  %440 = vmatprep.subr.bf16.mxu0 %v331
  %441 = vmatpush1.bf16.msra.mxu0 %v330
  %442 = vmatprep.subr.bf16.mxu0 %v339
  %443 = vmatpush1.bf16.msra.mxu0 %v338
  %444 = vmatprep.subr.bf16.mxu0 %v347
  %445 = vmatpush1.bf16.msra.mxu0 %v346
  %446 = vmatprep.subr.bf16.mxu0 %v355
  %447 = vmatpush1.bf16.msra.mxu0 %v354
  %448 = vmatprep.subr.bf16.mxu0 %v363
  %449 = vmatpush1.bf16.msra.mxu0 %v362
  %450 = vmatprep.subr.bf16.mxu0 0
  %451 = vmatpush1.bf16.msra.mxu0 0
  %452 = vmatprep.subr.bf16.mxu0 0
  %453 = vmatpush1.bf16.msra.mxu0 0
  %454 = vmatprep.subr.bf16.mxu0 0
  %455 = vmatpush1.bf16.msra.mxu0 0
  %456 = vmatprep.subr.bf16.mxu0 0
  %457 = vmatpush1.bf16.msra.mxu0 0
  %458 = vmatprep.subr.bf16.mxu0 0
  %459 = vmatpush1.bf16.msra.mxu0 0
  %460 = vmatprep.subr.bf16.mxu0 0
  %461 = vmatpush1.bf16.msra.mxu0 0
  %462 = vmatprep.subr.bf16.mxu0 0
  %463 = vmatpush1.bf16.msra.mxu0 0
  %464 = vmatprep.subr.bf16.mxu0 0
  %465 = vmatpush1.bf16.msra.mxu0 0
  %466 = vmatprep.mubr.bf16.mxu0 0
  %467 = vmatmul.mubr.bf16.gmra.mrb[0].mxu0 %v48
  %v468 = vpop.f32.mrb[0].mxu0
  %v469 = vadd.f32 0.0, %v468
  %v470 = vpop.f32.mrb[0].mxu0
  %v471 = vadd.f32 0.0, %v470
  %v472 = vpop.f32.mrb[0].mxu0
  %v473 = vadd.f32 0.0, %v472
  %v474 = vpop.f32.mrb[0].mxu0
  %v475 = vadd.f32 0.0, %v474
  %476 = vmatprep.mubr.bf16.mxu0 0
  %477 = vmatmul.mubr.bf16.gmra.mrb[0].mxu0 %v49
  %v478 = vpop.f32.mrb[0].mxu0
  %v479 = vadd.f32 0.0, %v478
  %v480 = vpop.f32.mrb[0].mxu0
  %v481 = vadd.f32 0.0, %v480
  %v482 = vpop.f32.mrb[0].mxu0
  %v483 = vadd.f32 0.0, %v482
  %v484 = vpop.f32.mrb[0].mxu0
  %v485 = vadd.f32 0.0, %v484
  %486 = vdwg.mxu0
  %487 = vmatprep.subr.bf16.mxu0 %v309
  %488 = vmatpush1.bf16.msra.mxu0 %v308
  %489 = vmatprep.subr.bf16.mxu0 %v317
  %490 = vmatpush1.bf16.msra.mxu0 %v316
  %491 = vmatprep.subr.bf16.mxu0 %v325
  %492 = vmatpush1.bf16.msra.mxu0 %v324
  %493 = vmatprep.subr.bf16.mxu0 %v333
  %494 = vmatpush1.bf16.msra.mxu0 %v332
  %495 = vmatprep.subr.bf16.mxu0 %v341
  %496 = vmatpush1.bf16.msra.mxu0 %v340
  %497 = vmatprep.subr.bf16.mxu0 %v349
  %498 = vmatpush1.bf16.msra.mxu0 %v348
  %499 = vmatprep.subr.bf16.mxu0 %v357
  %500 = vmatpush1.bf16.msra.mxu0 %v356
  %501 = vmatprep.subr.bf16.mxu0 %v365
  %502 = vmatpush1.bf16.msra.mxu0 %v364
  %503 = vmatprep.subr.bf16.mxu0 0
  %504 = vmatpush1.bf16.msra.mxu0 0
  %505 = vmatprep.subr.bf16.mxu0 0
  %506 = vmatpush1.bf16.msra.mxu0 0
  %507 = vmatprep.subr.bf16.mxu0 0
  %508 = vmatpush1.bf16.msra.mxu0 0
  %509 = vmatprep.subr.bf16.mxu0 0
  %510 = vmatpush1.bf16.msra.mxu0 0
  %511 = vmatprep.subr.bf16.mxu0 0
  %512 = vmatpush1.bf16.msra.mxu0 0
  %513 = vmatprep.subr.bf16.mxu0 0
  %514 = vmatpush1.bf16.msra.mxu0 0
  %515 = vmatprep.subr.bf16.mxu0 0
  %516 = vmatpush1.bf16.msra.mxu0 0
  %517 = vmatprep.subr.bf16.mxu0 0
  %518 = vmatpush1.bf16.msra.mxu0 0
  %519 = vmatprep.mubr.bf16.mxu0 0
  %520 = vmatmul.mubr.bf16.gmra.mrb[0].mxu0 %v48
  %v521 = vpop.f32.mrb[0].mxu0
  %v522 = vadd.f32 0.0, %v521
  %v523 = vpop.f32.mrb[0].mxu0
  %v524 = vadd.f32 0.0, %v523
  %v525 = vpop.f32.mrb[0].mxu0
  %v526 = vadd.f32 0.0, %v525
  %v527 = vpop.f32.mrb[0].mxu0
  %v528 = vadd.f32 0.0, %v527
  %529 = vmatprep.mubr.bf16.mxu0 0
  %530 = vmatmul.mubr.bf16.gmra.mrb[0].mxu0 %v49
  %v531 = vpop.f32.mrb[0].mxu0
  %v532 = vadd.f32 0.0, %v531
  %v533 = vpop.f32.mrb[0].mxu0
  %v534 = vadd.f32 0.0, %v533
  %v535 = vpop.f32.mrb[0].mxu0
  %v536 = vadd.f32 0.0, %v535
  %v537 = vpop.f32.mrb[0].mxu0
  %v538 = vadd.f32 0.0, %v537
  %539 = vdwg.mxu0
  %540 = vmatprep.subr.bf16.mxu0 %v311
  %541 = vmatpush1.bf16.msra.mxu0 %v310
  %542 = vmatprep.subr.bf16.mxu0 %v319
  %543 = vmatpush1.bf16.msra.mxu0 %v318
  %544 = vmatprep.subr.bf16.mxu0 %v327
  %545 = vmatpush1.bf16.msra.mxu0 %v326
  %546 = vmatprep.subr.bf16.mxu0 %v335
  %547 = vmatpush1.bf16.msra.mxu0 %v334
  %548 = vmatprep.subr.bf16.mxu0 %v343
  %549 = vmatpush1.bf16.msra.mxu0 %v342
  %550 = vmatprep.subr.bf16.mxu0 %v351
  %551 = vmatpush1.bf16.msra.mxu0 %v350
  %552 = vmatprep.subr.bf16.mxu0 %v359
  %553 = vmatpush1.bf16.msra.mxu0 %v358
  %554 = vmatprep.subr.bf16.mxu0 %v367
  %555 = vmatpush1.bf16.msra.mxu0 %v366
  %556 = vmatprep.subr.bf16.mxu0 0
  %557 = vmatpush1.bf16.msra.mxu0 0
  %558 = vmatprep.subr.bf16.mxu0 0
  %559 = vmatpush1.bf16.msra.mxu0 0
  %560 = vmatprep.subr.bf16.mxu0 0
  %561 = vmatpush1.bf16.msra.mxu0 0
  %562 = vmatprep.subr.bf16.mxu0 0
  %563 = vmatpush1.bf16.msra.mxu0 0
  %564 = vmatprep.subr.bf16.mxu0 0
  %565 = vmatpush1.bf16.msra.mxu0 0
  %566 = vmatprep.subr.bf16.mxu0 0
  %567 = vmatpush1.bf16.msra.mxu0 0
  %568 = vmatprep.subr.bf16.mxu0 0
  %569 = vmatpush1.bf16.msra.mxu0 0
  %570 = vmatprep.subr.bf16.mxu0 0
  %571 = vmatpush1.bf16.msra.mxu0 0
  %572 = vmatprep.mubr.bf16.mxu0 0
  %573 = vmatmul.mubr.bf16.gmra.mrb[0].mxu0 %v48
  %v574 = vpop.f32.mrb[0].mxu0
  %v575 = vadd.f32 0.0, %v574
  %v576 = vpop.f32.mrb[0].mxu0
  %v577 = vadd.f32 0.0, %v576
  %v578 = vpop.f32.mrb[0].mxu0
  %v579 = vadd.f32 0.0, %v578
  %v580 = vpop.f32.mrb[0].mxu0
  %v581 = vadd.f32 0.0, %v580
  %582 = vmatprep.mubr.bf16.mxu0 0
  %583 = vmatmul.mubr.bf16.gmra.mrb[0].mxu0 %v49
  %v584 = vpop.f32.mrb[0].mxu0
  %v585 = vadd.f32 0.0, %v584
  %v586 = vpop.f32.mrb[0].mxu0
  %v587 = vadd.f32 0.0, %v586
  %v588 = vpop.f32.mrb[0].mxu0
  %v589 = vadd.f32 0.0, %v588
  %v590 = vpop.f32.mrb[0].mxu0
  %v591 = vadd.f32 0.0, %v590
  %592 = vdwg.mxu0
  %593 = vmatprep.subr.bf16.mxu0 %v313
  %594 = vmatpush1.bf16.msra.mxu0 %v312
  %595 = vmatprep.subr.bf16.mxu0 %v321
  %596 = vmatpush1.bf16.msra.mxu0 %v320
  %597 = vmatprep.subr.bf16.mxu0 %v329
  %598 = vmatpush1.bf16.msra.mxu0 %v328
  %599 = vmatprep.subr.bf16.mxu0 %v337
  %600 = vmatpush1.bf16.msra.mxu0 %v336
  %601 = vmatprep.subr.bf16.mxu0 %v345
  %602 = vmatpush1.bf16.msra.mxu0 %v344
  %603 = vmatprep.subr.bf16.mxu0 %v353
  %604 = vmatpush1.bf16.msra.mxu0 %v352
  %605 = vmatprep.subr.bf16.mxu0 %v361
  %606 = vmatpush1.bf16.msra.mxu0 %v360
  %607 = vmatprep.subr.bf16.mxu0 %v369
  %608 = vmatpush1.bf16.msra.mxu0 %v368
  %609 = vmatprep.subr.bf16.mxu0 0
  %610 = vmatpush1.bf16.msra.mxu0 0
  %611 = vmatprep.subr.bf16.mxu0 0
  %612 = vmatpush1.bf16.msra.mxu0 0
  %613 = vmatprep.subr.bf16.mxu0 0
  %614 = vmatpush1.bf16.msra.mxu0 0
  %615 = vmatprep.subr.bf16.mxu0 0
  %616 = vmatpush1.bf16.msra.mxu0 0
  %617 = vmatprep.subr.bf16.mxu0 0
  %618 = vmatpush1.bf16.msra.mxu0 0
  %619 = vmatprep.subr.bf16.mxu0 0
  %620 = vmatpush1.bf16.msra.mxu0 0
  %621 = vmatprep.subr.bf16.mxu0 0
  %622 = vmatpush1.bf16.msra.mxu0 0
  %623 = vmatprep.subr.bf16.mxu0 0
  %624 = vmatpush1.bf16.msra.mxu0 0
  %625 = vmatprep.mubr.bf16.mxu0 0
  %626 = vmatmul.mubr.bf16.gmra.mrb[0].mxu0 %v48
  %v627 = vpop.f32.mrb[0].mxu0
  %v628 = vadd.f32 0.0, %v627
  %v629 = vpop.f32.mrb[0].mxu0
  %v630 = vadd.f32 0.0, %v629
  %v631 = vpop.f32.mrb[0].mxu0
  %v632 = vadd.f32 0.0, %v631
  %v633 = vpop.f32.mrb[0].mxu0
  %v634 = vadd.f32 0.0, %v633
  %635 = vmatprep.mubr.bf16.mxu0 0
  %636 = vmatmul.mubr.bf16.gmra.mrb[0].mxu0 %v49
  %v637 = vpop.f32.mrb[0].mxu0
  %v638 = vadd.f32 0.0, %v637
  %v639 = vpop.f32.mrb[0].mxu0
  %v640 = vadd.f32 0.0, %v639
  %v641 = vpop.f32.mrb[0].mxu0
  %v642 = vadd.f32 0.0, %v641
  %v643 = vpop.f32.mrb[0].mxu0
  %v644 = vadd.f32 0.0, %v643
  %645 = vdwg.mxu0
  %646 = vst [vmem:[%s4] sm:$0xff] %v469
  %647 = vst [vmem:[%s4 + $0x8] sm:$0xff] %v471
  %648 = vst [vmem:[%s4 + $0x10] sm:$0xff] %v522
  %649 = vst [vmem:[%s4 + $0x18] sm:$0xff] %v524
  %650 = vst [vmem:[%s4 + $0x20] sm:$0xff] %v575
  %651 = vst [vmem:[%s4 + $0x28] sm:$0xff] %v577
  %652 = vst [vmem:[%s4 + $0x30] sm:$0xff] %v628
  %653 = vst [vmem:[%s4 + $0x38] sm:$0xff] %v630
  %654 = vst [vmem:[%s4 + $0x40] sm:$0xff] %v473
  %655 = vst [vmem:[%s4 + $0x48] sm:$0xff] %v475
  %656 = vst [vmem:[%s4 + $0x50] sm:$0xff] %v526
  %657 = vst [vmem:[%s4 + $0x58] sm:$0xff] %v528
  %658 = vst [vmem:[%s4 + $0x60] sm:$0xff] %v579
  %659 = vst [vmem:[%s4 + $0x68] sm:$0xff] %v581
  %660 = vst [vmem:[%s4 + $0x70] sm:$0xff] %v632
  %661 = vst [vmem:[%s4 + $0x78] sm:$0xff] %v634
  %662 = vst [vmem:[%s4 + $0x80] sm:$0xff] %v479
  %663 = vst [vmem:[%s4 + $0x88] sm:$0xff] %v481
  %664 = vst [vmem:[%s4 + $0x90] sm:$0xff] %v532
  %665 = vst [vmem:[%s4 + $0x98] sm:$0xff] %v534
  %666 = vst [vmem:[%s4 + $0xa0] sm:$0xff] %v585
  %667 = vst [vmem:[%s4 + $0xa8] sm:$0xff] %v587
  %668 = vst [vmem:[%s4 + $0xb0] sm:$0xff] %v638
  %669 = vst [vmem:[%s4 + $0xb8] sm:$0xff] %v640
  %670 = vst [vmem:[%s4 + $0xc0] sm:$0xff] %v483
  %671 = vst [vmem:[%s4 + $0xc8] sm:$0xff] %v485
  %672 = vst [vmem:[%s4 + $0xd0] sm:$0xff] %v536
  %673 = vst [vmem:[%s4 + $0xd8] sm:$0xff] %v538
  %674 = vst [vmem:[%s4 + $0xe0] sm:$0xff] %v589
  %675 = vst [vmem:[%s4 + $0xe8] sm:$0xff] %v591
  %676 = vst [vmem:[%s4 + $0xf0] sm:$0xff] %v642
  %677 = vst [vmem:[%s4 + $0xf8] sm:$0xff] %v644
  // Predicated region
  $region18: #{forward.7} parent=0 // pred_check
    _
  $region19: #{forward.7} parent=0 // pred_check_branch
    %679 = sbr.rel (0) target = $region21
  $region20: #{forward.7} parent=0 // pred_region
    _
  $region21: #{forward.7} parent=0 // pred_fallthru
    _
  // Predicated region
  $region22: #{forward.7} parent=0 // pred_check
    _
  $region23: #{forward.7} parent=0 // pred_check_branch
    %681 = sbr.rel (0) target = $region25
  $region24: #{forward.7} parent=0 // pred_region
    _
  $region25: #{forward.7} parent=0 // pred_fallthru
    _

// kernel: forward.8
$region0: #{forward.8}
  #allocation0 [shape = 'u32[]', space=smem, size = 0x4, offset = 0x4, fixed_abs, tag = 'smem constant byte address 0x4 - core index']
  #allocation1 [shape = 'u32[144,128]{1,0:T(1,128)}', space=vmem, size = 0x12000, scoped, tag = 'internal scratch']
  %s0 = inlined_call_operand.vmem [shape: f32[128,64], index: 0, kind: input, shape index: {}]
  %s1 = inlined_call_operand.vmem [shape: f32[1,64], index: 1, kind: input, shape index: {}]
  %s2 = inlined_call_operand.vmem [shape: f32[1,64], index: 2, kind: input, shape index: {}]
  %s3 = inlined_call_operand.vmem [shape: bf16[64,512], index: 3, kind: input, shape index: {}]
  %s4 = inlined_call_operand.vmem [shape: f32[128,512], index: 4, kind: output, shape index: {}]
  %s5 = sld [smem:[#allocation0]]
  $region26: #{forward.8} parent=0
    _
  %s7 = ssub.s32 1, %s5
  %s8 = scalar_select 0, %s7, %s5
  // Predicated region
  $region2: #{forward.8} parent=0 // pred_check
    _
  $region3: #{forward.8} parent=0 // pred_check_branch
    %10 = sbr.rel (0) target = $region5
  $region4: #{forward.8} parent=0 // pred_region
    _
  $region5: #{forward.8} parent=0 // pred_fallthru
    _
  // Predicated region
  $region6: #{forward.8} parent=0 // pred_check
    _
  $region7: #{forward.8} parent=0 // pred_check_branch
    %12 = sbr.rel (0) target = $region9
  $region8: #{forward.8} parent=0 // pred_region
    _
  $region9: #{forward.8} parent=0 // pred_fallthru
    _
  // Predicated region
  $region10: #{forward.8} parent=0 // pred_check
    _
  $region11: #{forward.8} parent=0 // pred_check_branch
    %14 = sbr.rel (0) target = $region13
  $region12: #{forward.8} parent=0 // pred_region
    _
  $region13: #{forward.8} parent=0 // pred_fallthru
    _
  // Predicated region
  $region14: #{forward.8} parent=0 // pred_check
    _
  $region15: #{forward.8} parent=0 // pred_check_branch
    %16 = sbr.rel (0) target = $region17
  $region16: #{forward.8} parent=0 // pred_region
    _
  $region17: #{forward.8} parent=0 // pred_fallthru
    _
  %v18 = vld [vmem:[%s0] sm:$0xff]
  %v19 = vld [vmem:[%s0 + $0x8] sm:$0xff]
  %v20 = vld [vmem:[%s0 + $0x10] sm:$0xff]
  %v21 = vld [vmem:[%s0 + $0x18] sm:$0xff]
  %v22 = vld [vmem:[%s0 + $0x20] sm:$0xff]
  %v23 = vld [vmem:[%s0 + $0x28] sm:$0xff]
  %v24 = vld [vmem:[%s0 + $0x30] sm:$0xff]
  %v25 = vld [vmem:[%s0 + $0x38] sm:$0xff]
  %v26 = vld [vmem:[%s0 + $0x40] sm:$0xff]
  %v27 = vld [vmem:[%s0 + $0x48] sm:$0xff]
  %v28 = vld [vmem:[%s0 + $0x50] sm:$0xff]
  %v29 = vld [vmem:[%s0 + $0x58] sm:$0xff]
  %v30 = vld [vmem:[%s0 + $0x60] sm:$0xff]
  %v31 = vld [vmem:[%s0 + $0x68] sm:$0xff]
  %v32 = vld [vmem:[%s0 + $0x70] sm:$0xff]
  %v33 = vld [vmem:[%s0 + $0x78] sm:$0xff]
  %v34 = vld [vmem:[%s1] sm:$0x1]
  %v36 = vlaneseq
  %v37 = vshrl.u32 %v36, 7
  %v38 = vsub.s32 0, %v37
  %v39 = vrot.slane %v34, %v38
  %v41 = vmul.f32 %v18, %v39
  %v42 = vmul.f32 %v19, %v39
  %v43 = vmul.f32 %v20, %v39
  %v44 = vmul.f32 %v21, %v39
  %v45 = vmul.f32 %v22, %v39
  %v46 = vmul.f32 %v23, %v39
  %v47 = vmul.f32 %v24, %v39
  %v48 = vmul.f32 %v25, %v39
  %v49 = vmul.f32 %v26, %v39
  %v50 = vmul.f32 %v27, %v39
  %v51 = vmul.f32 %v28, %v39
  %v52 = vmul.f32 %v29, %v39
  %v53 = vmul.f32 %v30, %v39
  %v54 = vmul.f32 %v31, %v39
  %v55 = vmul.f32 %v32, %v39
  %v56 = vmul.f32 %v33, %v39
  %v57 = vld [vmem:[%s2] sm:$0x1]
  %v59 = vlaneseq
  %v60 = vshrl.u32 %v59, 7
  %v61 = vsub.s32 0, %v60
  %v62 = vrot.slane %v57, %v61
  %v64 = vadd.f32 %v41, %v62
  %v65 = vadd.f32 %v42, %v62
  %v66 = vadd.f32 %v43, %v62
  %v67 = vadd.f32 %v44, %v62
  %v68 = vadd.f32 %v45, %v62
  %v69 = vadd.f32 %v46, %v62
  %v70 = vadd.f32 %v47, %v62
  %v71 = vadd.f32 %v48, %v62
  %v72 = vadd.f32 %v49, %v62
  %v73 = vadd.f32 %v50, %v62
  %v74 = vadd.f32 %v51, %v62
  %v75 = vadd.f32 %v52, %v62
  %v76 = vadd.f32 %v53, %v62
  %v77 = vadd.f32 %v54, %v62
  %v78 = vadd.f32 %v55, %v62
  %v79 = vadd.f32 %v56, %v62
  %v80 = vmax.f32 %v64, 0.0
  %v81 = vmax.f32 %v65, 0.0
  %v82 = vmax.f32 %v66, 0.0
  %v83 = vmax.f32 %v67, 0.0
  %v84 = vmax.f32 %v68, 0.0
  %v85 = vmax.f32 %v69, 0.0
  %v86 = vmax.f32 %v70, 0.0
  %v87 = vmax.f32 %v71, 0.0
  %v88 = vmax.f32 %v72, 0.0
  %v89 = vmax.f32 %v73, 0.0
  %v90 = vmax.f32 %v74, 0.0
  %v91 = vmax.f32 %v75, 0.0
  %v92 = vmax.f32 %v76, 0.0
  %v93 = vmax.f32 %v77, 0.0
  %v94 = vmax.f32 %v78, 0.0
  %v95 = vmax.f32 %v79, 0.0
  %v96 = vpack.c.bf16 %v81, %v80
  %v97 = vpack.c.bf16 %v83, %v82
  %v98 = vpack.c.bf16 %v85, %v84
  %v99 = vpack.c.bf16 %v87, %v86
  %v100 = vpack.c.bf16 %v89, %v88
  %v101 = vpack.c.bf16 %v91, %v90
  %v102 = vpack.c.bf16 %v93, %v92
  %v103 = vpack.c.bf16 %v95, %v94
  %v104 = vld [vmem:[%s3] sm:$0xff]
  %v105 = vld [vmem:[%s3 + $0x8] sm:$0xff]
  %v106 = vld [vmem:[%s3 + $0x10] sm:$0xff]
  %v107 = vld [vmem:[%s3 + $0x18] sm:$0xff]
  %v108 = vld [vmem:[%s3 + $0x20] sm:$0xff]
  %v109 = vld [vmem:[%s3 + $0x28] sm:$0xff]
  %v110 = vld [vmem:[%s3 + $0x30] sm:$0xff]
  %v111 = vld [vmem:[%s3 + $0x38] sm:$0xff]
  %v112 = vld [vmem:[%s3 + $0x40] sm:$0xff]
  %v113 = vld [vmem:[%s3 + $0x48] sm:$0xff]
  %v114 = vld [vmem:[%s3 + $0x50] sm:$0xff]
  %v115 = vld [vmem:[%s3 + $0x58] sm:$0xff]
  %v116 = vld [vmem:[%s3 + $0x60] sm:$0xff]
  %v117 = vld [vmem:[%s3 + $0x68] sm:$0xff]
  %v118 = vld [vmem:[%s3 + $0x70] sm:$0xff]
  %v119 = vld [vmem:[%s3 + $0x78] sm:$0xff]
  %v136 = vunpack.c.l.b16 %v104
  %v137 = vunpack.c.h.b16 %v104
  %v138 = vunpack.c.l.b16 %v105
  %v139 = vunpack.c.h.b16 %v105
  %v140 = vunpack.c.l.b16 %v106
  %v141 = vunpack.c.h.b16 %v106
  %v142 = vunpack.c.l.b16 %v107
  %v143 = vunpack.c.h.b16 %v107
  %v144 = vunpack.c.l.b16 %v108
  %v145 = vunpack.c.h.b16 %v108
  %v146 = vunpack.c.l.b16 %v109
  %v147 = vunpack.c.h.b16 %v109
  %v148 = vunpack.c.l.b16 %v110
  %v149 = vunpack.c.h.b16 %v110
  %v150 = vunpack.c.l.b16 %v111
  %v151 = vunpack.c.h.b16 %v111
  %v152 = vunpack.c.l.b16 %v112
  %v153 = vunpack.c.h.b16 %v112
  %v154 = vunpack.c.l.b16 %v113
  %v155 = vunpack.c.h.b16 %v113
  %v156 = vunpack.c.l.b16 %v114
  %v157 = vunpack.c.h.b16 %v114
  %v158 = vunpack.c.l.b16 %v115
  %v159 = vunpack.c.h.b16 %v115
  %v160 = vunpack.c.l.b16 %v116
  %v161 = vunpack.c.h.b16 %v116
  %v162 = vunpack.c.l.b16 %v117
  %v163 = vunpack.c.h.b16 %v117
  %v164 = vunpack.c.l.b16 %v118
  %v165 = vunpack.c.h.b16 %v118
  %v166 = vunpack.c.l.b16 %v119
  %v167 = vunpack.c.h.b16 %v119
  %v168 = vpack.c.b16 %v140, %v136
  %v169 = vpack.c.b16 %v141, %v137
  %v170 = vpack.c.b16 %v142, %v138
  %v171 = vpack.c.b16 %v143, %v139
  %v172 = vpack.c.b16 %v148, %v144
  %v173 = vpack.c.b16 %v149, %v145
  %v174 = vpack.c.b16 %v150, %v146
  %v175 = vpack.c.b16 %v151, %v147
  %v176 = vpack.c.b16 %v156, %v152
  %v177 = vpack.c.b16 %v157, %v153
  %v178 = vpack.c.b16 %v158, %v154
  %v179 = vpack.c.b16 %v159, %v155
  %v180 = vpack.c.b16 %v164, %v160
  %v181 = vpack.c.b16 %v165, %v161
  %v182 = vpack.c.b16 %v166, %v162
  %v183 = vpack.c.b16 %v167, %v163
  %vm200 = vcmask 523264
  %v202 = vsel %vm200, %v96, 0
  %v205 = vsel %vm200, %v97, 0
  %v208 = vsel %vm200, %v98, 0
  %v211 = vsel %vm200, %v99, 0
  %v214 = vsel %vm200, %v100, 0
  %v217 = vsel %vm200, %v101, 0
  %v220 = vsel %vm200, %v102, 0
  %v223 = vsel %vm200, %v103, 0
  %225 = vmatprep.subr.bf16.mxu0 %v169
  %226 = vmatpush1.bf16.msra.mxu0 %v168
  %227 = vmatprep.subr.bf16.mxu0 %v173
  %228 = vmatpush1.bf16.msra.mxu0 %v172
  %229 = vmatprep.subr.bf16.mxu0 %v177
  %230 = vmatpush1.bf16.msra.mxu0 %v176
  %231 = vmatprep.subr.bf16.mxu0 %v181
  %232 = vmatpush1.bf16.msra.mxu0 %v180
  %233 = vmatprep.subr.bf16.mxu0 0
  %234 = vmatpush1.bf16.msra.mxu0 0
  %235 = vmatprep.subr.bf16.mxu0 0
  %236 = vmatpush1.bf16.msra.mxu0 0
  %237 = vmatprep.subr.bf16.mxu0 0
  %238 = vmatpush1.bf16.msra.mxu0 0
  %239 = vmatprep.subr.bf16.mxu0 0
  %240 = vmatpush1.bf16.msra.mxu0 0
  %241 = vmatprep.subr.bf16.mxu0 0
  %242 = vmatpush1.bf16.msra.mxu0 0
  %243 = vmatprep.subr.bf16.mxu0 0
  %244 = vmatpush1.bf16.msra.mxu0 0
  %245 = vmatprep.subr.bf16.mxu0 0
  %246 = vmatpush1.bf16.msra.mxu0 0
  %247 = vmatprep.subr.bf16.mxu0 0
  %248 = vmatpush1.bf16.msra.mxu0 0
  %249 = vmatprep.subr.bf16.mxu0 0
  %250 = vmatpush1.bf16.msra.mxu0 0
  %251 = vmatprep.subr.bf16.mxu0 0
  %252 = vmatpush1.bf16.msra.mxu0 0
  %253 = vmatprep.subr.bf16.mxu0 0
  %254 = vmatpush1.bf16.msra.mxu0 0
  %255 = vmatprep.subr.bf16.mxu0 0
  %256 = vmatpush1.bf16.msra.mxu0 0
  %257 = vmatprep.mubr.bf16.mxu0 0
  %258 = vmatmul.mubr.bf16.gmra.mrb[0].mxu0 %v202
  %v259 = vpop.f32.mrb[0].mxu0
  %v260 = vadd.f32 0.0, %v259
  %v261 = vpop.f32.mrb[0].mxu0
  %v262 = vadd.f32 0.0, %v261
  %v263 = vpop.f32.mrb[0].mxu0
  %v264 = vadd.f32 0.0, %v263
  %v265 = vpop.f32.mrb[0].mxu0
  %v266 = vadd.f32 0.0, %v265
  %267 = vmatprep.mubr.bf16.mxu0 0
  %268 = vmatmul.mubr.bf16.gmra.mrb[0].mxu0 %v205
  %v269 = vpop.f32.mrb[0].mxu0
  %v270 = vadd.f32 0.0, %v269
  %v271 = vpop.f32.mrb[0].mxu0
  %v272 = vadd.f32 0.0, %v271
  %v273 = vpop.f32.mrb[0].mxu0
  %v274 = vadd.f32 0.0, %v273
  %v275 = vpop.f32.mrb[0].mxu0
  %v276 = vadd.f32 0.0, %v275
  %277 = vmatprep.mubr.bf16.mxu0 0
  %278 = vmatmul.mubr.bf16.gmra.mrb[0].mxu0 %v208
  %v279 = vpop.f32.mrb[0].mxu0
  %v280 = vadd.f32 0.0, %v279
  %v281 = vpop.f32.mrb[0].mxu0
  %v282 = vadd.f32 0.0, %v281
  %v283 = vpop.f32.mrb[0].mxu0
  %v284 = vadd.f32 0.0, %v283
  %v285 = vpop.f32.mrb[0].mxu0
  %v286 = vadd.f32 0.0, %v285
  %287 = vmatprep.mubr.bf16.mxu0 0
  %288 = vmatmul.mubr.bf16.gmra.mrb[0].mxu0 %v211
  %v289 = vpop.f32.mrb[0].mxu0
  %v290 = vadd.f32 0.0, %v289
  %v291 = vpop.f32.mrb[0].mxu0
  %v292 = vadd.f32 0.0, %v291
  %v293 = vpop.f32.mrb[0].mxu0
  %v294 = vadd.f32 0.0, %v293
  %v295 = vpop.f32.mrb[0].mxu0
  %v296 = vadd.f32 0.0, %v295
  %297 = vmatprep.mubr.bf16.mxu0 0
  %298 = vmatmul.mubr.bf16.gmra.mrb[0].mxu0 %v214
  %v299 = vpop.f32.mrb[0].mxu0
  %v300 = vadd.f32 0.0, %v299
  %v301 = vpop.f32.mrb[0].mxu0
  %v302 = vadd.f32 0.0, %v301
  %v303 = vpop.f32.mrb[0].mxu0
  %v304 = vadd.f32 0.0, %v303
  %v305 = vpop.f32.mrb[0].mxu0
  %v306 = vadd.f32 0.0, %v305
  %307 = vmatprep.mubr.bf16.mxu0 0
  %308 = vmatmul.mubr.bf16.gmra.mrb[0].mxu0 %v217
  %v309 = vpop.f32.mrb[0].mxu0
  %v310 = vadd.f32 0.0, %v309
  %v311 = vpop.f32.mrb[0].mxu0
  %v312 = vadd.f32 0.0, %v311
  %v313 = vpop.f32.mrb[0].mxu0
  %v314 = vadd.f32 0.0, %v313
  %v315 = vpop.f32.mrb[0].mxu0
  %v316 = vadd.f32 0.0, %v315
  %317 = vmatprep.mubr.bf16.mxu0 0
  %318 = vmatmul.mubr.bf16.gmra.mrb[0].mxu0 %v220
  %v319 = vpop.f32.mrb[0].mxu0
  %v320 = vadd.f32 0.0, %v319
  %v321 = vpop.f32.mrb[0].mxu0
  %v322 = vadd.f32 0.0, %v321
  %v323 = vpop.f32.mrb[0].mxu0
  %v324 = vadd.f32 0.0, %v323
  %v325 = vpop.f32.mrb[0].mxu0
  %v326 = vadd.f32 0.0, %v325
  %327 = vmatprep.mubr.bf16.mxu0 0
  %328 = vmatmul.mubr.bf16.gmra.mrb[0].mxu0 %v223
  %v329 = vpop.f32.mrb[0].mxu0
  %v330 = vadd.f32 0.0, %v329
  %v331 = vpop.f32.mrb[0].mxu0
  %v332 = vadd.f32 0.0, %v331
  %v333 = vpop.f32.mrb[0].mxu0
  %v334 = vadd.f32 0.0, %v333
  %v335 = vpop.f32.mrb[0].mxu0
  %v336 = vadd.f32 0.0, %v335
  %337 = vdwg.mxu0
  %338 = vmatprep.subr.bf16.mxu0 %v171
  %339 = vmatpush1.bf16.msra.mxu0 %v170
  %340 = vmatprep.subr.bf16.mxu0 %v175
  %341 = vmatpush1.bf16.msra.mxu0 %v174
  %342 = vmatprep.subr.bf16.mxu0 %v179
  %343 = vmatpush1.bf16.msra.mxu0 %v178
  %344 = vmatprep.subr.bf16.mxu0 %v183
  %345 = vmatpush1.bf16.msra.mxu0 %v182
  %346 = vmatprep.subr.bf16.mxu0 0
  %347 = vmatpush1.bf16.msra.mxu0 0
  %348 = vmatprep.subr.bf16.mxu0 0
  %349 = vmatpush1.bf16.msra.mxu0 0
  %350 = vmatprep.subr.bf16.mxu0 0
  %351 = vmatpush1.bf16.msra.mxu0 0
  %352 = vmatprep.subr.bf16.mxu0 0
  %353 = vmatpush1.bf16.msra.mxu0 0
  %354 = vmatprep.subr.bf16.mxu0 0
  %355 = vmatpush1.bf16.msra.mxu0 0
  %356 = vmatprep.subr.bf16.mxu0 0
  %357 = vmatpush1.bf16.msra.mxu0 0
  %358 = vmatprep.subr.bf16.mxu0 0
  %359 = vmatpush1.bf16.msra.mxu0 0
  %360 = vmatprep.subr.bf16.mxu0 0
  %361 = vmatpush1.bf16.msra.mxu0 0
  %362 = vmatprep.subr.bf16.mxu0 0
  %363 = vmatpush1.bf16.msra.mxu0 0
  %364 = vmatprep.subr.bf16.mxu0 0
  %365 = vmatpush1.bf16.msra.mxu0 0
  %366 = vmatprep.subr.bf16.mxu0 0
  %367 = vmatpush1.bf16.msra.mxu0 0
  %368 = vmatprep.subr.bf16.mxu0 0
  %369 = vmatpush1.bf16.msra.mxu0 0
  %370 = vmatprep.mubr.bf16.mxu0 0
  %371 = vmatmul.mubr.bf16.gmra.mrb[0].mxu0 %v202
  %v372 = vpop.f32.mrb[0].mxu0
  %v373 = vadd.f32 0.0, %v372
  %v374 = vpop.f32.mrb[0].mxu0
  %v375 = vadd.f32 0.0, %v374
  %v376 = vpop.f32.mrb[0].mxu0
  %v377 = vadd.f32 0.0, %v376
  %v378 = vpop.f32.mrb[0].mxu0
  %v379 = vadd.f32 0.0, %v378
  %380 = vmatprep.mubr.bf16.mxu0 0
  %381 = vmatmul.mubr.bf16.gmra.mrb[0].mxu0 %v205
  %v382 = vpop.f32.mrb[0].mxu0
  %v383 = vadd.f32 0.0, %v382
  %v384 = vpop.f32.mrb[0].mxu0
  %v385 = vadd.f32 0.0, %v384
  %v386 = vpop.f32.mrb[0].mxu0
  %v387 = vadd.f32 0.0, %v386
  %v388 = vpop.f32.mrb[0].mxu0
  %v389 = vadd.f32 0.0, %v388
  %390 = vmatprep.mubr.bf16.mxu0 0
  %391 = vmatmul.mubr.bf16.gmra.mrb[0].mxu0 %v208
  %v392 = vpop.f32.mrb[0].mxu0
  %v393 = vadd.f32 0.0, %v392
  %v394 = vpop.f32.mrb[0].mxu0
  %v395 = vadd.f32 0.0, %v394
  %v396 = vpop.f32.mrb[0].mxu0
  %v397 = vadd.f32 0.0, %v396
  %v398 = vpop.f32.mrb[0].mxu0
  %v399 = vadd.f32 0.0, %v398
  %400 = vmatprep.mubr.bf16.mxu0 0
  %401 = vmatmul.mubr.bf16.gmra.mrb[0].mxu0 %v211
  %v402 = vpop.f32.mrb[0].mxu0
  %v403 = vadd.f32 0.0, %v402
  %v404 = vpop.f32.mrb[0].mxu0
  %v405 = vadd.f32 0.0, %v404
  %v406 = vpop.f32.mrb[0].mxu0
  %v407 = vadd.f32 0.0, %v406
  %v408 = vpop.f32.mrb[0].mxu0
  %v409 = vadd.f32 0.0, %v408
  %410 = vmatprep.mubr.bf16.mxu0 0
  %411 = vmatmul.mubr.bf16.gmra.mrb[0].mxu0 %v214
  %v412 = vpop.f32.mrb[0].mxu0
  %v413 = vadd.f32 0.0, %v412
  %v414 = vpop.f32.mrb[0].mxu0
  %v415 = vadd.f32 0.0, %v414
  %v416 = vpop.f32.mrb[0].mxu0
  %v417 = vadd.f32 0.0, %v416
  %v418 = vpop.f32.mrb[0].mxu0
  %v419 = vadd.f32 0.0, %v418
  %420 = vmatprep.mubr.bf16.mxu0 0
  %421 = vmatmul.mubr.bf16.gmra.mrb[0].mxu0 %v217
  %v422 = vpop.f32.mrb[0].mxu0
  %v423 = vadd.f32 0.0, %v422
  %v424 = vpop.f32.mrb[0].mxu0
  %v425 = vadd.f32 0.0, %v424
  %v426 = vpop.f32.mrb[0].mxu0
  %v427 = vadd.f32 0.0, %v426
  %v428 = vpop.f32.mrb[0].mxu0
  %v429 = vadd.f32 0.0, %v428
  %430 = vmatprep.mubr.bf16.mxu0 0
  %431 = vmatmul.mubr.bf16.gmra.mrb[0].mxu0 %v220
  %v432 = vpop.f32.mrb[0].mxu0
  %v433 = vadd.f32 0.0, %v432
  %v434 = vpop.f32.mrb[0].mxu0
  %v435 = vadd.f32 0.0, %v434
  %v436 = vpop.f32.mrb[0].mxu0
  %v437 = vadd.f32 0.0, %v436
  %v438 = vpop.f32.mrb[0].mxu0
  %v439 = vadd.f32 0.0, %v438
  %440 = vmatprep.mubr.bf16.mxu0 0
  %441 = vmatmul.mubr.bf16.gmra.mrb[0].mxu0 %v223
  %v442 = vpop.f32.mrb[0].mxu0
  %v443 = vadd.f32 0.0, %v442
  %v444 = vpop.f32.mrb[0].mxu0
  %v445 = vadd.f32 0.0, %v444
  %v446 = vpop.f32.mrb[0].mxu0
  %v447 = vadd.f32 0.0, %v446
  %v448 = vpop.f32.mrb[0].mxu0
  %v449 = vadd.f32 0.0, %v448
  %450 = vdwg.mxu0
  %451 = vst [vmem:[%s4] sm:$0xff] %v260
  %452 = vst [vmem:[%s4 + $0x8] sm:$0xff] %v262
  %453 = vst [vmem:[%s4 + $0x10] sm:$0xff] %v373
  %454 = vst [vmem:[%s4 + $0x18] sm:$0xff] %v375
  %455 = vst [vmem:[%s4 + $0x20] sm:$0xff] %v264
  %456 = vst [vmem:[%s4 + $0x28] sm:$0xff] %v266
  %457 = vst [vmem:[%s4 + $0x30] sm:$0xff] %v377
  %458 = vst [vmem:[%s4 + $0x38] sm:$0xff] %v379
  %459 = vst [vmem:[%s4 + $0x40] sm:$0xff] %v270
  %460 = vst [vmem:[%s4 + $0x48] sm:$0xff] %v272
  %461 = vst [vmem:[%s4 + $0x50] sm:$0xff] %v383
  %462 = vst [vmem:[%s4 + $0x58] sm:$0xff] %v385
  %463 = vst [vmem:[%s4 + $0x60] sm:$0xff] %v274
  %464 = vst [vmem:[%s4 + $0x68] sm:$0xff] %v276
  %465 = vst [vmem:[%s4 + $0x70] sm:$0xff] %v387
  %466 = vst [vmem:[%s4 + $0x78] sm:$0xff] %v389
  %467 = vst [vmem:[%s4 + $0x80] sm:$0xff] %v280
  %468 = vst [vmem:[%s4 + $0x88] sm:$0xff] %v282
  %469 = vst [vmem:[%s4 + $0x90] sm:$0xff] %v393
  %470 = vst [vmem:[%s4 + $0x98] sm:$0xff] %v395
  %471 = vst [vmem:[%s4 + $0xa0] sm:$0xff] %v284
  %472 = vst [vmem:[%s4 + $0xa8] sm:$0xff] %v286
  %473 = vst [vmem:[%s4 + $0xb0] sm:$0xff] %v397
  %474 = vst [vmem:[%s4 + $0xb8] sm:$0xff] %v399
  %475 = vst [vmem:[%s4 + $0xc0] sm:$0xff] %v290
  %476 = vst [vmem:[%s4 + $0xc8] sm:$0xff] %v292
  %477 = vst [vmem:[%s4 + $0xd0] sm:$0xff] %v403
  %478 = vst [vmem:[%s4 + $0xd8] sm:$0xff] %v405
  %479 = vst [vmem:[%s4 + $0xe0] sm:$0xff] %v294
  %480 = vst [vmem:[%s4 + $0xe8] sm:$0xff] %v296
  %481 = vst [vmem:[%s4 + $0xf0] sm:$0xff] %v407
  %482 = vst [vmem:[%s4 + $0xf8] sm:$0xff] %v409
  %483 = vst [vmem:[%s4 + $0x100] sm:$0xff] %v300
  %484 = vst [vmem:[%s4 + $0x108] sm:$0xff] %v302
  %485 = vst [vmem:[%s4 + $0x110] sm:$0xff] %v413
  %486 = vst [vmem:[%s4 + $0x118] sm:$0xff] %v415
  %487 = vst [vmem:[%s4 + $0x120] sm:$0xff] %v304
  %488 = vst [vmem:[%s4 + $0x128] sm:$0xff] %v306
  %489 = vst [vmem:[%s4 + $0x130] sm:$0xff] %v417
  %490 = vst [vmem:[%s4 + $0x138] sm:$0xff] %v419
  %491 = vst [vmem:[%s4 + $0x140] sm:$0xff] %v310
  %492 = vst [vmem:[%s4 + $0x148] sm:$0xff] %v312
  %493 = vst [vmem:[%s4 + $0x150] sm:$0xff] %v423
  %494 = vst [vmem:[%s4 + $0x158] sm:$0xff] %v425
  %495 = vst [vmem:[%s4 + $0x160] sm:$0xff] %v314
  %496 = vst [vmem:[%s4 + $0x168] sm:$0xff] %v316
  %497 = vst [vmem:[%s4 + $0x170] sm:$0xff] %v427
  %498 = vst [vmem:[%s4 + $0x178] sm:$0xff] %v429
  %499 = vst [vmem:[%s4 + $0x180] sm:$0xff] %v320
  %500 = vst [vmem:[%s4 + $0x188] sm:$0xff] %v322
  %501 = vst [vmem:[%s4 + $0x190] sm:$0xff] %v433
  %502 = vst [vmem:[%s4 + $0x198] sm:$0xff] %v435
  %503 = vst [vmem:[%s4 + $0x1a0] sm:$0xff] %v324
  %504 = vst [vmem:[%s4 + $0x1a8] sm:$0xff] %v326
  %505 = vst [vmem:[%s4 + $0x1b0] sm:$0xff] %v437
  %506 = vst [vmem:[%s4 + $0x1b8] sm:$0xff] %v439
  %507 = vst [vmem:[%s4 + $0x1c0] sm:$0xff] %v330
  %508 = vst [vmem:[%s4 + $0x1c8] sm:$0xff] %v332
  %509 = vst [vmem:[%s4 + $0x1d0] sm:$0xff] %v443
  %510 = vst [vmem:[%s4 + $0x1d8] sm:$0xff] %v445
  %511 = vst [vmem:[%s4 + $0x1e0] sm:$0xff] %v334
  %512 = vst [vmem:[%s4 + $0x1e8] sm:$0xff] %v336
  %513 = vst [vmem:[%s4 + $0x1f0] sm:$0xff] %v447
  %514 = vst [vmem:[%s4 + $0x1f8] sm:$0xff] %v449
  // Predicated region
  $region18: #{forward.8} parent=0 // pred_check
    _
  $region19: #{forward.8} parent=0 // pred_check_branch
    %516 = sbr.rel (0) target = $region21
  $region20: #{forward.8} parent=0 // pred_region
    _
  $region21: #{forward.8} parent=0 // pred_fallthru
    _
  // Predicated region
  $region22: #{forward.8} parent=0 // pred_check
    _
  $region23: #{forward.8} parent=0 // pred_check_branch
    %518 = sbr.rel (0) target = $region25
  $region24: #{forward.8} parent=0 // pred_region
    _
  $region25: #{forward.8} parent=0 // pred_fallthru
    _

// kernel: forward.9
$region0: #{forward.9}
  #allocation0 [shape = 'u32[]', space=smem, size = 0x4, offset = 0x4, fixed_abs, tag = 'smem constant byte address 0x4 - core index']
  #allocation1 [shape = 'u32[144,128]{1,0:T(1,128)}', space=vmem, size = 0x12000, scoped, tag = 'internal scratch']
  %s0 = inlined_call_operand.vmem [shape: f32[512,32], index: 0, kind: input, shape index: {}]
  %s1 = inlined_call_operand.vmem [shape: f32[1,32], index: 1, kind: input, shape index: {}]
  %s2 = inlined_call_operand.vmem [shape: f32[1,32], index: 2, kind: input, shape index: {}]
  %s3 = inlined_call_operand.vmem [shape: bf16[32,512], index: 3, kind: input, shape index: {}]
  %s4 = inlined_call_operand.vmem [shape: f32[512,512], index: 4, kind: output, shape index: {}]
  %s5 = sld [smem:[#allocation0]]
  $region26: #{forward.9} parent=0
    _
  %s7 = ssub.s32 1, %s5
  %s8 = scalar_select 0, %s7, %s5
  // Predicated region
  $region2: #{forward.9} parent=0 // pred_check
    _
  $region3: #{forward.9} parent=0 // pred_check_branch
    %10 = sbr.rel (0) target = $region5
  $region4: #{forward.9} parent=0 // pred_region
    _
  $region5: #{forward.9} parent=0 // pred_fallthru
    _
  // Predicated region
  $region6: #{forward.9} parent=0 // pred_check
    _
  $region7: #{forward.9} parent=0 // pred_check_branch
    %12 = sbr.rel (0) target = $region9
  $region8: #{forward.9} parent=0 // pred_region
    _
  $region9: #{forward.9} parent=0 // pred_fallthru
    _
  // Predicated region
  $region10: #{forward.9} parent=0 // pred_check
    _
  $region11: #{forward.9} parent=0 // pred_check_branch
    %14 = sbr.rel (0) target = $region13
  $region12: #{forward.9} parent=0 // pred_region
    _
  $region13: #{forward.9} parent=0 // pred_fallthru
    _
  // Predicated region
  $region14: #{forward.9} parent=0 // pred_check
    _
  $region15: #{forward.9} parent=0 // pred_check_branch
    %16 = sbr.rel (0) target = $region17
  $region16: #{forward.9} parent=0 // pred_region
    _
  $region17: #{forward.9} parent=0 // pred_fallthru
    _
  %v18 = vld [vmem:[%s0] sm:$0xff]
  %v19 = vld [vmem:[%s0 + $0x8] sm:$0xff]
  %v20 = vld [vmem:[%s0 + $0x10] sm:$0xff]
  %v21 = vld [vmem:[%s0 + $0x18] sm:$0xff]
  %v22 = vld [vmem:[%s0 + $0x20] sm:$0xff]
  %v23 = vld [vmem:[%s0 + $0x28] sm:$0xff]
  %v24 = vld [vmem:[%s0 + $0x30] sm:$0xff]
  %v25 = vld [vmem:[%s0 + $0x38] sm:$0xff]
  %v26 = vld [vmem:[%s0 + $0x40] sm:$0xff]
  %v27 = vld [vmem:[%s0 + $0x48] sm:$0xff]
  %v28 = vld [vmem:[%s0 + $0x50] sm:$0xff]
  %v29 = vld [vmem:[%s0 + $0x58] sm:$0xff]
  %v30 = vld [vmem:[%s0 + $0x60] sm:$0xff]
  %v31 = vld [vmem:[%s0 + $0x68] sm:$0xff]
  %v32 = vld [vmem:[%s0 + $0x70] sm:$0xff]
  %v33 = vld [vmem:[%s0 + $0x78] sm:$0xff]
  %v34 = vld [vmem:[%s0 + $0x80] sm:$0xff]
  %v35 = vld [vmem:[%s0 + $0x88] sm:$0xff]
  %v36 = vld [vmem:[%s0 + $0x90] sm:$0xff]
  %v37 = vld [vmem:[%s0 + $0x98] sm:$0xff]
  %v38 = vld [vmem:[%s0 + $0xa0] sm:$0xff]
  %v39 = vld [vmem:[%s0 + $0xa8] sm:$0xff]
  %v40 = vld [vmem:[%s0 + $0xb0] sm:$0xff]
  %v41 = vld [vmem:[%s0 + $0xb8] sm:$0xff]
  %v42 = vld [vmem:[%s0 + $0xc0] sm:$0xff]
  %v43 = vld [vmem:[%s0 + $0xc8] sm:$0xff]
  %v44 = vld [vmem:[%s0 + $0xd0] sm:$0xff]
  %v45 = vld [vmem:[%s0 + $0xd8] sm:$0xff]
  %v46 = vld [vmem:[%s0 + $0xe0] sm:$0xff]
  %v47 = vld [vmem:[%s0 + $0xe8] sm:$0xff]
  %v48 = vld [vmem:[%s0 + $0xf0] sm:$0xff]
  %v49 = vld [vmem:[%s0 + $0xf8] sm:$0xff]
  %v50 = vld [vmem:[%s0 + $0x100] sm:$0xff]
  %v51 = vld [vmem:[%s0 + $0x108] sm:$0xff]
  %v52 = vld [vmem:[%s0 + $0x110] sm:$0xff]
  %v53 = vld [vmem:[%s0 + $0x118] sm:$0xff]
  %v54 = vld [vmem:[%s0 + $0x120] sm:$0xff]
  %v55 = vld [vmem:[%s0 + $0x128] sm:$0xff]
  %v56 = vld [vmem:[%s0 + $0x130] sm:$0xff]
  %v57 = vld [vmem:[%s0 + $0x138] sm:$0xff]
  %v58 = vld [vmem:[%s0 + $0x140] sm:$0xff]
  %v59 = vld [vmem:[%s0 + $0x148] sm:$0xff]
  %v60 = vld [vmem:[%s0 + $0x150] sm:$0xff]
  %v61 = vld [vmem:[%s0 + $0x158] sm:$0xff]
  %v62 = vld [vmem:[%s0 + $0x160] sm:$0xff]
  %v63 = vld [vmem:[%s0 + $0x168] sm:$0xff]
  %v64 = vld [vmem:[%s0 + $0x170] sm:$0xff]
  %v65 = vld [vmem:[%s0 + $0x178] sm:$0xff]
  %v66 = vld [vmem:[%s0 + $0x180] sm:$0xff]
  %v67 = vld [vmem:[%s0 + $0x188] sm:$0xff]
  %v68 = vld [vmem:[%s0 + $0x190] sm:$0xff]
  %v69 = vld [vmem:[%s0 + $0x198] sm:$0xff]
  %v70 = vld [vmem:[%s0 + $0x1a0] sm:$0xff]
  %v71 = vld [vmem:[%s0 + $0x1a8] sm:$0xff]
  %v72 = vld [vmem:[%s0 + $0x1b0] sm:$0xff]
  %v73 = vld [vmem:[%s0 + $0x1b8] sm:$0xff]
  %v74 = vld [vmem:[%s0 + $0x1c0] sm:$0xff]
  %v75 = vld [vmem:[%s0 + $0x1c8] sm:$0xff]
  %v76 = vld [vmem:[%s0 + $0x1d0] sm:$0xff]
  %v77 = vld [vmem:[%s0 + $0x1d8] sm:$0xff]
  %v78 = vld [vmem:[%s0 + $0x1e0] sm:$0xff]
  %v79 = vld [vmem:[%s0 + $0x1e8] sm:$0xff]
  %v80 = vld [vmem:[%s0 + $0x1f0] sm:$0xff]
  %v81 = vld [vmem:[%s0 + $0x1f8] sm:$0xff]
  %v82 = vld [vmem:[%s1] sm:$0x1]
  %v84 = vlaneseq
  %v85 = vshrl.u32 %v84, 7
  %v86 = vsub.s32 0, %v85
  %v87 = vrot.slane %v82, %v86
  %v89 = vmul.f32 %v18, %v87
  %v90 = vmul.f32 %v19, %v87
  %v91 = vmul.f32 %v20, %v87
  %v92 = vmul.f32 %v21, %v87
  %v93 = vmul.f32 %v22, %v87
  %v94 = vmul.f32 %v23, %v87
  %v95 = vmul.f32 %v24, %v87
  %v96 = vmul.f32 %v25, %v87
  %v97 = vmul.f32 %v26, %v87
  %v98 = vmul.f32 %v27, %v87
  %v99 = vmul.f32 %v28, %v87
  %v100 = vmul.f32 %v29, %v87
  %v101 = vmul.f32 %v30, %v87
  %v102 = vmul.f32 %v31, %v87
  %v103 = vmul.f32 %v32, %v87
  %v104 = vmul.f32 %v33, %v87
  %v105 = vmul.f32 %v34, %v87
  %v106 = vmul.f32 %v35, %v87
  %v107 = vmul.f32 %v36, %v87
  %v108 = vmul.f32 %v37, %v87
  %v109 = vmul.f32 %v38, %v87
  %v110 = vmul.f32 %v39, %v87
  %v111 = vmul.f32 %v40, %v87
  %v112 = vmul.f32 %v41, %v87
  %v113 = vmul.f32 %v42, %v87
  %v114 = vmul.f32 %v43, %v87
  %v115 = vmul.f32 %v44, %v87
  %v116 = vmul.f32 %v45, %v87
  %v117 = vmul.f32 %v46, %v87
  %v118 = vmul.f32 %v47, %v87
  %v119 = vmul.f32 %v48, %v87
  %v120 = vmul.f32 %v49, %v87
  %v121 = vmul.f32 %v50, %v87
  %v122 = vmul.f32 %v51, %v87
  %v123 = vmul.f32 %v52, %v87
  %v124 = vmul.f32 %v53, %v87
  %v125 = vmul.f32 %v54, %v87
  %v126 = vmul.f32 %v55, %v87
  %v127 = vmul.f32 %v56, %v87
  %v128 = vmul.f32 %v57, %v87
  %v129 = vmul.f32 %v58, %v87
  %v130 = vmul.f32 %v59, %v87
  %v131 = vmul.f32 %v60, %v87
  %v132 = vmul.f32 %v61, %v87
  %v133 = vmul.f32 %v62, %v87
  %v134 = vmul.f32 %v63, %v87
  %v135 = vmul.f32 %v64, %v87
  %v136 = vmul.f32 %v65, %v87
  %v137 = vmul.f32 %v66, %v87
  %v138 = vmul.f32 %v67, %v87
  %v139 = vmul.f32 %v68, %v87
  %v140 = vmul.f32 %v69, %v87
  %v141 = vmul.f32 %v70, %v87
  %v142 = vmul.f32 %v71, %v87
  %v143 = vmul.f32 %v72, %v87
  %v144 = vmul.f32 %v73, %v87
  %v145 = vmul.f32 %v74, %v87
  %v146 = vmul.f32 %v75, %v87
  %v147 = vmul.f32 %v76, %v87
  %v148 = vmul.f32 %v77, %v87
  %v149 = vmul.f32 %v78, %v87
  %v150 = vmul.f32 %v79, %v87
  %v151 = vmul.f32 %v80, %v87
  %v152 = vmul.f32 %v81, %v87
  %v153 = vld [vmem:[%s2] sm:$0x1]
  %v155 = vlaneseq
  %v156 = vshrl.u32 %v155, 7
  %v157 = vsub.s32 0, %v156
  %v158 = vrot.slane %v153, %v157
  %v160 = vadd.f32 %v89, %v158
  %v161 = vadd.f32 %v90, %v158
  %v162 = vadd.f32 %v91, %v158
  %v163 = vadd.f32 %v92, %v158
  %v164 = vadd.f32 %v93, %v158
  %v165 = vadd.f32 %v94, %v158
  %v166 = vadd.f32 %v95, %v158
  %v167 = vadd.f32 %v96, %v158
  %v168 = vadd.f32 %v97, %v158
  %v169 = vadd.f32 %v98, %v158
  %v170 = vadd.f32 %v99, %v158
  %v171 = vadd.f32 %v100, %v158
  %v172 = vadd.f32 %v101, %v158
  %v173 = vadd.f32 %v102, %v158
  %v174 = vadd.f32 %v103, %v158
  %v175 = vadd.f32 %v104, %v158
  %v176 = vadd.f32 %v105, %v158
  %v177 = vadd.f32 %v106, %v158
  %v178 = vadd.f32 %v107, %v158
  %v179 = vadd.f32 %v108, %v158
  %v180 = vadd.f32 %v109, %v158
  %v181 = vadd.f32 %v110, %v158
  %v182 = vadd.f32 %v111, %v158
  %v183 = vadd.f32 %v112, %v158
  %v184 = vadd.f32 %v113, %v158
  %v185 = vadd.f32 %v114, %v158
  %v186 = vadd.f32 %v115, %v158
  %v187 = vadd.f32 %v116, %v158
  %v188 = vadd.f32 %v117, %v158
  %v189 = vadd.f32 %v118, %v158
  %v190 = vadd.f32 %v119, %v158
  %v191 = vadd.f32 %v120, %v158
  %v192 = vadd.f32 %v121, %v158
  %v193 = vadd.f32 %v122, %v158
  %v194 = vadd.f32 %v123, %v158
  %v195 = vadd.f32 %v124, %v158
  %v196 = vadd.f32 %v125, %v158
  %v197 = vadd.f32 %v126, %v158
  %v198 = vadd.f32 %v127, %v158
  %v199 = vadd.f32 %v128, %v158
  %v200 = vadd.f32 %v129, %v158
  %v201 = vadd.f32 %v130, %v158
  %v202 = vadd.f32 %v131, %v158
  %v203 = vadd.f32 %v132, %v158
  %v204 = vadd.f32 %v133, %v158
  %v205 = vadd.f32 %v134, %v158
  %v206 = vadd.f32 %v135, %v158
  %v207 = vadd.f32 %v136, %v158
  %v208 = vadd.f32 %v137, %v158
  %v209 = vadd.f32 %v138, %v158
  %v210 = vadd.f32 %v139, %v158
  %v211 = vadd.f32 %v140, %v158
  %v212 = vadd.f32 %v141, %v158
  %v213 = vadd.f32 %v142, %v158
  %v214 = vadd.f32 %v143, %v158
  %v215 = vadd.f32 %v144, %v158
  %v216 = vadd.f32 %v145, %v158
  %v217 = vadd.f32 %v146, %v158
  %v218 = vadd.f32 %v147, %v158
  %v219 = vadd.f32 %v148, %v158
  %v220 = vadd.f32 %v149, %v158
  %v221 = vadd.f32 %v150, %v158
  %v222 = vadd.f32 %v151, %v158
  %v223 = vadd.f32 %v152, %v158
  %v224 = vmax.f32 %v160, 0.0
  %v225 = vmax.f32 %v161, 0.0
  %v226 = vmax.f32 %v162, 0.0
  %v227 = vmax.f32 %v163, 0.0
  %v228 = vmax.f32 %v164, 0.0
  %v229 = vmax.f32 %v165, 0.0
  %v230 = vmax.f32 %v166, 0.0
  %v231 = vmax.f32 %v167, 0.0
  %v232 = vmax.f32 %v168, 0.0
  %v233 = vmax.f32 %v169, 0.0
  %v234 = vmax.f32 %v170, 0.0
  %v235 = vmax.f32 %v171, 0.0
  %v236 = vmax.f32 %v172, 0.0
  %v237 = vmax.f32 %v173, 0.0
  %v238 = vmax.f32 %v174, 0.0
  %v239 = vmax.f32 %v175, 0.0
  %v240 = vmax.f32 %v176, 0.0
  %v241 = vmax.f32 %v177, 0.0
  %v242 = vmax.f32 %v178, 0.0
  %v243 = vmax.f32 %v179, 0.0
  %v244 = vmax.f32 %v180, 0.0
  %v245 = vmax.f32 %v181, 0.0
  %v246 = vmax.f32 %v182, 0.0
  %v247 = vmax.f32 %v183, 0.0
  %v248 = vmax.f32 %v184, 0.0
  %v249 = vmax.f32 %v185, 0.0
  %v250 = vmax.f32 %v186, 0.0
  %v251 = vmax.f32 %v187, 0.0
  %v252 = vmax.f32 %v188, 0.0
  %v253 = vmax.f32 %v189, 0.0
  %v254 = vmax.f32 %v190, 0.0
  %v255 = vmax.f32 %v191, 0.0
  %v256 = vmax.f32 %v192, 0.0
  %v257 = vmax.f32 %v193, 0.0
  %v258 = vmax.f32 %v194, 0.0
  %v259 = vmax.f32 %v195, 0.0
  %v260 = vmax.f32 %v196, 0.0
  %v261 = vmax.f32 %v197, 0.0
  %v262 = vmax.f32 %v198, 0.0
  %v263 = vmax.f32 %v199, 0.0
  %v264 = vmax.f32 %v200, 0.0
  %v265 = vmax.f32 %v201, 0.0
  %v266 = vmax.f32 %v202, 0.0
  %v267 = vmax.f32 %v203, 0.0
  %v268 = vmax.f32 %v204, 0.0
  %v269 = vmax.f32 %v205, 0.0
  %v270 = vmax.f32 %v206, 0.0
  %v271 = vmax.f32 %v207, 0.0
  %v272 = vmax.f32 %v208, 0.0
  %v273 = vmax.f32 %v209, 0.0
  %v274 = vmax.f32 %v210, 0.0
  %v275 = vmax.f32 %v211, 0.0
  %v276 = vmax.f32 %v212, 0.0
  %v277 = vmax.f32 %v213, 0.0
  %v278 = vmax.f32 %v214, 0.0
  %v279 = vmax.f32 %v215, 0.0
  %v280 = vmax.f32 %v216, 0.0
  %v281 = vmax.f32 %v217, 0.0
  %v282 = vmax.f32 %v218, 0.0
  %v283 = vmax.f32 %v219, 0.0
  %v284 = vmax.f32 %v220, 0.0
  %v285 = vmax.f32 %v221, 0.0
  %v286 = vmax.f32 %v222, 0.0
  %v287 = vmax.f32 %v223, 0.0
  %v288 = vpack.c.bf16 %v225, %v224
  %v289 = vpack.c.bf16 %v227, %v226
  %v290 = vpack.c.bf16 %v229, %v228
  %v291 = vpack.c.bf16 %v231, %v230
  %v292 = vpack.c.bf16 %v233, %v232
  %v293 = vpack.c.bf16 %v235, %v234
  %v294 = vpack.c.bf16 %v237, %v236
  %v295 = vpack.c.bf16 %v239, %v238
  %v296 = vpack.c.bf16 %v241, %v240
  %v297 = vpack.c.bf16 %v243, %v242
  %v298 = vpack.c.bf16 %v245, %v244
  %v299 = vpack.c.bf16 %v247, %v246
  %v300 = vpack.c.bf16 %v249, %v248
  %v301 = vpack.c.bf16 %v251, %v250
  %v302 = vpack.c.bf16 %v253, %v252
  %v303 = vpack.c.bf16 %v255, %v254
  %v304 = vpack.c.bf16 %v257, %v256
  %v305 = vpack.c.bf16 %v259, %v258
  %v306 = vpack.c.bf16 %v261, %v260
  %v307 = vpack.c.bf16 %v263, %v262
  %v308 = vpack.c.bf16 %v265, %v264
  %v309 = vpack.c.bf16 %v267, %v266
  %v310 = vpack.c.bf16 %v269, %v268
  %v311 = vpack.c.bf16 %v271, %v270
  %v312 = vpack.c.bf16 %v273, %v272
  %v313 = vpack.c.bf16 %v275, %v274
  %v314 = vpack.c.bf16 %v277, %v276
  %v315 = vpack.c.bf16 %v279, %v278
  %v316 = vpack.c.bf16 %v281, %v280
  %v317 = vpack.c.bf16 %v283, %v282
  %v318 = vpack.c.bf16 %v285, %v284
  %v319 = vpack.c.bf16 %v287, %v286
  %v320 = vld [vmem:[%s3] sm:$0xff]
  %v321 = vld [vmem:[%s3 + $0x8] sm:$0xff]
  %v322 = vld [vmem:[%s3 + $0x10] sm:$0xff]
  %v323 = vld [vmem:[%s3 + $0x18] sm:$0xff]
  %v324 = vld [vmem:[%s3 + $0x20] sm:$0xff]
  %v325 = vld [vmem:[%s3 + $0x28] sm:$0xff]
  %v326 = vld [vmem:[%s3 + $0x30] sm:$0xff]
  %v327 = vld [vmem:[%s3 + $0x38] sm:$0xff]
  %v336 = vunpack.c.l.b16 %v320
  %v337 = vunpack.c.h.b16 %v320
  %v338 = vunpack.c.l.b16 %v321
  %v339 = vunpack.c.h.b16 %v321
  %v340 = vunpack.c.l.b16 %v322
  %v341 = vunpack.c.h.b16 %v322
  %v342 = vunpack.c.l.b16 %v323
  %v343 = vunpack.c.h.b16 %v323
  %v344 = vunpack.c.l.b16 %v324
  %v345 = vunpack.c.h.b16 %v324
  %v346 = vunpack.c.l.b16 %v325
  %v347 = vunpack.c.h.b16 %v325
  %v348 = vunpack.c.l.b16 %v326
  %v349 = vunpack.c.h.b16 %v326
  %v350 = vunpack.c.l.b16 %v327
  %v351 = vunpack.c.h.b16 %v327
  %v352 = vpack.c.b16 %v340, %v336
  %v353 = vpack.c.b16 %v341, %v337
  %v354 = vpack.c.b16 %v342, %v338
  %v355 = vpack.c.b16 %v343, %v339
  %v356 = vpack.c.b16 %v348, %v344
  %v357 = vpack.c.b16 %v349, %v345
  %v358 = vpack.c.b16 %v350, %v346
  %v359 = vpack.c.b16 %v351, %v347
  %vm368 = vcmask 261120
  %v370 = vsel %vm368, %v288, 0
  %v373 = vsel %vm368, %v289, 0
  %v376 = vsel %vm368, %v290, 0
  %v379 = vsel %vm368, %v291, 0
  %v382 = vsel %vm368, %v292, 0
  %v385 = vsel %vm368, %v293, 0
  %v388 = vsel %vm368, %v294, 0
  %v391 = vsel %vm368, %v295, 0
  %v394 = vsel %vm368, %v296, 0
  %v397 = vsel %vm368, %v297, 0
  %v400 = vsel %vm368, %v298, 0
  %v403 = vsel %vm368, %v299, 0
  %v406 = vsel %vm368, %v300, 0
  %v409 = vsel %vm368, %v301, 0
  %v412 = vsel %vm368, %v302, 0
  %v415 = vsel %vm368, %v303, 0
  %v418 = vsel %vm368, %v304, 0
  %v421 = vsel %vm368, %v305, 0
  %v424 = vsel %vm368, %v306, 0
  %v427 = vsel %vm368, %v307, 0
  %v430 = vsel %vm368, %v308, 0
  %v433 = vsel %vm368, %v309, 0
  %v436 = vsel %vm368, %v310, 0
  %v439 = vsel %vm368, %v311, 0
  %v442 = vsel %vm368, %v312, 0
  %v445 = vsel %vm368, %v313, 0
  %v448 = vsel %vm368, %v314, 0
  %v451 = vsel %vm368, %v315, 0
  %v454 = vsel %vm368, %v316, 0
  %v457 = vsel %vm368, %v317, 0
  %v460 = vsel %vm368, %v318, 0
  %v463 = vsel %vm368, %v319, 0
  %465 = vmatprep.subr.bf16.mxu0 %v353
  %466 = vmatpush1.bf16.msra.mxu0 %v352
  %467 = vmatprep.subr.bf16.mxu0 %v357
  %468 = vmatpush1.bf16.msra.mxu0 %v356
  %469 = vmatprep.subr.bf16.mxu0 0
  %470 = vmatpush1.bf16.msra.mxu0 0
  %471 = vmatprep.subr.bf16.mxu0 0
  %472 = vmatpush1.bf16.msra.mxu0 0
  %473 = vmatprep.subr.bf16.mxu0 0
  %474 = vmatpush1.bf16.msra.mxu0 0
  %475 = vmatprep.subr.bf16.mxu0 0
  %476 = vmatpush1.bf16.msra.mxu0 0
  %477 = vmatprep.subr.bf16.mxu0 0
  %478 = vmatpush1.bf16.msra.mxu0 0
  %479 = vmatprep.subr.bf16.mxu0 0
  %480 = vmatpush1.bf16.msra.mxu0 0
  %481 = vmatprep.subr.bf16.mxu0 0
  %482 = vmatpush1.bf16.msra.mxu0 0
  %483 = vmatprep.subr.bf16.mxu0 0
  %484 = vmatpush1.bf16.msra.mxu0 0
  %485 = vmatprep.subr.bf16.mxu0 0
  %486 = vmatpush1.bf16.msra.mxu0 0
  %487 = vmatprep.subr.bf16.mxu0 0
  %488 = vmatpush1.bf16.msra.mxu0 0
  %489 = vmatprep.subr.bf16.mxu0 0
  %490 = vmatpush1.bf16.msra.mxu0 0
  %491 = vmatprep.subr.bf16.mxu0 0
  %492 = vmatpush1.bf16.msra.mxu0 0
  %493 = vmatprep.subr.bf16.mxu0 0
  %494 = vmatpush1.bf16.msra.mxu0 0
  %495 = vmatprep.subr.bf16.mxu0 0
  %496 = vmatpush1.bf16.msra.mxu0 0
  %497 = vmatprep.mubr.bf16.mxu0 0
  %498 = vmatmul.mubr.bf16.gmra.mrb[0].mxu0 %v370
  %v499 = vpop.f32.mrb[0].mxu0
  %v500 = vadd.f32 0.0, %v499
  %v501 = vpop.f32.mrb[0].mxu0
  %v502 = vadd.f32 0.0, %v501
  %v503 = vpop.f32.mrb[0].mxu0
  %v504 = vadd.f32 0.0, %v503
  %v505 = vpop.f32.mrb[0].mxu0
  %v506 = vadd.f32 0.0, %v505
  %507 = vmatprep.mubr.bf16.mxu0 0
  %508 = vmatmul.mubr.bf16.gmra.mrb[0].mxu0 %v373
  %v509 = vpop.f32.mrb[0].mxu0
  %v510 = vadd.f32 0.0, %v509
  %v511 = vpop.f32.mrb[0].mxu0
  %v512 = vadd.f32 0.0, %v511
  %v513 = vpop.f32.mrb[0].mxu0
  %v514 = vadd.f32 0.0, %v513
  %v515 = vpop.f32.mrb[0].mxu0
  %v516 = vadd.f32 0.0, %v515
  %517 = vmatprep.mubr.bf16.mxu0 0
  %518 = vmatmul.mubr.bf16.gmra.mrb[0].mxu0 %v376
  %v519 = vpop.f32.mrb[0].mxu0
  %v520 = vadd.f32 0.0, %v519
  %v521 = vpop.f32.mrb[0].mxu0
  %v522 = vadd.f32 0.0, %v521
  %v523 = vpop.f32.mrb[0].mxu0
  %v524 = vadd.f32 0.0, %v523
  %v525 = vpop.f32.mrb[0].mxu0
  %v526 = vadd.f32 0.0, %v525
  %527 = vmatprep.mubr.bf16.mxu0 0
  %528 = vmatmul.mubr.bf16.gmra.mrb[0].mxu0 %v379
  %v529 = vpop.f32.mrb[0].mxu0
  %v530 = vadd.f32 0.0, %v529
  %v531 = vpop.f32.mrb[0].mxu0
  %v532 = vadd.f32 0.0, %v531
  %v533 = vpop.f32.mrb[0].mxu0
  %v534 = vadd.f32 0.0, %v533
  %v535 = vpop.f32.mrb[0].mxu0
  %v536 = vadd.f32 0.0, %v535
  %537 = vmatprep.mubr.bf16.mxu0 0
  %538 = vmatmul.mubr.bf16.gmra.mrb[0].mxu0 %v382
  %v539 = vpop.f32.mrb[0].mxu0
  %v540 = vadd.f32 0.0, %v539
  %v541 = vpop.f32.mrb[0].mxu0
  %v542 = vadd.f32 0.0, %v541
  %v543 = vpop.f32.mrb[0].mxu0
  %v544 = vadd.f32 0.0, %v543
  %v545 = vpop.f32.mrb[0].mxu0
  %v546 = vadd.f32 0.0, %v545
  %547 = vmatprep.mubr.bf16.mxu0 0
  %548 = vmatmul.mubr.bf16.gmra.mrb[0].mxu0 %v385
  %v549 = vpop.f32.mrb[0].mxu0
  %v550 = vadd.f32 0.0, %v549
  %v551 = vpop.f32.mrb[0].mxu0
  %v552 = vadd.f32 0.0, %v551
  %v553 = vpop.f32.mrb[0].mxu0
  %v554 = vadd.f32 0.0, %v553
  %v555 = vpop.f32.mrb[0].mxu0
  %v556 = vadd.f32 0.0, %v555
  %557 = vmatprep.mubr.bf16.mxu0 0
  %558 = vmatmul.mubr.bf16.gmra.mrb[0].mxu0 %v388
  %v559 = vpop.f32.mrb[0].mxu0
  %v560 = vadd.f32 0.0, %v559
  %v561 = vpop.f32.mrb[0].mxu0
  %v562 = vadd.f32 0.0, %v561
  %v563 = vpop.f32.mrb[0].mxu0
  %v564 = vadd.f32 0.0, %v563
  %v565 = vpop.f32.mrb[0].mxu0
  %v566 = vadd.f32 0.0, %v565
  %567 = vmatprep.mubr.bf16.mxu0 0
  %568 = vmatmul.mubr.bf16.gmra.mrb[0].mxu0 %v391
  %v569 = vpop.f32.mrb[0].mxu0
  %v570 = vadd.f32 0.0, %v569
  %v571 = vpop.f32.mrb[0].mxu0
  %v572 = vadd.f32 0.0, %v571
  %v573 = vpop.f32.mrb[0].mxu0
  %v574 = vadd.f32 0.0, %v573
  %v575 = vpop.f32.mrb[0].mxu0
  %v576 = vadd.f32 0.0, %v575
  %577 = vmatprep.mubr.bf16.mxu0 0
  %578 = vmatmul.mubr.bf16.gmra.mrb[0].mxu0 %v394
  %v579 = vpop.f32.mrb[0].mxu0
  %v580 = vadd.f32 0.0, %v579
  %v581 = vpop.f32.mrb[0].mxu0
  %v582 = vadd.f32 0.0, %v581
  %v583 = vpop.f32.mrb[0].mxu0
  %v584 = vadd.f32 0.0, %v583
  %v585 = vpop.f32.mrb[0].mxu0
  %v586 = vadd.f32 0.0, %v585
  %587 = vmatprep.mubr.bf16.mxu0 0
  %588 = vmatmul.mubr.bf16.gmra.mrb[0].mxu0 %v397
  %v589 = vpop.f32.mrb[0].mxu0
  %v590 = vadd.f32 0.0, %v589
  %v591 = vpop.f32.mrb[0].mxu0
  %v592 = vadd.f32 0.0, %v591
  %v593 = vpop.f32.mrb[0].mxu0
  %v594 = vadd.f32 0.0, %v593
  %v595 = vpop.f32.mrb[0].mxu0
  %v596 = vadd.f32 0.0, %v595
  %597 = vmatprep.mubr.bf16.mxu0 0
  %598 = vmatmul.mubr.bf16.gmra.mrb[0].mxu0 %v400
  %v599 = vpop.f32.mrb[0].mxu0
  %v600 = vadd.f32 0.0, %v599
  %v601 = vpop.f32.mrb[0].mxu0
  %v602 = vadd.f32 0.0, %v601
  %v603 = vpop.f32.mrb[0].mxu0
  %v604 = vadd.f32 0.0, %v603
  %v605 = vpop.f32.mrb[0].mxu0
  %v606 = vadd.f32 0.0, %v605
  %607 = vmatprep.mubr.bf16.mxu0 0
  %608 = vmatmul.mubr.bf16.gmra.mrb[0].mxu0 %v403
  %v609 = vpop.f32.mrb[0].mxu0
  %v610 = vadd.f32 0.0, %v609
  %v611 = vpop.f32.mrb[0].mxu0
  %v612 = vadd.f32 0.0, %v611
  %v613 = vpop.f32.mrb[0].mxu0
  %v614 = vadd.f32 0.0, %v613
  %v615 = vpop.f32.mrb[0].mxu0
  %v616 = vadd.f32 0.0, %v615
  %617 = vmatprep.mubr.bf16.mxu0 0
  %618 = vmatmul.mubr.bf16.gmra.mrb[0].mxu0 %v406
  %v619 = vpop.f32.mrb[0].mxu0
  %v620 = vadd.f32 0.0, %v619
  %v621 = vpop.f32.mrb[0].mxu0
  %v622 = vadd.f32 0.0, %v621
  %v623 = vpop.f32.mrb[0].mxu0
  %v624 = vadd.f32 0.0, %v623
  %v625 = vpop.f32.mrb[0].mxu0
  %v626 = vadd.f32 0.0, %v625
  %627 = vmatprep.mubr.bf16.mxu0 0
  %628 = vmatmul.mubr.bf16.gmra.mrb[0].mxu0 %v409
  %v629 = vpop.f32.mrb[0].mxu0
  %v630 = vadd.f32 0.0, %v629
  %v631 = vpop.f32.mrb[0].mxu0
  %v632 = vadd.f32 0.0, %v631
  %v633 = vpop.f32.mrb[0].mxu0
  %v634 = vadd.f32 0.0, %v633
  %v635 = vpop.f32.mrb[0].mxu0
  %v636 = vadd.f32 0.0, %v635
  %637 = vmatprep.mubr.bf16.mxu0 0
  %638 = vmatmul.mubr.bf16.gmra.mrb[0].mxu0 %v412
  %v639 = vpop.f32.mrb[0].mxu0
  %v640 = vadd.f32 0.0, %v639
  %v641 = vpop.f32.mrb[0].mxu0
  %v642 = vadd.f32 0.0, %v641
  %v643 = vpop.f32.mrb[0].mxu0
  %v644 = vadd.f32 0.0, %v643
  %v645 = vpop.f32.mrb[0].mxu0
  %v646 = vadd.f32 0.0, %v645
  %647 = vmatprep.mubr.bf16.mxu0 0
  %648 = vmatmul.mubr.bf16.gmra.mrb[0].mxu0 %v415
  %v649 = vpop.f32.mrb[0].mxu0
  %v650 = vadd.f32 0.0, %v649
  %v651 = vpop.f32.mrb[0].mxu0
  %v652 = vadd.f32 0.0, %v651
  %v653 = vpop.f32.mrb[0].mxu0
  %v654 = vadd.f32 0.0, %v653
  %v655 = vpop.f32.mrb[0].mxu0
  %v656 = vadd.f32 0.0, %v655
  %657 = vmatprep.mubr.bf16.mxu0 0
  %658 = vmatmul.mubr.bf16.gmra.mrb[0].mxu0 %v418
  %v659 = vpop.f32.mrb[0].mxu0
  %v660 = vadd.f32 0.0, %v659
  %v661 = vpop.f32.mrb[0].mxu0
  %v662 = vadd.f32 0.0, %v661
  %v663 = vpop.f32.mrb[0].mxu0
  %v664 = vadd.f32 0.0, %v663
  %v665 = vpop.f32.mrb[0].mxu0
  %v666 = vadd.f32 0.0, %v665
  %667 = vmatprep.mubr.bf16.mxu0 0
  %668 = vmatmul.mubr.bf16.gmra.mrb[0].mxu0 %v421
  %v669 = vpop.f32.mrb[0].mxu0
  %v670 = vadd.f32 0.0, %v669
  %v671 = vpop.f32.mrb[0].mxu0
  %v672 = vadd.f32 0.0, %v671
  %v673 = vpop.f32.mrb[0].mxu0
  %v674 = vadd.f32 0.0, %v673
  %v675 = vpop.f32.mrb[0].mxu0
  %v676 = vadd.f32 0.0, %v675
  %677 = vmatprep.mubr.bf16.mxu0 0
  %678 = vmatmul.mubr.bf16.gmra.mrb[0].mxu0 %v424
  %v679 = vpop.f32.mrb[0].mxu0
  %v680 = vadd.f32 0.0, %v679
  %v681 = vpop.f32.mrb[0].mxu0
  %v682 = vadd.f32 0.0, %v681
  %v683 = vpop.f32.mrb[0].mxu0
  %v684 = vadd.f32 0.0, %v683
  %v685 = vpop.f32.mrb[0].mxu0
  %v686 = vadd.f32 0.0, %v685
  %687 = vmatprep.mubr.bf16.mxu0 0
  %688 = vmatmul.mubr.bf16.gmra.mrb[0].mxu0 %v427
  %v689 = vpop.f32.mrb[0].mxu0
  %v690 = vadd.f32 0.0, %v689
  %v691 = vpop.f32.mrb[0].mxu0
  %v692 = vadd.f32 0.0, %v691
  %v693 = vpop.f32.mrb[0].mxu0
  %v694 = vadd.f32 0.0, %v693
  %v695 = vpop.f32.mrb[0].mxu0
  %v696 = vadd.f32 0.0, %v695
  %697 = vmatprep.mubr.bf16.mxu0 0
  %698 = vmatmul.mubr.bf16.gmra.mrb[0].mxu0 %v430
  %v699 = vpop.f32.mrb[0].mxu0
  %v700 = vadd.f32 0.0, %v699
  %v701 = vpop.f32.mrb[0].mxu0
  %v702 = vadd.f32 0.0, %v701
  %v703 = vpop.f32.mrb[0].mxu0
  %v704 = vadd.f32 0.0, %v703
  %v705 = vpop.f32.mrb[0].mxu0
  %v706 = vadd.f32 0.0, %v705
  %707 = vmatprep.mubr.bf16.mxu0 0
  %708 = vmatmul.mubr.bf16.gmra.mrb[0].mxu0 %v433
  %v709 = vpop.f32.mrb[0].mxu0
  %v710 = vadd.f32 0.0, %v709
  %v711 = vpop.f32.mrb[0].mxu0
  %v712 = vadd.f32 0.0, %v711
  %v713 = vpop.f32.mrb[0].mxu0
  %v714 = vadd.f32 0.0, %v713
  %v715 = vpop.f32.mrb[0].mxu0
  %v716 = vadd.f32 0.0, %v715
  %717 = vmatprep.mubr.bf16.mxu0 0
  %718 = vmatmul.mubr.bf16.gmra.mrb[0].mxu0 %v436
  %v719 = vpop.f32.mrb[0].mxu0
  %v720 = vadd.f32 0.0, %v719
  %v721 = vpop.f32.mrb[0].mxu0
  %v722 = vadd.f32 0.0, %v721
  %v723 = vpop.f32.mrb[0].mxu0
  %v724 = vadd.f32 0.0, %v723
  %v725 = vpop.f32.mrb[0].mxu0
  %v726 = vadd.f32 0.0, %v725
  %727 = vmatprep.mubr.bf16.mxu0 0
  %728 = vmatmul.mubr.bf16.gmra.mrb[0].mxu0 %v439
  %v729 = vpop.f32.mrb[0].mxu0
  %v730 = vadd.f32 0.0, %v729
  %v731 = vpop.f32.mrb[0].mxu0
  %v732 = vadd.f32 0.0, %v731
  %v733 = vpop.f32.mrb[0].mxu0
  %v734 = vadd.f32 0.0, %v733
  %v735 = vpop.f32.mrb[0].mxu0
  %v736 = vadd.f32 0.0, %v735
  %737 = vmatprep.mubr.bf16.mxu0 0
  %738 = vmatmul.mubr.bf16.gmra.mrb[0].mxu0 %v442
  %v739 = vpop.f32.mrb[0].mxu0
  %v740 = vadd.f32 0.0, %v739
  %v741 = vpop.f32.mrb[0].mxu0
  %v742 = vadd.f32 0.0, %v741
  %v743 = vpop.f32.mrb[0].mxu0
  %v744 = vadd.f32 0.0, %v743
  %v745 = vpop.f32.mrb[0].mxu0
  %v746 = vadd.f32 0.0, %v745
  %747 = vmatprep.mubr.bf16.mxu0 0
  %748 = vmatmul.mubr.bf16.gmra.mrb[0].mxu0 %v445
  %v749 = vpop.f32.mrb[0].mxu0
  %v750 = vadd.f32 0.0, %v749
  %v751 = vpop.f32.mrb[0].mxu0
  %v752 = vadd.f32 0.0, %v751
  %v753 = vpop.f32.mrb[0].mxu0
  %v754 = vadd.f32 0.0, %v753
  %v755 = vpop.f32.mrb[0].mxu0
  %v756 = vadd.f32 0.0, %v755
  %757 = vmatprep.mubr.bf16.mxu0 0
  %758 = vmatmul.mubr.bf16.gmra.mrb[0].mxu0 %v448
  %v759 = vpop.f32.mrb[0].mxu0
  %v760 = vadd.f32 0.0, %v759
  %v761 = vpop.f32.mrb[0].mxu0
  %v762 = vadd.f32 0.0, %v761
  %v763 = vpop.f32.mrb[0].mxu0
  %v764 = vadd.f32 0.0, %v763
  %v765 = vpop.f32.mrb[0].mxu0
  %v766 = vadd.f32 0.0, %v765
  %767 = vmatprep.mubr.bf16.mxu0 0
  %768 = vmatmul.mubr.bf16.gmra.mrb[0].mxu0 %v451
  %v769 = vpop.f32.mrb[0].mxu0
  %v770 = vadd.f32 0.0, %v769
  %v771 = vpop.f32.mrb[0].mxu0
  %v772 = vadd.f32 0.0, %v771
  %v773 = vpop.f32.mrb[0].mxu0
  %v774 = vadd.f32 0.0, %v773
  %v775 = vpop.f32.mrb[0].mxu0
  %v776 = vadd.f32 0.0, %v775
  %777 = vmatprep.mubr.bf16.mxu0 0
  %778 = vmatmul.mubr.bf16.gmra.mrb[0].mxu0 %v454
  %v779 = vpop.f32.mrb[0].mxu0
  %v780 = vadd.f32 0.0, %v779
  %v781 = vpop.f32.mrb[0].mxu0
  %v782 = vadd.f32 0.0, %v781
  %v783 = vpop.f32.mrb[0].mxu0
  %v784 = vadd.f32 0.0, %v783
  %v785 = vpop.f32.mrb[0].mxu0
  %v786 = vadd.f32 0.0, %v785
  %787 = vmatprep.mubr.bf16.mxu0 0
  %788 = vmatmul.mubr.bf16.gmra.mrb[0].mxu0 %v457
  %v789 = vpop.f32.mrb[0].mxu0
  %v790 = vadd.f32 0.0, %v789
  %v791 = vpop.f32.mrb[0].mxu0
  %v792 = vadd.f32 0.0, %v791
  %v793 = vpop.f32.mrb[0].mxu0
  %v794 = vadd.f32 0.0, %v793
  %v795 = vpop.f32.mrb[0].mxu0
  %v796 = vadd.f32 0.0, %v795
  %797 = vmatprep.mubr.bf16.mxu0 0
  %798 = vmatmul.mubr.bf16.gmra.mrb[0].mxu0 %v460
  %v799 = vpop.f32.mrb[0].mxu0
  %v800 = vadd.f32 0.0, %v799
  %v801 = vpop.f32.mrb[0].mxu0
  %v802 = vadd.f32 0.0, %v801
  %v803 = vpop.f32.mrb[0].mxu0
  %v804 = vadd.f32 0.0, %v803
  %v805 = vpop.f32.mrb[0].mxu0
  %v806 = vadd.f32 0.0, %v805
  %807 = vmatprep.mubr.bf16.mxu0 0
  %808 = vmatmul.mubr.bf16.gmra.mrb[0].mxu0 %v463
  %v809 = vpop.f32.mrb[0].mxu0
  %v810 = vadd.f32 0.0, %v809
  %v811 = vpop.f32.mrb[0].mxu0
  %v812 = vadd.f32 0.0, %v811
  %v813 = vpop.f32.mrb[0].mxu0
  %v814 = vadd.f32 0.0, %v813
  %v815 = vpop.f32.mrb[0].mxu0
  %v816 = vadd.f32 0.0, %v815
  %817 = vdwg.mxu0
  %818 = vmatprep.subr.bf16.mxu0 %v355
  %819 = vmatpush1.bf16.msra.mxu0 %v354
  %820 = vmatprep.subr.bf16.mxu0 %v359
  %821 = vmatpush1.bf16.msra.mxu0 %v358
  %822 = vmatprep.subr.bf16.mxu0 0
  %823 = vmatpush1.bf16.msra.mxu0 0
  %824 = vmatprep.subr.bf16.mxu0 0
  %825 = vmatpush1.bf16.msra.mxu0 0
  %826 = vmatprep.subr.bf16.mxu0 0
  %827 = vmatpush1.bf16.msra.mxu0 0
  %828 = vmatprep.subr.bf16.mxu0 0
  %829 = vmatpush1.bf16.msra.mxu0 0
  %830 = vmatprep.subr.bf16.mxu0 0
  %831 = vmatpush1.bf16.msra.mxu0 0
  %832 = vmatprep.subr.bf16.mxu0 0
  %833 = vmatpush1.bf16.msra.mxu0 0
  %834 = vmatprep.subr.bf16.mxu0 0
  %835 = vmatpush1.bf16.msra.mxu0 0
  %836 = vmatprep.subr.bf16.mxu0 0
  %837 = vmatpush1.bf16.msra.mxu0 0
  %838 = vmatprep.subr.bf16.mxu0 0
  %839 = vmatpush1.bf16.msra.mxu0 0
  %840 = vmatprep.subr.bf16.mxu0 0
  %841 = vmatpush1.bf16.msra.mxu0 0
  %842 = vmatprep.subr.bf16.mxu0 0
  %843 = vmatpush1.bf16.msra.mxu0 0
  %844 = vmatprep.subr.bf16.mxu0 0
  %845 = vmatpush1.bf16.msra.mxu0 0
  %846 = vmatprep.subr.bf16.mxu0 0
  %847 = vmatpush1.bf16.msra.mxu0 0
  %848 = vmatprep.subr.bf16.mxu0 0
  %849 = vmatpush1.bf16.msra.mxu0 0
  %850 = vmatprep.mubr.bf16.mxu0 0
  %851 = vmatmul.mubr.bf16.gmra.mrb[0].mxu0 %v370
  %v852 = vpop.f32.mrb[0].mxu0
  %v853 = vadd.f32 0.0, %v852
  %v854 = vpop.f32.mrb[0].mxu0
  %v855 = vadd.f32 0.0, %v854
  %v856 = vpop.f32.mrb[0].mxu0
  %v857 = vadd.f32 0.0, %v856
  %v858 = vpop.f32.mrb[0].mxu0
  %v859 = vadd.f32 0.0, %v858
  %860 = vmatprep.mubr.bf16.mxu0 0
  %861 = vmatmul.mubr.bf16.gmra.mrb[0].mxu0 %v373
  %v862 = vpop.f32.mrb[0].mxu0
  %v863 = vadd.f32 0.0, %v862
  %v864 = vpop.f32.mrb[0].mxu0
  %v865 = vadd.f32 0.0, %v864
  %v866 = vpop.f32.mrb[0].mxu0
  %v867 = vadd.f32 0.0, %v866
  %v868 = vpop.f32.mrb[0].mxu0
  %v869 = vadd.f32 0.0, %v868
  %870 = vmatprep.mubr.bf16.mxu0 0
  %871 = vmatmul.mubr.bf16.gmra.mrb[0].mxu0 %v376
  %v872 = vpop.f32.mrb[0].mxu0
  %v873 = vadd.f32 0.0, %v872
  %v874 = vpop.f32.mrb[0].mxu0
  %v875 = vadd.f32 0.0, %v874
  %v876 = vpop.f32.mrb[0].mxu0
  %v877 = vadd.f32 0.0, %v876
  %v878 = vpop.f32.mrb[0].mxu0
  %v879 = vadd.f32 0.0, %v878
  %880 = vmatprep.mubr.bf16.mxu0 0
  %881 = vmatmul.mubr.bf16.gmra.mrb[0].mxu0 %v379
  %v882 = vpop.f32.mrb[0].mxu0
  %v883 = vadd.f32 0.0, %v882
  %v884 = vpop.f32.mrb[0].mxu0
  %v885 = vadd.f32 0.0, %v884
  %v886 = vpop.f32.mrb[0].mxu0
  %v887 = vadd.f32 0.0, %v886
  %v888 = vpop.f32.mrb[0].mxu0
  %v889 = vadd.f32 0.0, %v888
  %890 = vmatprep.mubr.bf16.mxu0 0
  %891 = vmatmul.mubr.bf16.gmra.mrb[0].mxu0 %v382
  %v892 = vpop.f32.mrb[0].mxu0
  %v893 = vadd.f32 0.0, %v892
  %v894 = vpop.f32.mrb[0].mxu0
  %v895 = vadd.f32 0.0, %v894
  %v896 = vpop.f32.mrb[0].mxu0
  %v897 = vadd.f32 0.0, %v896
  %v898 = vpop.f32.mrb[0].mxu0
  %v899 = vadd.f32 0.0, %v898
  %900 = vmatprep.mubr.bf16.mxu0 0
  %901 = vmatmul.mubr.bf16.gmra.mrb[0].mxu0 %v385
  %v902 = vpop.f32.mrb[0].mxu0
  %v903 = vadd.f32 0.0, %v902
  %v904 = vpop.f32.mrb[0].mxu0
  %v905 = vadd.f32 0.0, %v904
  %v906 = vpop.f32.mrb[0].mxu0
  %v907 = vadd.f32 0.0, %v906
  %v908 = vpop.f32.mrb[0].mxu0
  %v909 = vadd.f32 0.0, %v908
  %910 = vmatprep.mubr.bf16.mxu0 0
  %911 = vmatmul.mubr.bf16.gmra.mrb[0].mxu0 %v388
  %v912 = vpop.f32.mrb[0].mxu0
  %v913 = vadd.f32 0.0, %v912
  %v914 = vpop.f32.mrb[0].mxu0
  %v915 = vadd.f32 0.0, %v914
  %v916 = vpop.f32.mrb[0].mxu0
  %v917 = vadd.f32 0.0, %v916
  %v918 = vpop.f32.mrb[0].mxu0
  %v919 = vadd.f32 0.0, %v918
  %920 = vmatprep.mubr.bf16.mxu0 0
  %921 = vmatmul.mubr.bf16.gmra.mrb[0].mxu0 %v391
  %v922 = vpop.f32.mrb[0].mxu0
  %v923 = vadd.f32 0.0, %v922
  %v924 = vpop.f32.mrb[0].mxu0
  %v925 = vadd.f32 0.0, %v924
  %v926 = vpop.f32.mrb[0].mxu0
  %v927 = vadd.f32 0.0, %v926
  %v928 = vpop.f32.mrb[0].mxu0
  %v929 = vadd.f32 0.0, %v928
  %930 = vmatprep.mubr.bf16.mxu0 0
  %931 = vmatmul.mubr.bf16.gmra.mrb[0].mxu0 %v394
  %v932 = vpop.f32.mrb[0].mxu0
  %v933 = vadd.f32 0.0, %v932
  %v934 = vpop.f32.mrb[0].mxu0
  %v935 = vadd.f32 0.0, %v934
  %v936 = vpop.f32.mrb[0].mxu0
  %v937 = vadd.f32 0.0, %v936
  %v938 = vpop.f32.mrb[0].mxu0
  %v939 = vadd.f32 0.0, %v938
  %940 = vmatprep.mubr.bf16.mxu0 0
  %941 = vmatmul.mubr.bf16.gmra.mrb[0].mxu0 %v397
  %v942 = vpop.f32.mrb[0].mxu0
  %v943 = vadd.f32 0.0, %v942
  %v944 = vpop.f32.mrb[0].mxu0
  %v945 = vadd.f32 0.0, %v944
  %v946 = vpop.f32.mrb[0].mxu0
  %v947 = vadd.f32 0.0, %v946
  %v948 = vpop.f32.mrb[0].mxu0
  %v949 = vadd.f32 0.0, %v948
  %950 = vmatprep.mubr.bf16.mxu0 0
  %951 = vmatmul.mubr.bf16.gmra.mrb[0].mxu0 %v400
  %v952 = vpop.f32.mrb[0].mxu0
  %v953 = vadd.f32 0.0, %v952
  %v954 = vpop.f32.mrb[0].mxu0
  %v955 = vadd.f32 0.0, %v954
  %v956 = vpop.f32.mrb[0].mxu0
  %v957 = vadd.f32 0.0, %v956
  %v958 = vpop.f32.mrb[0].mxu0
  %v959 = vadd.f32 0.0, %v958
  %960 = vmatprep.mubr.bf16.mxu0 0
  %961 = vmatmul.mubr.bf16.gmra.mrb[0].mxu0 %v403
  %v962 = vpop.f32.mrb[0].mxu0
  %v963 = vadd.f32 0.0, %v962
  %v964 = vpop.f32.mrb[0].mxu0
  %v965 = vadd.f32 0.0, %v964
  %v966 = vpop.f32.mrb[0].mxu0
  %v967 = vadd.f32 0.0, %v966
  %v968 = vpop.f32.mrb[0].mxu0
  %v969 = vadd.f32 0.0, %v968
  %970 = vmatprep.mubr.bf16.mxu0 0
  %971 = vmatmul.mubr.bf16.gmra.mrb[0].mxu0 %v406
  %v972 = vpop.f32.mrb[0].mxu0
  %v973 = vadd.f32 0.0, %v972
  %v974 = vpop.f32.mrb[0].mxu0
  %v975 = vadd.f32 0.0, %v974
  %v976 = vpop.f32.mrb[0].mxu0
  %v977 = vadd.f32 0.0, %v976
  %v978 = vpop.f32.mrb[0].mxu0
  %v979 = vadd.f32 0.0, %v978
  %980 = vmatprep.mubr.bf16.mxu0 0
  %981 = vmatmul.mubr.bf16.gmra.mrb[0].mxu0 %v409
  %v982 = vpop.f32.mrb[0].mxu0
  %v983 = vadd.f32 0.0, %v982
  %v984 = vpop.f32.mrb[0].mxu0
  %v985 = vadd.f32 0.0, %v984
  %v986 = vpop.f32.mrb[0].mxu0
  %v987 = vadd.f32 0.0, %v986
  %v988 = vpop.f32.mrb[0].mxu0
  %v989 = vadd.f32 0.0, %v988
  %990 = vmatprep.mubr.bf16.mxu0 0
  %991 = vmatmul.mubr.bf16.gmra.mrb[0].mxu0 %v412
  %v992 = vpop.f32.mrb[0].mxu0
  %v993 = vadd.f32 0.0, %v992
  %v994 = vpop.f32.mrb[0].mxu0
  %v995 = vadd.f32 0.0, %v994
  %v996 = vpop.f32.mrb[0].mxu0
  %v997 = vadd.f32 0.0, %v996
  %v998 = vpop.f32.mrb[0].mxu0
  %v999 = vadd.f32 0.0, %v998
  %1000 = vmatprep.mubr.bf16.mxu0 0
  %1001 = vmatmul.mubr.bf16.gmra.mrb[0].mxu0 %v415
  %v1002 = vpop.f32.mrb[0].mxu0
  %v1003 = vadd.f32 0.0, %v1002
  %v1004 = vpop.f32.mrb[0].mxu0
  %v1005 = vadd.f32 0.0, %v1004
  %v1006 = vpop.f32.mrb[0].mxu0
  %v1007 = vadd.f32 0.0, %v1006
  %v1008 = vpop.f32.mrb[0].mxu0
  %v1009 = vadd.f32 0.0, %v1008
  %1010 = vmatprep.mubr.bf16.mxu0 0
  %1011 = vmatmul.mubr.bf16.gmra.mrb[0].mxu0 %v418
  %v1012 = vpop.f32.mrb[0].mxu0
  %v1013 = vadd.f32 0.0, %v1012
  %v1014 = vpop.f32.mrb[0].mxu0
  %v1015 = vadd.f32 0.0, %v1014
  %v1016 = vpop.f32.mrb[0].mxu0
  %v1017 = vadd.f32 0.0, %v1016
  %v1018 = vpop.f32.mrb[0].mxu0
  %v1019 = vadd.f32 0.0, %v1018
  %1020 = vmatprep.mubr.bf16.mxu0 0
  %1021 = vmatmul.mubr.bf16.gmra.mrb[0].mxu0 %v421
  %v1022 = vpop.f32.mrb[0].mxu0
  %v1023 = vadd.f32 0.0, %v1022
  %v1024 = vpop.f32.mrb[0].mxu0
  %v1025 = vadd.f32 0.0, %v1024
  %v1026 = vpop.f32.mrb[0].mxu0
  %v1027 = vadd.f32 0.0, %v1026
  %v1028 = vpop.f32.mrb[0].mxu0
  %v1029 = vadd.f32 0.0, %v1028
  %1030 = vmatprep.mubr.bf16.mxu0 0
  %1031 = vmatmul.mubr.bf16.gmra.mrb[0].mxu0 %v424
  %v1032 = vpop.f32.mrb[0].mxu0
  %v1033 = vadd.f32 0.0, %v1032
  %v1034 = vpop.f32.mrb[0].mxu0
  %v1035 = vadd.f32 0.0, %v1034
  %v1036 = vpop.f32.mrb[0].mxu0
  %v1037 = vadd.f32 0.0, %v1036
  %v1038 = vpop.f32.mrb[0].mxu0
  %v1039 = vadd.f32 0.0, %v1038
  %1040 = vmatprep.mubr.bf16.mxu0 0
  %1041 = vmatmul.mubr.bf16.gmra.mrb[0].mxu0 %v427
  %v1042 = vpop.f32.mrb[0].mxu0
  %v1043 = vadd.f32 0.0, %v1042
  %v1044 = vpop.f32.mrb[0].mxu0
  %v1045 = vadd.f32 0.0, %v1044
  %v1046 = vpop.f32.mrb[0].mxu0
  %v1047 = vadd.f32 0.0, %v1046
  %v1048 = vpop.f32.mrb[0].mxu0
  %v1049 = vadd.f32 0.0, %v1048
  %1050 = vmatprep.mubr.bf16.mxu0 0
  %1051 = vmatmul.mubr.bf16.gmra.mrb[0].mxu0 %v430
  %v1052 = vpop.f32.mrb[0].mxu0
  %v1053 = vadd.f32 0.0, %v1052
  %v1054 = vpop.f32.mrb[0].mxu0
  %v1055 = vadd.f32 0.0, %v1054
  %v1056 = vpop.f32.mrb[0].mxu0
  %v1057 = vadd.f32 0.0, %v1056
  %v1058 = vpop.f32.mrb[0].mxu0
  %v1059 = vadd.f32 0.0, %v1058
  %1060 = vmatprep.mubr.bf16.mxu0 0
  %1061 = vmatmul.mubr.bf16.gmra.mrb[0].mxu0 %v433
  %v1062 = vpop.f32.mrb[0].mxu0
  %v1063 = vadd.f32 0.0, %v1062
  %v1064 = vpop.f32.mrb[0].mxu0
  %v1065 = vadd.f32 0.0, %v1064
  %v1066 = vpop.f32.mrb[0].mxu0
  %v1067 = vadd.f32 0.0, %v1066
  %v1068 = vpop.f32.mrb[0].mxu0
  %v1069 = vadd.f32 0.0, %v1068
  %1070 = vmatprep.mubr.bf16.mxu0 0
  %1071 = vmatmul.mubr.bf16.gmra.mrb[0].mxu0 %v436
  %v1072 = vpop.f32.mrb[0].mxu0
  %v1073 = vadd.f32 0.0, %v1072
  %v1074 = vpop.f32.mrb[0].mxu0
  %v1075 = vadd.f32 0.0, %v1074
  %v1076 = vpop.f32.mrb[0].mxu0
  %v1077 = vadd.f32 0.0, %v1076
  %v1078 = vpop.f32.mrb[0].mxu0
  %v1079 = vadd.f32 0.0, %v1078
  %1080 = vmatprep.mubr.bf16.mxu0 0
  %1081 = vmatmul.mubr.bf16.gmra.mrb[0].mxu0 %v439
  %v1082 = vpop.f32.mrb[0].mxu0
  %v1083 = vadd.f32 0.0, %v1082
  %v1084 = vpop.f32.mrb[0].mxu0
  %v1085 = vadd.f32 0.0, %v1084
  %v1086 = vpop.f32.mrb[0].mxu0
  %v1087 = vadd.f32 0.0, %v1086
  %v1088 = vpop.f32.mrb[0].mxu0
  %v1089 = vadd.f32 0.0, %v1088
  %1090 = vmatprep.mubr.bf16.mxu0 0
  %1091 = vmatmul.mubr.bf16.gmra.mrb[0].mxu0 %v442
  %v1092 = vpop.f32.mrb[0].mxu0
  %v1093 = vadd.f32 0.0, %v1092
  %v1094 = vpop.f32.mrb[0].mxu0
  %v1095 = vadd.f32 0.0, %v1094
  %v1096 = vpop.f32.mrb[0].mxu0
  %v1097 = vadd.f32 0.0, %v1096
  %v1098 = vpop.f32.mrb[0].mxu0
  %v1099 = vadd.f32 0.0, %v1098
  %1100 = vmatprep.mubr.bf16.mxu0 0
  %1101 = vmatmul.mubr.bf16.gmra.mrb[0].mxu0 %v445
  %v1102 = vpop.f32.mrb[0].mxu0
  %v1103 = vadd.f32 0.0, %v1102
  %v1104 = vpop.f32.mrb[0].mxu0
  %v1105 = vadd.f32 0.0, %v1104
  %v1106 = vpop.f32.mrb[0].mxu0
  %v1107 = vadd.f32 0.0, %v1106
  %v1108 = vpop.f32.mrb[0].mxu0
  %v1109 = vadd.f32 0.0, %v1108
  %1110 = vmatprep.mubr.bf16.mxu0 0
  %1111 = vmatmul.mubr.bf16.gmra.mrb[0].mxu0 %v448
  %v1112 = vpop.f32.mrb[0].mxu0
  %v1113 = vadd.f32 0.0, %v1112
  %v1114 = vpop.f32.mrb[0].mxu0
  %v1115 = vadd.f32 0.0, %v1114
  %v1116 = vpop.f32.mrb[0].mxu0
  %v1117 = vadd.f32 0.0, %v1116
  %v1118 = vpop.f32.mrb[0].mxu0
  %v1119 = vadd.f32 0.0, %v1118
  %1120 = vmatprep.mubr.bf16.mxu0 0
  %1121 = vmatmul.mubr.bf16.gmra.mrb[0].mxu0 %v451
  %v1122 = vpop.f32.mrb[0].mxu0
  %v1123 = vadd.f32 0.0, %v1122
  %v1124 = vpop.f32.mrb[0].mxu0
  %v1125 = vadd.f32 0.0, %v1124
  %v1126 = vpop.f32.mrb[0].mxu0
  %v1127 = vadd.f32 0.0, %v1126
  %v1128 = vpop.f32.mrb[0].mxu0
  %v1129 = vadd.f32 0.0, %v1128
  %1130 = vmatprep.mubr.bf16.mxu0 0
  %1131 = vmatmul.mubr.bf16.gmra.mrb[0].mxu0 %v454
  %v1132 = vpop.f32.mrb[0].mxu0
  %v1133 = vadd.f32 0.0, %v1132
  %v1134 = vpop.f32.mrb[0].mxu0
  %v1135 = vadd.f32 0.0, %v1134
  %v1136 = vpop.f32.mrb[0].mxu0
  %v1137 = vadd.f32 0.0, %v1136
  %v1138 = vpop.f32.mrb[0].mxu0
  %v1139 = vadd.f32 0.0, %v1138
  %1140 = vmatprep.mubr.bf16.mxu0 0
  %1141 = vmatmul.mubr.bf16.gmra.mrb[0].mxu0 %v457
  %v1142 = vpop.f32.mrb[0].mxu0
  %v1143 = vadd.f32 0.0, %v1142
  %v1144 = vpop.f32.mrb[0].mxu0
  %v1145 = vadd.f32 0.0, %v1144
  %v1146 = vpop.f32.mrb[0].mxu0
  %v1147 = vadd.f32 0.0, %v1146
  %v1148 = vpop.f32.mrb[0].mxu0
  %v1149 = vadd.f32 0.0, %v1148
  %1150 = vmatprep.mubr.bf16.mxu0 0
  %1151 = vmatmul.mubr.bf16.gmra.mrb[0].mxu0 %v460
  %v1152 = vpop.f32.mrb[0].mxu0
  %v1153 = vadd.f32 0.0, %v1152
  %v1154 = vpop.f32.mrb[0].mxu0
  %v1155 = vadd.f32 0.0, %v1154
  %v1156 = vpop.f32.mrb[0].mxu0
  %v1157 = vadd.f32 0.0, %v1156
  %v1158 = vpop.f32.mrb[0].mxu0
  %v1159 = vadd.f32 0.0, %v1158
  %1160 = vmatprep.mubr.bf16.mxu0 0
  %1161 = vmatmul.mubr.bf16.gmra.mrb[0].mxu0 %v463
  %v1162 = vpop.f32.mrb[0].mxu0
  %v1163 = vadd.f32 0.0, %v1162
  %v1164 = vpop.f32.mrb[0].mxu0
  %v1165 = vadd.f32 0.0, %v1164
  %v1166 = vpop.f32.mrb[0].mxu0
  %v1167 = vadd.f32 0.0, %v1166
  %v1168 = vpop.f32.mrb[0].mxu0
  %v1169 = vadd.f32 0.0, %v1168
  %1170 = vdwg.mxu0
  %1171 = vst [vmem:[%s4] sm:$0xff] %v500
  %1172 = vst [vmem:[%s4 + $0x8] sm:$0xff] %v502
  %1173 = vst [vmem:[%s4 + $0x10] sm:$0xff] %v853
  %1174 = vst [vmem:[%s4 + $0x18] sm:$0xff] %v855
  %1175 = vst [vmem:[%s4 + $0x20] sm:$0xff] %v504
  %1176 = vst [vmem:[%s4 + $0x28] sm:$0xff] %v506
  %1177 = vst [vmem:[%s4 + $0x30] sm:$0xff] %v857
  %1178 = vst [vmem:[%s4 + $0x38] sm:$0xff] %v859
  %1179 = vst [vmem:[%s4 + $0x40] sm:$0xff] %v510
  %1180 = vst [vmem:[%s4 + $0x48] sm:$0xff] %v512
  %1181 = vst [vmem:[%s4 + $0x50] sm:$0xff] %v863
  %1182 = vst [vmem:[%s4 + $0x58] sm:$0xff] %v865
  %1183 = vst [vmem:[%s4 + $0x60] sm:$0xff] %v514
  %1184 = vst [vmem:[%s4 + $0x68] sm:$0xff] %v516
  %1185 = vst [vmem:[%s4 + $0x70] sm:$0xff] %v867
  %1186 = vst [vmem:[%s4 + $0x78] sm:$0xff] %v869
  %1187 = vst [vmem:[%s4 + $0x80] sm:$0xff] %v520
  %1188 = vst [vmem:[%s4 + $0x88] sm:$0xff] %v522
  %1189 = vst [vmem:[%s4 + $0x90] sm:$0xff] %v873
  %1190 = vst [vmem:[%s4 + $0x98] sm:$0xff] %v875
  %1191 = vst [vmem:[%s4 + $0xa0] sm:$0xff] %v524
  %1192 = vst [vmem:[%s4 + $0xa8] sm:$0xff] %v526
  %1193 = vst [vmem:[%s4 + $0xb0] sm:$0xff] %v877
  %1194 = vst [vmem:[%s4 + $0xb8] sm:$0xff] %v879
  %1195 = vst [vmem:[%s4 + $0xc0] sm:$0xff] %v530
  %1196 = vst [vmem:[%s4 + $0xc8] sm:$0xff] %v532
  %1197 = vst [vmem:[%s4 + $0xd0] sm:$0xff] %v883
  %1198 = vst [vmem:[%s4 + $0xd8] sm:$0xff] %v885
  %1199 = vst [vmem:[%s4 + $0xe0] sm:$0xff] %v534
  %1200 = vst [vmem:[%s4 + $0xe8] sm:$0xff] %v536
  %1201 = vst [vmem:[%s4 + $0xf0] sm:$0xff] %v887
  %1202 = vst [vmem:[%s4 + $0xf8] sm:$0xff] %v889
  %1203 = vst [vmem:[%s4 + $0x100] sm:$0xff] %v540
  %1204 = vst [vmem:[%s4 + $0x108] sm:$0xff] %v542
  %1205 = vst [vmem:[%s4 + $0x110] sm:$0xff] %v893
  %1206 = vst [vmem:[%s4 + $0x118] sm:$0xff] %v895
  %1207 = vst [vmem:[%s4 + $0x120] sm:$0xff] %v544
  %1208 = vst [vmem:[%s4 + $0x128] sm:$0xff] %v546
  %1209 = vst [vmem:[%s4 + $0x130] sm:$0xff] %v897
  %1210 = vst [vmem:[%s4 + $0x138] sm:$0xff] %v899
  %1211 = vst [vmem:[%s4 + $0x140] sm:$0xff] %v550
  %1212 = vst [vmem:[%s4 + $0x148] sm:$0xff] %v552
  %1213 = vst [vmem:[%s4 + $0x150] sm:$0xff] %v903
  %1214 = vst [vmem:[%s4 + $0x158] sm:$0xff] %v905
  %1215 = vst [vmem:[%s4 + $0x160] sm:$0xff] %v554
  %1216 = vst [vmem:[%s4 + $0x168] sm:$0xff] %v556
  %1217 = vst [vmem:[%s4 + $0x170] sm:$0xff] %v907
  %1218 = vst [vmem:[%s4 + $0x178] sm:$0xff] %v909
  %1219 = vst [vmem:[%s4 + $0x180] sm:$0xff] %v560
  %1220 = vst [vmem:[%s4 + $0x188] sm:$0xff] %v562
  %1221 = vst [vmem:[%s4 + $0x190] sm:$0xff] %v913
  %1222 = vst [vmem:[%s4 + $0x198] sm:$0xff] %v915
  %1223 = vst [vmem:[%s4 + $0x1a0] sm:$0xff] %v564
  %1224 = vst [vmem:[%s4 + $0x1a8] sm:$0xff] %v566
  %1225 = vst [vmem:[%s4 + $0x1b0] sm:$0xff] %v917
  %1226 = vst [vmem:[%s4 + $0x1b8] sm:$0xff] %v919
  %1227 = vst [vmem:[%s4 + $0x1c0] sm:$0xff] %v570
  %1228 = vst [vmem:[%s4 + $0x1c8] sm:$0xff] %v572
  %1229 = vst [vmem:[%s4 + $0x1d0] sm:$0xff] %v923
  %1230 = vst [vmem:[%s4 + $0x1d8] sm:$0xff] %v925
  %1231 = vst [vmem:[%s4 + $0x1e0] sm:$0xff] %v574
  %1232 = vst [vmem:[%s4 + $0x1e8] sm:$0xff] %v576
  %1233 = vst [vmem:[%s4 + $0x1f0] sm:$0xff] %v927
  %1234 = vst [vmem:[%s4 + $0x1f8] sm:$0xff] %v929
  %1235 = vst [vmem:[%s4 + $0x200] sm:$0xff] %v580
  %1236 = vst [vmem:[%s4 + $0x208] sm:$0xff] %v582
  %1237 = vst [vmem:[%s4 + $0x210] sm:$0xff] %v933
  %1238 = vst [vmem:[%s4 + $0x218] sm:$0xff] %v935
  %1239 = vst [vmem:[%s4 + $0x220] sm:$0xff] %v584
  %1240 = vst [vmem:[%s4 + $0x228] sm:$0xff] %v586
  %1241 = vst [vmem:[%s4 + $0x230] sm:$0xff] %v937
  %1242 = vst [vmem:[%s4 + $0x238] sm:$0xff] %v939
  %1243 = vst [vmem:[%s4 + $0x240] sm:$0xff] %v590
  %1244 = vst [vmem:[%s4 + $0x248] sm:$0xff] %v592
  %1245 = vst [vmem:[%s4 + $0x250] sm:$0xff] %v943
  %1246 = vst [vmem:[%s4 + $0x258] sm:$0xff] %v945
  %1247 = vst [vmem:[%s4 + $0x260] sm:$0xff] %v594
  %1248 = vst [vmem:[%s4 + $0x268] sm:$0xff] %v596
  %1249 = vst [vmem:[%s4 + $0x270] sm:$0xff] %v947
  %1250 = vst [vmem:[%s4 + $0x278] sm:$0xff] %v949
  %1251 = vst [vmem:[%s4 + $0x280] sm:$0xff] %v600
  %1252 = vst [vmem:[%s4 + $0x288] sm:$0xff] %v602
  %1253 = vst [vmem:[%s4 + $0x290] sm:$0xff] %v953
  %1254 = vst [vmem:[%s4 + $0x298] sm:$0xff] %v955
  %1255 = vst [vmem:[%s4 + $0x2a0] sm:$0xff] %v604
  %1256 = vst [vmem:[%s4 + $0x2a8] sm:$0xff] %v606
  %1257 = vst [vmem:[%s4 + $0x2b0] sm:$0xff] %v957
  %1258 = vst [vmem:[%s4 + $0x2b8] sm:$0xff] %v959
  %1259 = vst [vmem:[%s4 + $0x2c0] sm:$0xff] %v610
  %1260 = vst [vmem:[%s4 + $0x2c8] sm:$0xff] %v612
  %1261 = vst [vmem:[%s4 + $0x2d0] sm:$0xff] %v963
  %1262 = vst [vmem:[%s4 + $0x2d8] sm:$0xff] %v965
  %1263 = vst [vmem:[%s4 + $0x2e0] sm:$0xff] %v614
  %1264 = vst [vmem:[%s4 + $0x2e8] sm:$0xff] %v616
  %1265 = vst [vmem:[%s4 + $0x2f0] sm:$0xff] %v967
  %1266 = vst [vmem:[%s4 + $0x2f8] sm:$0xff] %v969
  %1267 = vst [vmem:[%s4 + $0x300] sm:$0xff] %v620
  %1268 = vst [vmem:[%s4 + $0x308] sm:$0xff] %v622
  %1269 = vst [vmem:[%s4 + $0x310] sm:$0xff] %v973
  %1270 = vst [vmem:[%s4 + $0x318] sm:$0xff] %v975
  %1271 = vst [vmem:[%s4 + $0x320] sm:$0xff] %v624
  %1272 = vst [vmem:[%s4 + $0x328] sm:$0xff] %v626
  %1273 = vst [vmem:[%s4 + $0x330] sm:$0xff] %v977
  %1274 = vst [vmem:[%s4 + $0x338] sm:$0xff] %v979
  %1275 = vst [vmem:[%s4 + $0x340] sm:$0xff] %v630
  %1276 = vst [vmem:[%s4 + $0x348] sm:$0xff] %v632
  %1277 = vst [vmem:[%s4 + $0x350] sm:$0xff] %v983
  %1278 = vst [vmem:[%s4 + $0x358] sm:$0xff] %v985
  %1279 = vst [vmem:[%s4 + $0x360] sm:$0xff] %v634
  %1280 = vst [vmem:[%s4 + $0x368] sm:$0xff] %v636
  %1281 = vst [vmem:[%s4 + $0x370] sm:$0xff] %v987
  %1282 = vst [vmem:[%s4 + $0x378] sm:$0xff] %v989
  %1283 = vst [vmem:[%s4 + $0x380] sm:$0xff] %v640
  %1284 = vst [vmem:[%s4 + $0x388] sm:$0xff] %v642
  %1285 = vst [vmem:[%s4 + $0x390] sm:$0xff] %v993
  %1286 = vst [vmem:[%s4 + $0x398] sm:$0xff] %v995
  %1287 = vst [vmem:[%s4 + $0x3a0] sm:$0xff] %v644
  %1288 = vst [vmem:[%s4 + $0x3a8] sm:$0xff] %v646
  %1289 = vst [vmem:[%s4 + $0x3b0] sm:$0xff] %v997
  %1290 = vst [vmem:[%s4 + $0x3b8] sm:$0xff] %v999
  %1291 = vst [vmem:[%s4 + $0x3c0] sm:$0xff] %v650
  %1292 = vst [vmem:[%s4 + $0x3c8] sm:$0xff] %v652
  %1293 = vst [vmem:[%s4 + $0x3d0] sm:$0xff] %v1003
  %1294 = vst [vmem:[%s4 + $0x3d8] sm:$0xff] %v1005
  %1295 = vst [vmem:[%s4 + $0x3e0] sm:$0xff] %v654
  %1296 = vst [vmem:[%s4 + $0x3e8] sm:$0xff] %v656
  %1297 = vst [vmem:[%s4 + $0x3f0] sm:$0xff] %v1007
  %1298 = vst [vmem:[%s4 + $0x3f8] sm:$0xff] %v1009
  %1299 = vst [vmem:[%s4 + $0x400] sm:$0xff] %v660
  %1300 = vst [vmem:[%s4 + $0x408] sm:$0xff] %v662
  %1301 = vst [vmem:[%s4 + $0x410] sm:$0xff] %v1013
  %1302 = vst [vmem:[%s4 + $0x418] sm:$0xff] %v1015
  %1303 = vst [vmem:[%s4 + $0x420] sm:$0xff] %v664
  %1304 = vst [vmem:[%s4 + $0x428] sm:$0xff] %v666
  %1305 = vst [vmem:[%s4 + $0x430] sm:$0xff] %v1017
  %1306 = vst [vmem:[%s4 + $0x438] sm:$0xff] %v1019
  %1307 = vst [vmem:[%s4 + $0x440] sm:$0xff] %v670
  %1308 = vst [vmem:[%s4 + $0x448] sm:$0xff] %v672
  %1309 = vst [vmem:[%s4 + $0x450] sm:$0xff] %v1023
  %1310 = vst [vmem:[%s4 + $0x458] sm:$0xff] %v1025
  %1311 = vst [vmem:[%s4 + $0x460] sm:$0xff] %v674
  %1312 = vst [vmem:[%s4 + $0x468] sm:$0xff] %v676
  %1313 = vst [vmem:[%s4 + $0x470] sm:$0xff] %v1027
  %1314 = vst [vmem:[%s4 + $0x478] sm:$0xff] %v1029
  %1315 = vst [vmem:[%s4 + $0x480] sm:$0xff] %v680
  %1316 = vst [vmem:[%s4 + $0x488] sm:$0xff] %v682
  %1317 = vst [vmem:[%s4 + $0x490] sm:$0xff] %v1033
  %1318 = vst [vmem:[%s4 + $0x498] sm:$0xff] %v1035
  %1319 = vst [vmem:[%s4 + $0x4a0] sm:$0xff] %v684
  %1320 = vst [vmem:[%s4 + $0x4a8] sm:$0xff] %v686
  %1321 = vst [vmem:[%s4 + $0x4b0] sm:$0xff] %v1037
  %1322 = vst [vmem:[%s4 + $0x4b8] sm:$0xff] %v1039
  %1323 = vst [vmem:[%s4 + $0x4c0] sm:$0xff] %v690
  %1324 = vst [vmem:[%s4 + $0x4c8] sm:$0xff] %v692
  %1325 = vst [vmem:[%s4 + $0x4d0] sm:$0xff] %v1043
  %1326 = vst [vmem:[%s4 + $0x4d8] sm:$0xff] %v1045
  %1327 = vst [vmem:[%s4 + $0x4e0] sm:$0xff] %v694
  %1328 = vst [vmem:[%s4 + $0x4e8] sm:$0xff] %v696
  %1329 = vst [vmem:[%s4 + $0x4f0] sm:$0xff] %v1047
  %1330 = vst [vmem:[%s4 + $0x4f8] sm:$0xff] %v1049
  %1331 = vst [vmem:[%s4 + $0x500] sm:$0xff] %v700
  %1332 = vst [vmem:[%s4 + $0x508] sm:$0xff] %v702
  %1333 = vst [vmem:[%s4 + $0x510] sm:$0xff] %v1053
  %1334 = vst [vmem:[%s4 + $0x518] sm:$0xff] %v1055
  %1335 = vst [vmem:[%s4 + $0x520] sm:$0xff] %v704
  %1336 = vst [vmem:[%s4 + $0x528] sm:$0xff] %v706
  %1337 = vst [vmem:[%s4 + $0x530] sm:$0xff] %v1057
  %1338 = vst [vmem:[%s4 + $0x538] sm:$0xff] %v1059
  %1339 = vst [vmem:[%s4 + $0x540] sm:$0xff] %v710
  %1340 = vst [vmem:[%s4 + $0x548] sm:$0xff] %v712
  %1341 = vst [vmem:[%s4 + $0x550] sm:$0xff] %v1063
  %1342 = vst [vmem:[%s4 + $0x558] sm:$0xff] %v1065
  %1343 = vst [vmem:[%s4 + $0x560] sm:$0xff] %v714
  %1344 = vst [vmem:[%s4 + $0x568] sm:$0xff] %v716
  %1345 = vst [vmem:[%s4 + $0x570] sm:$0xff] %v1067
  %1346 = vst [vmem:[%s4 + $0x578] sm:$0xff] %v1069
  %1347 = vst [vmem:[%s4 + $0x580] sm:$0xff] %v720
  %1348 = vst [vmem:[%s4 + $0x588] sm:$0xff] %v722
  %1349 = vst [vmem:[%s4 + $0x590] sm:$0xff] %v1073
  %1350 = vst [vmem:[%s4 + $0x598] sm:$0xff] %v1075
  %1351 = vst [vmem:[%s4 + $0x5a0] sm:$0xff] %v724
  %1352 = vst [vmem:[%s4 + $0x5a8] sm:$0xff] %v726
  %1353 = vst [vmem:[%s4 + $0x5b0] sm:$0xff] %v1077
  %1354 = vst [vmem:[%s4 + $0x5b8] sm:$0xff] %v1079
  %1355 = vst [vmem:[%s4 + $0x5c0] sm:$0xff] %v730
  %1356 = vst [vmem:[%s4 + $0x5c8] sm:$0xff] %v732
  %1357 = vst [vmem:[%s4 + $0x5d0] sm:$0xff] %v1083
  %1358 = vst [vmem:[%s4 + $0x5d8] sm:$0xff] %v1085
  %1359 = vst [vmem:[%s4 + $0x5e0] sm:$0xff] %v734
  %1360 = vst [vmem:[%s4 + $0x5e8] sm:$0xff] %v736
  %1361 = vst [vmem:[%s4 + $0x5f0] sm:$0xff] %v1087
  %1362 = vst [vmem:[%s4 + $0x5f8] sm:$0xff] %v1089
  %1363 = vst [vmem:[%s4 + $0x600] sm:$0xff] %v740
  %1364 = vst [vmem:[%s4 + $0x608] sm:$0xff] %v742
  %1365 = vst [vmem:[%s4 + $0x610] sm:$0xff] %v1093
  %1366 = vst [vmem:[%s4 + $0x618] sm:$0xff] %v1095
  %1367 = vst [vmem:[%s4 + $0x620] sm:$0xff] %v744
  %1368 = vst [vmem:[%s4 + $0x628] sm:$0xff] %v746
  %1369 = vst [vmem:[%s4 + $0x630] sm:$0xff] %v1097
  %1370 = vst [vmem:[%s4 + $0x638] sm:$0xff] %v1099
  %1371 = vst [vmem:[%s4 + $0x640] sm:$0xff] %v750
  %1372 = vst [vmem:[%s4 + $0x648] sm:$0xff] %v752
  %1373 = vst [vmem:[%s4 + $0x650] sm:$0xff] %v1103
  %1374 = vst [vmem:[%s4 + $0x658] sm:$0xff] %v1105
  %1375 = vst [vmem:[%s4 + $0x660] sm:$0xff] %v754
  %1376 = vst [vmem:[%s4 + $0x668] sm:$0xff] %v756
  %1377 = vst [vmem:[%s4 + $0x670] sm:$0xff] %v1107
  %1378 = vst [vmem:[%s4 + $0x678] sm:$0xff] %v1109
  %1379 = vst [vmem:[%s4 + $0x680] sm:$0xff] %v760
  %1380 = vst [vmem:[%s4 + $0x688] sm:$0xff] %v762
  %1381 = vst [vmem:[%s4 + $0x690] sm:$0xff] %v1113
  %1382 = vst [vmem:[%s4 + $0x698] sm:$0xff] %v1115
  %1383 = vst [vmem:[%s4 + $0x6a0] sm:$0xff] %v764
  %1384 = vst [vmem:[%s4 + $0x6a8] sm:$0xff] %v766
  %1385 = vst [vmem:[%s4 + $0x6b0] sm:$0xff] %v1117
  %1386 = vst [vmem:[%s4 + $0x6b8] sm:$0xff] %v1119
  %1387 = vst [vmem:[%s4 + $0x6c0] sm:$0xff] %v770
  %1388 = vst [vmem:[%s4 + $0x6c8] sm:$0xff] %v772
  %1389 = vst [vmem:[%s4 + $0x6d0] sm:$0xff] %v1123
  %1390 = vst [vmem:[%s4 + $0x6d8] sm:$0xff] %v1125
  %1391 = vst [vmem:[%s4 + $0x6e0] sm:$0xff] %v774
  %1392 = vst [vmem:[%s4 + $0x6e8] sm:$0xff] %v776
  %1393 = vst [vmem:[%s4 + $0x6f0] sm:$0xff] %v1127
  %1394 = vst [vmem:[%s4 + $0x6f8] sm:$0xff] %v1129
  %1395 = vst [vmem:[%s4 + $0x700] sm:$0xff] %v780
  %1396 = vst [vmem:[%s4 + $0x708] sm:$0xff] %v782
  %1397 = vst [vmem:[%s4 + $0x710] sm:$0xff] %v1133
  %1398 = vst [vmem:[%s4 + $0x718] sm:$0xff] %v1135
  %1399 = vst [vmem:[%s4 + $0x720] sm:$0xff] %v784
  %1400 = vst [vmem:[%s4 + $0x728] sm:$0xff] %v786
  %1401 = vst [vmem:[%s4 + $0x730] sm:$0xff] %v1137
  %1402 = vst [vmem:[%s4 + $0x738] sm:$0xff] %v1139
  %1403 = vst [vmem:[%s4 + $0x740] sm:$0xff] %v790
  %1404 = vst [vmem:[%s4 + $0x748] sm:$0xff] %v792
  %1405 = vst [vmem:[%s4 + $0x750] sm:$0xff] %v1143
  %1406 = vst [vmem:[%s4 + $0x758] sm:$0xff] %v1145
  %1407 = vst [vmem:[%s4 + $0x760] sm:$0xff] %v794
  %1408 = vst [vmem:[%s4 + $0x768] sm:$0xff] %v796
  %1409 = vst [vmem:[%s4 + $0x770] sm:$0xff] %v1147
  %1410 = vst [vmem:[%s4 + $0x778] sm:$0xff] %v1149
  %1411 = vst [vmem:[%s4 + $0x780] sm:$0xff] %v800
  %1412 = vst [vmem:[%s4 + $0x788] sm:$0xff] %v802
  %1413 = vst [vmem:[%s4 + $0x790] sm:$0xff] %v1153
  %1414 = vst [vmem:[%s4 + $0x798] sm:$0xff] %v1155
  %1415 = vst [vmem:[%s4 + $0x7a0] sm:$0xff] %v804
  %1416 = vst [vmem:[%s4 + $0x7a8] sm:$0xff] %v806
  %1417 = vst [vmem:[%s4 + $0x7b0] sm:$0xff] %v1157
  %1418 = vst [vmem:[%s4 + $0x7b8] sm:$0xff] %v1159
  %1419 = vst [vmem:[%s4 + $0x7c0] sm:$0xff] %v810
  %1420 = vst [vmem:[%s4 + $0x7c8] sm:$0xff] %v812
  %1421 = vst [vmem:[%s4 + $0x7d0] sm:$0xff] %v1163
  %1422 = vst [vmem:[%s4 + $0x7d8] sm:$0xff] %v1165
  %1423 = vst [vmem:[%s4 + $0x7e0] sm:$0xff] %v814
  %1424 = vst [vmem:[%s4 + $0x7e8] sm:$0xff] %v816
  %1425 = vst [vmem:[%s4 + $0x7f0] sm:$0xff] %v1167
  %1426 = vst [vmem:[%s4 + $0x7f8] sm:$0xff] %v1169
  // Predicated region
  $region18: #{forward.9} parent=0 // pred_check
    _
  $region19: #{forward.9} parent=0 // pred_check_branch
    %1428 = sbr.rel (0) target = $region21
  $region20: #{forward.9} parent=0 // pred_region
    _
  $region21: #{forward.9} parent=0 // pred_fallthru
    _
  // Predicated region
  $region22: #{forward.9} parent=0 // pred_check
    _
  $region23: #{forward.9} parent=0 // pred_check_branch
    %1430 = sbr.rel (0) target = $region25
  $region24: #{forward.9} parent=0 // pred_region
    _
  $region25: #{forward.9} parent=0 // pred_fallthru
    _

// kernel: forward.10
$region0: #{forward.10}
  #allocation0 [shape = 'u32[]', space=smem, size = 0x4, offset = 0x4, fixed_abs, tag = 'smem constant byte address 0x4 - core index']
  #allocation1 [shape = 'u32[144,128]{1,0:T(1,128)}', space=vmem, size = 0x12000, scoped, tag = 'internal scratch']
  %s0 = inlined_call_operand.vmem [shape: f32[2048,32], index: 0, kind: input, shape index: {}]
  %s1 = inlined_call_operand.vmem [shape: f32[1,32], index: 1, kind: input, shape index: {}]
  %s2 = inlined_call_operand.vmem [shape: f32[1,32], index: 2, kind: input, shape index: {}]
  %s3 = inlined_call_operand.vmem [shape: bf16[32,128], index: 3, kind: input, shape index: {}]
  %s4 = inlined_call_operand.vmem [shape: f32[2048,128], index: 4, kind: output, shape index: {}]
  %s5 = sld [smem:[#allocation0]]
  $region49: #{forward.10} parent=0
    _
  %s7 = ssub.s32 1, %s5
  %s8 = scalar_select 0, %s7, %s5
  loop: start=0, step=1, limit=6
  $region2: #{forward.10} parent=0 // loop_pre_header
    _
  $region3: #{forward.10} parent=0 // loop_header
    %s10 = sphi 0, %s14
    %p11 = scmp.ge.s32.totalorder %s10, 6
    %s20 = sphi 0, %s22
    %s23 = sphi 0, %s20
    %s24 = sphi 0, %s23
    %s40 = sphi 0, %s24
    %s44 = sphi 0, %s44
    %s46 = sphi 0, %s44
    %s47 = sphi 0, %s46
    %s61 = sphi 0, %s47
    %s65 = sphi 0, %s65
    %s67 = sphi 0, %s65
    %s68 = sphi 0, %s67
    %s82 = sphi 0, %s68
    %s86 = sphi 0, %s86
    %s88 = sphi 0, %s86
    %s89 = sphi 0, %s88
    %s103 = sphi 0, %s89
    %s109 = sphi 0, %s111
    %s112 = sphi 0, %s109
    %s113 = sphi 0, %s112
    %s129 = sphi 0, %s113
  $region4: #{forward.10} parent=0 // loop_header_branch
    %13 = sbr.rel (%p11) target = $region8
  $region5: #{forward.10} parent=0 // loop_body
    %s15 = ssub.s32 %s10, 1
    %s16 = ssub.s32 %s10, 2
    %s17 = sadd.s32 %s10, 1
    %s18 = ssub.s32 %s10, %s17
    %p19 = scmp.eq.s32.totalorder %s18, 0
    %s21 = sadd.s32 %s20, 1
    %s22 = scalar_select %p19, %s20, %s21
    %p25 = pneg %p19
    %p26 = scmp.eq.s32.totalorder %s10, 3
    %p27 = por %p25, %p26
    %p28 = scmp.ne.s32.totalorder %s20, %s23
    %p29 = scmp.eq.s32.totalorder %s10, 0
    %p30 = por %p28, %p29
    %p31 = scmp.ne.s32.totalorder %s20, %s23
    %p32 = scmp.eq.s32.totalorder %s15, 3
    %p33 = por %p31, %p32
    %p34 = scmp.ne.s32.totalorder %s23, %s24
    %p35 = scmp.eq.s32.totalorder %s15, 0
    %p36 = por %p34, %p35
    %p37 = scmp.ne.s32.totalorder %s23, %s24
    %p38 = scmp.eq.s32.totalorder %s16, 3
    %p39 = por %p37, %p38
    %p41 = scmp.ne.s32.totalorder %s24, %s40
    %p42 = scmp.eq.s32.totalorder %s16, 0
    %p43 = por %p41, %p42
    %s45 = sadd.s32 %s44, 1
    %p48 = scmp.eq.s32.totalorder %s10, 3
    %p49 = scmp.ne.s32.totalorder %s44, %s46
    %p50 = scmp.eq.s32.totalorder %s10, 0
    %p51 = por %p49, %p50
    %p52 = scmp.ne.s32.totalorder %s44, %s46
    %p53 = scmp.eq.s32.totalorder %s15, 3
    %p54 = por %p52, %p53
    %p55 = scmp.ne.s32.totalorder %s46, %s47
    %p56 = scmp.eq.s32.totalorder %s15, 0
    %p57 = por %p55, %p56
    %p58 = scmp.ne.s32.totalorder %s46, %s47
    %p59 = scmp.eq.s32.totalorder %s16, 3
    %p60 = por %p58, %p59
    %p62 = scmp.ne.s32.totalorder %s47, %s61
    %p63 = scmp.eq.s32.totalorder %s16, 0
    %p64 = por %p62, %p63
    %s66 = sadd.s32 %s65, 1
    %p69 = scmp.eq.s32.totalorder %s10, 3
    %p70 = scmp.ne.s32.totalorder %s65, %s67
    %p71 = scmp.eq.s32.totalorder %s10, 0
    %p72 = por %p70, %p71
    %p73 = scmp.ne.s32.totalorder %s65, %s67
    %p74 = scmp.eq.s32.totalorder %s15, 3
    %p75 = por %p73, %p74
    %p76 = scmp.ne.s32.totalorder %s67, %s68
    %p77 = scmp.eq.s32.totalorder %s15, 0
    %p78 = por %p76, %p77
    %p79 = scmp.ne.s32.totalorder %s67, %s68
    %p80 = scmp.eq.s32.totalorder %s16, 3
    %p81 = por %p79, %p80
    %p83 = scmp.ne.s32.totalorder %s68, %s82
    %p84 = scmp.eq.s32.totalorder %s16, 0
    %p85 = por %p83, %p84
    %s87 = sadd.s32 %s86, 1
    %p90 = scmp.eq.s32.totalorder %s10, 3
    %p91 = scmp.ne.s32.totalorder %s86, %s88
    %p92 = scmp.eq.s32.totalorder %s10, 0
    %p93 = por %p91, %p92
    %p94 = scmp.ne.s32.totalorder %s86, %s88
    %p95 = scmp.eq.s32.totalorder %s15, 3
    %p96 = por %p94, %p95
    %p97 = scmp.ne.s32.totalorder %s88, %s89
    %p98 = scmp.eq.s32.totalorder %s15, 0
    %p99 = por %p97, %p98
    %p100 = scmp.ne.s32.totalorder %s88, %s89
    %p101 = scmp.eq.s32.totalorder %s16, 3
    %p102 = por %p100, %p101
    %p104 = scmp.ne.s32.totalorder %s89, %s103
    %p105 = scmp.eq.s32.totalorder %s16, 0
    %p106 = por %p104, %p105
    %s107 = ssub.s32 %s10, %s17
    %p108 = scmp.eq.s32.totalorder %s107, 0
    %s110 = sadd.s32 %s109, 1
    %s111 = scalar_select %p108, %s109, %s110
    %p114 = pneg %p108
    %p115 = scmp.eq.s32.totalorder %s10, 3
    %p116 = por %p114, %p115
    %p117 = scmp.ne.s32.totalorder %s109, %s112
    %p118 = scmp.eq.s32.totalorder %s10, 0
    %p119 = por %p117, %p118
    %p120 = scmp.ne.s32.totalorder %s109, %s112
    %p121 = scmp.eq.s32.totalorder %s15, 3
    %p122 = por %p120, %p121
    %p123 = scmp.ne.s32.totalorder %s112, %s113
    %p124 = scmp.eq.s32.totalorder %s15, 0
    %p125 = por %p123, %p124
    %p126 = scmp.ne.s32.totalorder %s112, %s113
    %p127 = scmp.eq.s32.totalorder %s16, 3
    %p128 = por %p126, %p127
    %p130 = scmp.ne.s32.totalorder %s113, %s129
    %p131 = scmp.eq.s32.totalorder %s16, 0
    %p132 = por %p130, %p131
    %p133 = scmp.le.s32.totalorder 1, %s10
    %p134 = scmp.lt.s32.totalorder %s10, 5
    %p135 = pnand %p133, %p134
    %p136 = pneg %p135
    // Predicated region
    $region9: #{forward.10} parent=5 // pred_check
      _
    $region10: #{forward.10} parent=5 // pred_check_branch
      %138 = sbr.rel (%p135) target = $region12
    $region11: #{forward.10} parent=5 // pred_region
      %s139 = ssub.s32 %s10, 1
      // Predicated region
      $region13: #{forward.10} parent=11 // pred_check
        %p140 = pneg %p57
      $region14: #{forward.10} parent=11 // pred_check_branch
        %142 = sbr.rel (%p140) target = $region16
      $region15: #{forward.10} parent=11 // pred_region
        _
      $region16: #{forward.10} parent=11 // pred_fallthru
        _
      // Predicated region
      $region17: #{forward.10} parent=11 // pred_check
        %p143 = pneg %p78
      $region18: #{forward.10} parent=11 // pred_check_branch
        %145 = sbr.rel (%p143) target = $region20
      $region19: #{forward.10} parent=11 // pred_region
        _
      $region20: #{forward.10} parent=11 // pred_fallthru
        _
      // Predicated region
      $region21: #{forward.10} parent=11 // pred_check
        %p146 = pneg %p99
      $region22: #{forward.10} parent=11 // pred_check_branch
        %148 = sbr.rel (%p146) target = $region24
      $region23: #{forward.10} parent=11 // pred_region
        _
      $region24: #{forward.10} parent=11 // pred_fallthru
        _
    $region12: #{forward.10} parent=5 // pred_fallthru
      _
    %p149 = scmp.lt.s32.totalorder %s10, 4
    // Predicated region
    $region25: #{forward.10} parent=5 // pred_check
      %p150 = pneg %p149
    $region26: #{forward.10} parent=5 // pred_check_branch
      %152 = sbr.rel (%p150) target = $region28
    $region27: #{forward.10} parent=5 // pred_region
      // Predicated region
      $region29: #{forward.10} parent=27 // pred_check
        %p153 = pneg %p30
      $region30: #{forward.10} parent=27 // pred_check_branch
        %155 = sbr.rel (%p153) target = $region32
      $region31: #{forward.10} parent=27 // pred_region
        %s156 = smul.u32 64, %s10
        %p157 = scmp.lt.s32.totalorder %s156, 255
        %s158 = scalar_select %p157, %s156, 255
        %s159 = smul.addr %s158, 8
        %s160 = scalar_lea.vmem %s0, %s159
        %s161 = smul.u32 64, %s10
      $region32: #{forward.10} parent=27 // pred_fallthru
        _
    $region28: #{forward.10} parent=5 // pred_fallthru
      _
    %p162 = scmp.le.s32.totalorder 1, %s10
    %p163 = scmp.lt.s32.totalorder %s10, 5
    %p164 = pnand %p162, %p163
    %p165 = pneg %p164
    // Predicated region
    $region33: #{forward.10} parent=5 // pred_check
      _
    $region34: #{forward.10} parent=5 // pred_check_branch
      %167 = sbr.rel (%p164) target = $region36
    $region35: #{forward.10} parent=5 // pred_region
      %s168 = ssub.s32 %s10, 1
      %s169 = smul.u32 64, %s15
      %p170 = scmp.lt.s32.totalorder %s169, 255
      %s171 = scalar_select %p170, %s169, 255
      %s172 = smul.addr %s171, 8
      %s173 = scalar_lea.vmem %s0, %s172
      %p174 = pneg %p36
      %p175 = pneg %p33
      %p176 = pneg %p57
      %p177 = pneg %p54
      %p178 = pneg %p78
      %p179 = pneg %p75
      %p180 = pneg %p99
      %p181 = pneg %p96
      %p182 = pneg %p125
      %p183 = pneg %p122
      %s184 = smul.u32 64, %s15
      %p185 = scmp.lt.s32.totalorder %s184, 255
      %s186 = scalar_select %p185, %s184, 255
      %s187 = smul.addr %s186, 8
      %s188 = scalar_lea.vmem %s4, %s187
      %s189 = smul.u32 64, %s15
      %p190 = scmp.lt.s32.totalorder %s189, 255
      %s191 = scalar_select %p190, %s189, 255
      %s192 = smul.addr %s191, 8
      %s193 = scalar_lea.vmem %s0, %s192
      %s194 = smul.u32 64, %s15
      %s195 = smul.u32 64, %s15
      %p196 = scmp.lt.s32.totalorder %s195, 255
      %s197 = scalar_select %p196, %s195, 255
      %s198 = smul.addr %s197, 8
      %s199 = scalar_lea.vmem %s4, %s198
      %s200 = smul.u32 64, %s15
      %v202 = vld [vmem:[%s193] sm:$0xff]
      %v203 = vld [vmem:[%s193 + $0x8] sm:$0xff]
      %v204 = vld [vmem:[%s193 + $0x10] sm:$0xff]
      %v205 = vld [vmem:[%s193 + $0x18] sm:$0xff]
      %v206 = vld [vmem:[%s193 + $0x20] sm:$0xff]
      %v207 = vld [vmem:[%s193 + $0x28] sm:$0xff]
      %v208 = vld [vmem:[%s193 + $0x30] sm:$0xff]
      %v209 = vld [vmem:[%s193 + $0x38] sm:$0xff]
      %v210 = vld [vmem:[%s193 + $0x40] sm:$0xff]
      %v211 = vld [vmem:[%s193 + $0x48] sm:$0xff]
      %v212 = vld [vmem:[%s193 + $0x50] sm:$0xff]
      %v213 = vld [vmem:[%s193 + $0x58] sm:$0xff]
      %v214 = vld [vmem:[%s193 + $0x60] sm:$0xff]
      %v215 = vld [vmem:[%s193 + $0x68] sm:$0xff]
      %v216 = vld [vmem:[%s193 + $0x70] sm:$0xff]
      %v217 = vld [vmem:[%s193 + $0x78] sm:$0xff]
      %v218 = vld [vmem:[%s193 + $0x80] sm:$0xff]
      %v219 = vld [vmem:[%s193 + $0x88] sm:$0xff]
      %v220 = vld [vmem:[%s193 + $0x90] sm:$0xff]
      %v221 = vld [vmem:[%s193 + $0x98] sm:$0xff]
      %v222 = vld [vmem:[%s193 + $0xa0] sm:$0xff]
      %v223 = vld [vmem:[%s193 + $0xa8] sm:$0xff]
      %v224 = vld [vmem:[%s193 + $0xb0] sm:$0xff]
      %v225 = vld [vmem:[%s193 + $0xb8] sm:$0xff]
      %v226 = vld [vmem:[%s193 + $0xc0] sm:$0xff]
      %v227 = vld [vmem:[%s193 + $0xc8] sm:$0xff]
      %v228 = vld [vmem:[%s193 + $0xd0] sm:$0xff]
      %v229 = vld [vmem:[%s193 + $0xd8] sm:$0xff]
      %v230 = vld [vmem:[%s193 + $0xe0] sm:$0xff]
      %v231 = vld [vmem:[%s193 + $0xe8] sm:$0xff]
      %v232 = vld [vmem:[%s193 + $0xf0] sm:$0xff]
      %v233 = vld [vmem:[%s193 + $0xf8] sm:$0xff]
      %v234 = vld [vmem:[%s193 + $0x100] sm:$0xff]
      %v235 = vld [vmem:[%s193 + $0x108] sm:$0xff]
      %v236 = vld [vmem:[%s193 + $0x110] sm:$0xff]
      %v237 = vld [vmem:[%s193 + $0x118] sm:$0xff]
      %v238 = vld [vmem:[%s193 + $0x120] sm:$0xff]
      %v239 = vld [vmem:[%s193 + $0x128] sm:$0xff]
      %v240 = vld [vmem:[%s193 + $0x130] sm:$0xff]
      %v241 = vld [vmem:[%s193 + $0x138] sm:$0xff]
      %v242 = vld [vmem:[%s193 + $0x140] sm:$0xff]
      %v243 = vld [vmem:[%s193 + $0x148] sm:$0xff]
      %v244 = vld [vmem:[%s193 + $0x150] sm:$0xff]
      %v245 = vld [vmem:[%s193 + $0x158] sm:$0xff]
      %v246 = vld [vmem:[%s193 + $0x160] sm:$0xff]
      %v247 = vld [vmem:[%s193 + $0x168] sm:$0xff]
      %v248 = vld [vmem:[%s193 + $0x170] sm:$0xff]
      %v249 = vld [vmem:[%s193 + $0x178] sm:$0xff]
      %v250 = vld [vmem:[%s193 + $0x180] sm:$0xff]
      %v251 = vld [vmem:[%s193 + $0x188] sm:$0xff]
      %v252 = vld [vmem:[%s193 + $0x190] sm:$0xff]
      %v253 = vld [vmem:[%s193 + $0x198] sm:$0xff]
      %v254 = vld [vmem:[%s193 + $0x1a0] sm:$0xff]
      %v255 = vld [vmem:[%s193 + $0x1a8] sm:$0xff]
      %v256 = vld [vmem:[%s193 + $0x1b0] sm:$0xff]
      %v257 = vld [vmem:[%s193 + $0x1b8] sm:$0xff]
      %v258 = vld [vmem:[%s193 + $0x1c0] sm:$0xff]
      %v259 = vld [vmem:[%s193 + $0x1c8] sm:$0xff]
      %v260 = vld [vmem:[%s193 + $0x1d0] sm:$0xff]
      %v261 = vld [vmem:[%s193 + $0x1d8] sm:$0xff]
      %v262 = vld [vmem:[%s193 + $0x1e0] sm:$0xff]
      %v263 = vld [vmem:[%s193 + $0x1e8] sm:$0xff]
      %v264 = vld [vmem:[%s193 + $0x1f0] sm:$0xff]
      %v265 = vld [vmem:[%s193 + $0x1f8] sm:$0xff]
      %v266 = vld [vmem:[%s1] sm:$0x1]
      %v268 = vlaneseq
      %v269 = vshrl.u32 %v268, 7
      %v270 = vsub.s32 0, %v269
      %v271 = vrot.slane %v266, %v270
      %v273 = vmul.f32 %v202, %v271
      %v274 = vmul.f32 %v203, %v271
      %v275 = vmul.f32 %v204, %v271
      %v276 = vmul.f32 %v205, %v271
      %v277 = vmul.f32 %v206, %v271
      %v278 = vmul.f32 %v207, %v271
      %v279 = vmul.f32 %v208, %v271
      %v280 = vmul.f32 %v209, %v271
      %v281 = vmul.f32 %v210, %v271
      %v282 = vmul.f32 %v211, %v271
      %v283 = vmul.f32 %v212, %v271
      %v284 = vmul.f32 %v213, %v271
      %v285 = vmul.f32 %v214, %v271
      %v286 = vmul.f32 %v215, %v271
      %v287 = vmul.f32 %v216, %v271
      %v288 = vmul.f32 %v217, %v271
      %v289 = vmul.f32 %v218, %v271
      %v290 = vmul.f32 %v219, %v271
      %v291 = vmul.f32 %v220, %v271
      %v292 = vmul.f32 %v221, %v271
      %v293 = vmul.f32 %v222, %v271
      %v294 = vmul.f32 %v223, %v271
      %v295 = vmul.f32 %v224, %v271
      %v296 = vmul.f32 %v225, %v271
      %v297 = vmul.f32 %v226, %v271
      %v298 = vmul.f32 %v227, %v271
      %v299 = vmul.f32 %v228, %v271
      %v300 = vmul.f32 %v229, %v271
      %v301 = vmul.f32 %v230, %v271
      %v302 = vmul.f32 %v231, %v271
      %v303 = vmul.f32 %v232, %v271
      %v304 = vmul.f32 %v233, %v271
      %v305 = vmul.f32 %v234, %v271
      %v306 = vmul.f32 %v235, %v271
      %v307 = vmul.f32 %v236, %v271
      %v308 = vmul.f32 %v237, %v271
      %v309 = vmul.f32 %v238, %v271
      %v310 = vmul.f32 %v239, %v271
      %v311 = vmul.f32 %v240, %v271
      %v312 = vmul.f32 %v241, %v271
      %v313 = vmul.f32 %v242, %v271
      %v314 = vmul.f32 %v243, %v271
      %v315 = vmul.f32 %v244, %v271
      %v316 = vmul.f32 %v245, %v271
      %v317 = vmul.f32 %v246, %v271
      %v318 = vmul.f32 %v247, %v271
      %v319 = vmul.f32 %v248, %v271
      %v320 = vmul.f32 %v249, %v271
      %v321 = vmul.f32 %v250, %v271
      %v322 = vmul.f32 %v251, %v271
      %v323 = vmul.f32 %v252, %v271
      %v324 = vmul.f32 %v253, %v271
      %v325 = vmul.f32 %v254, %v271
      %v326 = vmul.f32 %v255, %v271
      %v327 = vmul.f32 %v256, %v271
      %v328 = vmul.f32 %v257, %v271
      %v329 = vmul.f32 %v258, %v271
      %v330 = vmul.f32 %v259, %v271
      %v331 = vmul.f32 %v260, %v271
      %v332 = vmul.f32 %v261, %v271
      %v333 = vmul.f32 %v262, %v271
      %v334 = vmul.f32 %v263, %v271
      %v335 = vmul.f32 %v264, %v271
      %v336 = vmul.f32 %v265, %v271
      %v337 = vld [vmem:[%s2] sm:$0x1]
      %v339 = vlaneseq
      %v340 = vshrl.u32 %v339, 7
      %v341 = vsub.s32 0, %v340
      %v342 = vrot.slane %v337, %v341
      %v344 = vadd.f32 %v273, %v342
      %v345 = vadd.f32 %v274, %v342
      %v346 = vadd.f32 %v275, %v342
      %v347 = vadd.f32 %v276, %v342
      %v348 = vadd.f32 %v277, %v342
      %v349 = vadd.f32 %v278, %v342
      %v350 = vadd.f32 %v279, %v342
      %v351 = vadd.f32 %v280, %v342
      %v352 = vadd.f32 %v281, %v342
      %v353 = vadd.f32 %v282, %v342
      %v354 = vadd.f32 %v283, %v342
      %v355 = vadd.f32 %v284, %v342
      %v356 = vadd.f32 %v285, %v342
      %v357 = vadd.f32 %v286, %v342
      %v358 = vadd.f32 %v287, %v342
      %v359 = vadd.f32 %v288, %v342
      %v360 = vadd.f32 %v289, %v342
      %v361 = vadd.f32 %v290, %v342
      %v362 = vadd.f32 %v291, %v342
      %v363 = vadd.f32 %v292, %v342
      %v364 = vadd.f32 %v293, %v342
      %v365 = vadd.f32 %v294, %v342
      %v366 = vadd.f32 %v295, %v342
      %v367 = vadd.f32 %v296, %v342
      %v368 = vadd.f32 %v297, %v342
      %v369 = vadd.f32 %v298, %v342
      %v370 = vadd.f32 %v299, %v342
      %v371 = vadd.f32 %v300, %v342
      %v372 = vadd.f32 %v301, %v342
      %v373 = vadd.f32 %v302, %v342
      %v374 = vadd.f32 %v303, %v342
      %v375 = vadd.f32 %v304, %v342
      %v376 = vadd.f32 %v305, %v342
      %v377 = vadd.f32 %v306, %v342
      %v378 = vadd.f32 %v307, %v342
      %v379 = vadd.f32 %v308, %v342
      %v380 = vadd.f32 %v309, %v342
      %v381 = vadd.f32 %v310, %v342
      %v382 = vadd.f32 %v311, %v342
      %v383 = vadd.f32 %v312, %v342
      %v384 = vadd.f32 %v313, %v342
      %v385 = vadd.f32 %v314, %v342
      %v386 = vadd.f32 %v315, %v342
      %v387 = vadd.f32 %v316, %v342
      %v388 = vadd.f32 %v317, %v342
      %v389 = vadd.f32 %v318, %v342
      %v390 = vadd.f32 %v319, %v342
      %v391 = vadd.f32 %v320, %v342
      %v392 = vadd.f32 %v321, %v342
      %v393 = vadd.f32 %v322, %v342
      %v394 = vadd.f32 %v323, %v342
      %v395 = vadd.f32 %v324, %v342
      %v396 = vadd.f32 %v325, %v342
      %v397 = vadd.f32 %v326, %v342
      %v398 = vadd.f32 %v327, %v342
      %v399 = vadd.f32 %v328, %v342
      %v400 = vadd.f32 %v329, %v342
      %v401 = vadd.f32 %v330, %v342
      %v402 = vadd.f32 %v331, %v342
      %v403 = vadd.f32 %v332, %v342
      %v404 = vadd.f32 %v333, %v342
      %v405 = vadd.f32 %v334, %v342
      %v406 = vadd.f32 %v335, %v342
      %v407 = vadd.f32 %v336, %v342
      %v408 = vmax.f32 %v344, 0.0
      %v409 = vmax.f32 %v345, 0.0
      %v410 = vmax.f32 %v346, 0.0
      %v411 = vmax.f32 %v347, 0.0
      %v412 = vmax.f32 %v348, 0.0
      %v413 = vmax.f32 %v349, 0.0
      %v414 = vmax.f32 %v350, 0.0
      %v415 = vmax.f32 %v351, 0.0
      %v416 = vmax.f32 %v352, 0.0
      %v417 = vmax.f32 %v353, 0.0
      %v418 = vmax.f32 %v354, 0.0
      %v419 = vmax.f32 %v355, 0.0
      %v420 = vmax.f32 %v356, 0.0
      %v421 = vmax.f32 %v357, 0.0
      %v422 = vmax.f32 %v358, 0.0
      %v423 = vmax.f32 %v359, 0.0
      %v424 = vmax.f32 %v360, 0.0
      %v425 = vmax.f32 %v361, 0.0
      %v426 = vmax.f32 %v362, 0.0
      %v427 = vmax.f32 %v363, 0.0
      %v428 = vmax.f32 %v364, 0.0
      %v429 = vmax.f32 %v365, 0.0
      %v430 = vmax.f32 %v366, 0.0
      %v431 = vmax.f32 %v367, 0.0
      %v432 = vmax.f32 %v368, 0.0
      %v433 = vmax.f32 %v369, 0.0
      %v434 = vmax.f32 %v370, 0.0
      %v435 = vmax.f32 %v371, 0.0
      %v436 = vmax.f32 %v372, 0.0
      %v437 = vmax.f32 %v373, 0.0
      %v438 = vmax.f32 %v374, 0.0
      %v439 = vmax.f32 %v375, 0.0
      %v440 = vmax.f32 %v376, 0.0
      %v441 = vmax.f32 %v377, 0.0
      %v442 = vmax.f32 %v378, 0.0
      %v443 = vmax.f32 %v379, 0.0
      %v444 = vmax.f32 %v380, 0.0
      %v445 = vmax.f32 %v381, 0.0
      %v446 = vmax.f32 %v382, 0.0
      %v447 = vmax.f32 %v383, 0.0
      %v448 = vmax.f32 %v384, 0.0
      %v449 = vmax.f32 %v385, 0.0
      %v450 = vmax.f32 %v386, 0.0
      %v451 = vmax.f32 %v387, 0.0
      %v452 = vmax.f32 %v388, 0.0
      %v453 = vmax.f32 %v389, 0.0
      %v454 = vmax.f32 %v390, 0.0
      %v455 = vmax.f32 %v391, 0.0
      %v456 = vmax.f32 %v392, 0.0
      %v457 = vmax.f32 %v393, 0.0
      %v458 = vmax.f32 %v394, 0.0
      %v459 = vmax.f32 %v395, 0.0
      %v460 = vmax.f32 %v396, 0.0
      %v461 = vmax.f32 %v397, 0.0
      %v462 = vmax.f32 %v398, 0.0
      %v463 = vmax.f32 %v399, 0.0
      %v464 = vmax.f32 %v400, 0.0
      %v465 = vmax.f32 %v401, 0.0
      %v466 = vmax.f32 %v402, 0.0
      %v467 = vmax.f32 %v403, 0.0
      %v468 = vmax.f32 %v404, 0.0
      %v469 = vmax.f32 %v405, 0.0
      %v470 = vmax.f32 %v406, 0.0
      %v471 = vmax.f32 %v407, 0.0
      %v472 = vpack.c.bf16 %v409, %v408
      %v473 = vpack.c.bf16 %v411, %v410
      %v474 = vpack.c.bf16 %v413, %v412
      %v475 = vpack.c.bf16 %v415, %v414
      %v476 = vpack.c.bf16 %v417, %v416
      %v477 = vpack.c.bf16 %v419, %v418
      %v478 = vpack.c.bf16 %v421, %v420
      %v479 = vpack.c.bf16 %v423, %v422
      %v480 = vpack.c.bf16 %v425, %v424
      %v481 = vpack.c.bf16 %v427, %v426
      %v482 = vpack.c.bf16 %v429, %v428
      %v483 = vpack.c.bf16 %v431, %v430
      %v484 = vpack.c.bf16 %v433, %v432
      %v485 = vpack.c.bf16 %v435, %v434
      %v486 = vpack.c.bf16 %v437, %v436
      %v487 = vpack.c.bf16 %v439, %v438
      %v488 = vpack.c.bf16 %v441, %v440
      %v489 = vpack.c.bf16 %v443, %v442
      %v490 = vpack.c.bf16 %v445, %v444
      %v491 = vpack.c.bf16 %v447, %v446
      %v492 = vpack.c.bf16 %v449, %v448
      %v493 = vpack.c.bf16 %v451, %v450
      %v494 = vpack.c.bf16 %v453, %v452
      %v495 = vpack.c.bf16 %v455, %v454
      %v496 = vpack.c.bf16 %v457, %v456
      %v497 = vpack.c.bf16 %v459, %v458
      %v498 = vpack.c.bf16 %v461, %v460
      %v499 = vpack.c.bf16 %v463, %v462
      %v500 = vpack.c.bf16 %v465, %v464
      %v501 = vpack.c.bf16 %v467, %v466
      %v502 = vpack.c.bf16 %v469, %v468
      %v503 = vpack.c.bf16 %v471, %v470
      %v504 = vld [vmem:[%s3] sm:$0xf]
      %v505 = vld [vmem:[%s3 + $0x4] sm:$0xf]
      %v506 = vld [vmem:[%s3 + $0x8] sm:$0xf]
      %v507 = vld [vmem:[%s3 + $0xc] sm:$0xf]
      %v512 = vunpack.c.l.b16 %v504
      %v513 = vunpack.c.l.b16 %v505
      %v514 = vunpack.c.l.b16 %v506
      %v515 = vunpack.c.l.b16 %v507
      %v516 = vpack.c.b16 %v513, %v512
      %v517 = vpack.c.b16 %v515, %v514
      %vm520 = vcmask 261120
      %v522 = vsel %vm520, %v472, 0
      %v525 = vsel %vm520, %v473, 0
      %v528 = vsel %vm520, %v474, 0
      %v531 = vsel %vm520, %v475, 0
      %v534 = vsel %vm520, %v476, 0
      %v537 = vsel %vm520, %v477, 0
      %v540 = vsel %vm520, %v478, 0
      %v543 = vsel %vm520, %v479, 0
      %v546 = vsel %vm520, %v480, 0
      %v549 = vsel %vm520, %v481, 0
      %v552 = vsel %vm520, %v482, 0
      %v555 = vsel %vm520, %v483, 0
      %v558 = vsel %vm520, %v484, 0
      %v561 = vsel %vm520, %v485, 0
      %v564 = vsel %vm520, %v486, 0
      %v567 = vsel %vm520, %v487, 0
      %v570 = vsel %vm520, %v488, 0
      %v573 = vsel %vm520, %v489, 0
      %v576 = vsel %vm520, %v490, 0
      %v579 = vsel %vm520, %v491, 0
      %v582 = vsel %vm520, %v492, 0
      %v585 = vsel %vm520, %v493, 0
      %v588 = vsel %vm520, %v494, 0
      %v591 = vsel %vm520, %v495, 0
      %v594 = vsel %vm520, %v496, 0
      %v597 = vsel %vm520, %v497, 0
      %v600 = vsel %vm520, %v498, 0
      %v603 = vsel %vm520, %v499, 0
      %v606 = vsel %vm520, %v500, 0
      %v609 = vsel %vm520, %v501, 0
      %v612 = vsel %vm520, %v502, 0
      %v615 = vsel %vm520, %v503, 0
      %617 = vmatprep.subr.bf16.mxu0 0
      %618 = vmatpush1.bf16.msra.mxu0 %v516
      %619 = vmatprep.subr.bf16.mxu0 0
      %620 = vmatpush1.bf16.msra.mxu0 %v517
      %621 = vmatprep.subr.bf16.mxu0 0
      %622 = vmatpush1.bf16.msra.mxu0 0
      %623 = vmatprep.subr.bf16.mxu0 0
      %624 = vmatpush1.bf16.msra.mxu0 0
      %625 = vmatprep.subr.bf16.mxu0 0
      %626 = vmatpush1.bf16.msra.mxu0 0
      %627 = vmatprep.subr.bf16.mxu0 0
      %628 = vmatpush1.bf16.msra.mxu0 0
      %629 = vmatprep.subr.bf16.mxu0 0
      %630 = vmatpush1.bf16.msra.mxu0 0
      %631 = vmatprep.subr.bf16.mxu0 0
      %632 = vmatpush1.bf16.msra.mxu0 0
      %633 = vmatprep.subr.bf16.mxu0 0
      %634 = vmatpush1.bf16.msra.mxu0 0
      %635 = vmatprep.subr.bf16.mxu0 0
      %636 = vmatpush1.bf16.msra.mxu0 0
      %637 = vmatprep.subr.bf16.mxu0 0
      %638 = vmatpush1.bf16.msra.mxu0 0
      %639 = vmatprep.subr.bf16.mxu0 0
      %640 = vmatpush1.bf16.msra.mxu0 0
      %641 = vmatprep.subr.bf16.mxu0 0
      %642 = vmatpush1.bf16.msra.mxu0 0
      %643 = vmatprep.subr.bf16.mxu0 0
      %644 = vmatpush1.bf16.msra.mxu0 0
      %645 = vmatprep.subr.bf16.mxu0 0
      %646 = vmatpush1.bf16.msra.mxu0 0
      %647 = vmatprep.subr.bf16.mxu0 0
      %648 = vmatpush1.bf16.msra.mxu0 0
      %649 = vmatprep.mubr.bf16.mxu0 0
      %650 = vmatmul.mubr.bf16.gmra.mrb[0].mxu0 %v522
      %v651 = vpop.f32.mrb[0].mxu0
      %v652 = vadd.f32 0.0, %v651
      %v653 = vpop.f32.mrb[0].mxu0
      %v654 = vpop.f32.mrb[0].mxu0
      %v655 = vadd.f32 0.0, %v654
      %v656 = vpop.f32.mrb[0].mxu0
      %657 = vmatprep.mubr.bf16.mxu0 0
      %658 = vmatmul.mubr.bf16.gmra.mrb[0].mxu0 %v525
      %v659 = vpop.f32.mrb[0].mxu0
      %v660 = vadd.f32 0.0, %v659
      %v661 = vpop.f32.mrb[0].mxu0
      %v662 = vpop.f32.mrb[0].mxu0
      %v663 = vadd.f32 0.0, %v662
      %v664 = vpop.f32.mrb[0].mxu0
      %665 = vmatprep.mubr.bf16.mxu0 0
      %666 = vmatmul.mubr.bf16.gmra.mrb[0].mxu0 %v528
      %v667 = vpop.f32.mrb[0].mxu0
      %v668 = vadd.f32 0.0, %v667
      %v669 = vpop.f32.mrb[0].mxu0
      %v670 = vpop.f32.mrb[0].mxu0
      %v671 = vadd.f32 0.0, %v670
      %v672 = vpop.f32.mrb[0].mxu0
      %673 = vmatprep.mubr.bf16.mxu0 0
      %674 = vmatmul.mubr.bf16.gmra.mrb[0].mxu0 %v531
      %v675 = vpop.f32.mrb[0].mxu0
      %v676 = vadd.f32 0.0, %v675
      %v677 = vpop.f32.mrb[0].mxu0
      %v678 = vpop.f32.mrb[0].mxu0
      %v679 = vadd.f32 0.0, %v678
      %v680 = vpop.f32.mrb[0].mxu0
      %681 = vmatprep.mubr.bf16.mxu0 0
      %682 = vmatmul.mubr.bf16.gmra.mrb[0].mxu0 %v534
      %v683 = vpop.f32.mrb[0].mxu0
      %v684 = vadd.f32 0.0, %v683
      %v685 = vpop.f32.mrb[0].mxu0
      %v686 = vpop.f32.mrb[0].mxu0
      %v687 = vadd.f32 0.0, %v686
      %v688 = vpop.f32.mrb[0].mxu0
      %689 = vmatprep.mubr.bf16.mxu0 0
      %690 = vmatmul.mubr.bf16.gmra.mrb[0].mxu0 %v537
      %v691 = vpop.f32.mrb[0].mxu0
      %v692 = vadd.f32 0.0, %v691
      %v693 = vpop.f32.mrb[0].mxu0
      %v694 = vpop.f32.mrb[0].mxu0
      %v695 = vadd.f32 0.0, %v694
      %v696 = vpop.f32.mrb[0].mxu0
      %697 = vmatprep.mubr.bf16.mxu0 0
      %698 = vmatmul.mubr.bf16.gmra.mrb[0].mxu0 %v540
      %v699 = vpop.f32.mrb[0].mxu0
      %v700 = vadd.f32 0.0, %v699
      %v701 = vpop.f32.mrb[0].mxu0
      %v702 = vpop.f32.mrb[0].mxu0
      %v703 = vadd.f32 0.0, %v702
      %v704 = vpop.f32.mrb[0].mxu0
      %705 = vmatprep.mubr.bf16.mxu0 0
      %706 = vmatmul.mubr.bf16.gmra.mrb[0].mxu0 %v543
      %v707 = vpop.f32.mrb[0].mxu0
      %v708 = vadd.f32 0.0, %v707
      %v709 = vpop.f32.mrb[0].mxu0
      %v710 = vpop.f32.mrb[0].mxu0
      %v711 = vadd.f32 0.0, %v710
      %v712 = vpop.f32.mrb[0].mxu0
      %713 = vmatprep.mubr.bf16.mxu0 0
      %714 = vmatmul.mubr.bf16.gmra.mrb[0].mxu0 %v546
      %v715 = vpop.f32.mrb[0].mxu0
      %v716 = vadd.f32 0.0, %v715
      %v717 = vpop.f32.mrb[0].mxu0
      %v718 = vpop.f32.mrb[0].mxu0
      %v719 = vadd.f32 0.0, %v718
      %v720 = vpop.f32.mrb[0].mxu0
      %721 = vmatprep.mubr.bf16.mxu0 0
      %722 = vmatmul.mubr.bf16.gmra.mrb[0].mxu0 %v549
      %v723 = vpop.f32.mrb[0].mxu0
      %v724 = vadd.f32 0.0, %v723
      %v725 = vpop.f32.mrb[0].mxu0
      %v726 = vpop.f32.mrb[0].mxu0
      %v727 = vadd.f32 0.0, %v726
      %v728 = vpop.f32.mrb[0].mxu0
      %729 = vmatprep.mubr.bf16.mxu0 0
      %730 = vmatmul.mubr.bf16.gmra.mrb[0].mxu0 %v552
      %v731 = vpop.f32.mrb[0].mxu0
      %v732 = vadd.f32 0.0, %v731
      %v733 = vpop.f32.mrb[0].mxu0
      %v734 = vpop.f32.mrb[0].mxu0
      %v735 = vadd.f32 0.0, %v734
      %v736 = vpop.f32.mrb[0].mxu0
      %737 = vmatprep.mubr.bf16.mxu0 0
      %738 = vmatmul.mubr.bf16.gmra.mrb[0].mxu0 %v555
      %v739 = vpop.f32.mrb[0].mxu0
      %v740 = vadd.f32 0.0, %v739
      %v741 = vpop.f32.mrb[0].mxu0
      %v742 = vpop.f32.mrb[0].mxu0
      %v743 = vadd.f32 0.0, %v742
      %v744 = vpop.f32.mrb[0].mxu0
      %745 = vmatprep.mubr.bf16.mxu0 0
      %746 = vmatmul.mubr.bf16.gmra.mrb[0].mxu0 %v558
      %v747 = vpop.f32.mrb[0].mxu0
      %v748 = vadd.f32 0.0, %v747
      %v749 = vpop.f32.mrb[0].mxu0
      %v750 = vpop.f32.mrb[0].mxu0
      %v751 = vadd.f32 0.0, %v750
      %v752 = vpop.f32.mrb[0].mxu0
      %753 = vmatprep.mubr.bf16.mxu0 0
      %754 = vmatmul.mubr.bf16.gmra.mrb[0].mxu0 %v561
      %v755 = vpop.f32.mrb[0].mxu0
      %v756 = vadd.f32 0.0, %v755
      %v757 = vpop.f32.mrb[0].mxu0
      %v758 = vpop.f32.mrb[0].mxu0
      %v759 = vadd.f32 0.0, %v758
      %v760 = vpop.f32.mrb[0].mxu0
      %761 = vmatprep.mubr.bf16.mxu0 0
      %762 = vmatmul.mubr.bf16.gmra.mrb[0].mxu0 %v564
      %v763 = vpop.f32.mrb[0].mxu0
      %v764 = vadd.f32 0.0, %v763
      %v765 = vpop.f32.mrb[0].mxu0
      %v766 = vpop.f32.mrb[0].mxu0
      %v767 = vadd.f32 0.0, %v766
      %v768 = vpop.f32.mrb[0].mxu0
      %769 = vmatprep.mubr.bf16.mxu0 0
      %770 = vmatmul.mubr.bf16.gmra.mrb[0].mxu0 %v567
      %v771 = vpop.f32.mrb[0].mxu0
      %v772 = vadd.f32 0.0, %v771
      %v773 = vpop.f32.mrb[0].mxu0
      %v774 = vpop.f32.mrb[0].mxu0
      %v775 = vadd.f32 0.0, %v774
      %v776 = vpop.f32.mrb[0].mxu0
      %777 = vmatprep.mubr.bf16.mxu0 0
      %778 = vmatmul.mubr.bf16.gmra.mrb[0].mxu0 %v570
      %v779 = vpop.f32.mrb[0].mxu0
      %v780 = vadd.f32 0.0, %v779
      %v781 = vpop.f32.mrb[0].mxu0
      %v782 = vpop.f32.mrb[0].mxu0
      %v783 = vadd.f32 0.0, %v782
      %v784 = vpop.f32.mrb[0].mxu0
      %785 = vmatprep.mubr.bf16.mxu0 0
      %786 = vmatmul.mubr.bf16.gmra.mrb[0].mxu0 %v573
      %v787 = vpop.f32.mrb[0].mxu0
      %v788 = vadd.f32 0.0, %v787
      %v789 = vpop.f32.mrb[0].mxu0
      %v790 = vpop.f32.mrb[0].mxu0
      %v791 = vadd.f32 0.0, %v790
      %v792 = vpop.f32.mrb[0].mxu0
      %793 = vmatprep.mubr.bf16.mxu0 0
      %794 = vmatmul.mubr.bf16.gmra.mrb[0].mxu0 %v576
      %v795 = vpop.f32.mrb[0].mxu0
      %v796 = vadd.f32 0.0, %v795
      %v797 = vpop.f32.mrb[0].mxu0
      %v798 = vpop.f32.mrb[0].mxu0
      %v799 = vadd.f32 0.0, %v798
      %v800 = vpop.f32.mrb[0].mxu0
      %801 = vmatprep.mubr.bf16.mxu0 0
      %802 = vmatmul.mubr.bf16.gmra.mrb[0].mxu0 %v579
      %v803 = vpop.f32.mrb[0].mxu0
      %v804 = vadd.f32 0.0, %v803
      %v805 = vpop.f32.mrb[0].mxu0
      %v806 = vpop.f32.mrb[0].mxu0
      %v807 = vadd.f32 0.0, %v806
      %v808 = vpop.f32.mrb[0].mxu0
      %809 = vmatprep.mubr.bf16.mxu0 0
      %810 = vmatmul.mubr.bf16.gmra.mrb[0].mxu0 %v582
      %v811 = vpop.f32.mrb[0].mxu0
      %v812 = vadd.f32 0.0, %v811
      %v813 = vpop.f32.mrb[0].mxu0
      %v814 = vpop.f32.mrb[0].mxu0
      %v815 = vadd.f32 0.0, %v814
      %v816 = vpop.f32.mrb[0].mxu0
      %817 = vmatprep.mubr.bf16.mxu0 0
      %818 = vmatmul.mubr.bf16.gmra.mrb[0].mxu0 %v585
      %v819 = vpop.f32.mrb[0].mxu0
      %v820 = vadd.f32 0.0, %v819
      %v821 = vpop.f32.mrb[0].mxu0
      %v822 = vpop.f32.mrb[0].mxu0
      %v823 = vadd.f32 0.0, %v822
      %v824 = vpop.f32.mrb[0].mxu0
      %825 = vmatprep.mubr.bf16.mxu0 0
      %826 = vmatmul.mubr.bf16.gmra.mrb[0].mxu0 %v588
      %v827 = vpop.f32.mrb[0].mxu0
      %v828 = vadd.f32 0.0, %v827
      %v829 = vpop.f32.mrb[0].mxu0
      %v830 = vpop.f32.mrb[0].mxu0
      %v831 = vadd.f32 0.0, %v830
      %v832 = vpop.f32.mrb[0].mxu0
      %833 = vmatprep.mubr.bf16.mxu0 0
      %834 = vmatmul.mubr.bf16.gmra.mrb[0].mxu0 %v591
      %v835 = vpop.f32.mrb[0].mxu0
      %v836 = vadd.f32 0.0, %v835
      %v837 = vpop.f32.mrb[0].mxu0
      %v838 = vpop.f32.mrb[0].mxu0
      %v839 = vadd.f32 0.0, %v838
      %v840 = vpop.f32.mrb[0].mxu0
      %841 = vmatprep.mubr.bf16.mxu0 0
      %842 = vmatmul.mubr.bf16.gmra.mrb[0].mxu0 %v594
      %v843 = vpop.f32.mrb[0].mxu0
      %v844 = vadd.f32 0.0, %v843
      %v845 = vpop.f32.mrb[0].mxu0
      %v846 = vpop.f32.mrb[0].mxu0
      %v847 = vadd.f32 0.0, %v846
      %v848 = vpop.f32.mrb[0].mxu0
      %849 = vmatprep.mubr.bf16.mxu0 0
      %850 = vmatmul.mubr.bf16.gmra.mrb[0].mxu0 %v597
      %v851 = vpop.f32.mrb[0].mxu0
      %v852 = vadd.f32 0.0, %v851
      %v853 = vpop.f32.mrb[0].mxu0
      %v854 = vpop.f32.mrb[0].mxu0
      %v855 = vadd.f32 0.0, %v854
      %v856 = vpop.f32.mrb[0].mxu0
      %857 = vmatprep.mubr.bf16.mxu0 0
      %858 = vmatmul.mubr.bf16.gmra.mrb[0].mxu0 %v600
      %v859 = vpop.f32.mrb[0].mxu0
      %v860 = vadd.f32 0.0, %v859
      %v861 = vpop.f32.mrb[0].mxu0
      %v862 = vpop.f32.mrb[0].mxu0
      %v863 = vadd.f32 0.0, %v862
      %v864 = vpop.f32.mrb[0].mxu0
      %865 = vmatprep.mubr.bf16.mxu0 0
      %866 = vmatmul.mubr.bf16.gmra.mrb[0].mxu0 %v603
      %v867 = vpop.f32.mrb[0].mxu0
      %v868 = vadd.f32 0.0, %v867
      %v869 = vpop.f32.mrb[0].mxu0
      %v870 = vpop.f32.mrb[0].mxu0
      %v871 = vadd.f32 0.0, %v870
      %v872 = vpop.f32.mrb[0].mxu0
      %873 = vmatprep.mubr.bf16.mxu0 0
      %874 = vmatmul.mubr.bf16.gmra.mrb[0].mxu0 %v606
      %v875 = vpop.f32.mrb[0].mxu0
      %v876 = vadd.f32 0.0, %v875
      %v877 = vpop.f32.mrb[0].mxu0
      %v878 = vpop.f32.mrb[0].mxu0
      %v879 = vadd.f32 0.0, %v878
      %v880 = vpop.f32.mrb[0].mxu0
      %881 = vmatprep.mubr.bf16.mxu0 0
      %882 = vmatmul.mubr.bf16.gmra.mrb[0].mxu0 %v609
      %v883 = vpop.f32.mrb[0].mxu0
      %v884 = vadd.f32 0.0, %v883
      %v885 = vpop.f32.mrb[0].mxu0
      %v886 = vpop.f32.mrb[0].mxu0
      %v887 = vadd.f32 0.0, %v886
      %v888 = vpop.f32.mrb[0].mxu0
      %889 = vmatprep.mubr.bf16.mxu0 0
      %890 = vmatmul.mubr.bf16.gmra.mrb[0].mxu0 %v612
      %v891 = vpop.f32.mrb[0].mxu0
      %v892 = vadd.f32 0.0, %v891
      %v893 = vpop.f32.mrb[0].mxu0
      %v894 = vpop.f32.mrb[0].mxu0
      %v895 = vadd.f32 0.0, %v894
      %v896 = vpop.f32.mrb[0].mxu0
      %897 = vmatprep.mubr.bf16.mxu0 0
      %898 = vmatmul.mubr.bf16.gmra.mrb[0].mxu0 %v615
      %v899 = vpop.f32.mrb[0].mxu0
      %v900 = vadd.f32 0.0, %v899
      %v901 = vpop.f32.mrb[0].mxu0
      %v902 = vpop.f32.mrb[0].mxu0
      %v903 = vadd.f32 0.0, %v902
      %v904 = vpop.f32.mrb[0].mxu0
      %905 = vdwg.mxu0
      %906 = vst [vmem:[%s199] sm:$0xff] %v652
      %907 = vst [vmem:[%s199 + $0x8] sm:$0xff] %v655
      %908 = vst [vmem:[%s199 + $0x10] sm:$0xff] %v660
      %909 = vst [vmem:[%s199 + $0x18] sm:$0xff] %v663
      %910 = vst [vmem:[%s199 + $0x20] sm:$0xff] %v668
      %911 = vst [vmem:[%s199 + $0x28] sm:$0xff] %v671
      %912 = vst [vmem:[%s199 + $0x30] sm:$0xff] %v676
      %913 = vst [vmem:[%s199 + $0x38] sm:$0xff] %v679
      %914 = vst [vmem:[%s199 + $0x40] sm:$0xff] %v684
      %915 = vst [vmem:[%s199 + $0x48] sm:$0xff] %v687
      %916 = vst [vmem:[%s199 + $0x50] sm:$0xff] %v692
      %917 = vst [vmem:[%s199 + $0x58] sm:$0xff] %v695
      %918 = vst [vmem:[%s199 + $0x60] sm:$0xff] %v700
      %919 = vst [vmem:[%s199 + $0x68] sm:$0xff] %v703
      %920 = vst [vmem:[%s199 + $0x70] sm:$0xff] %v708
      %921 = vst [vmem:[%s199 + $0x78] sm:$0xff] %v711
      %922 = vst [vmem:[%s199 + $0x80] sm:$0xff] %v716
      %923 = vst [vmem:[%s199 + $0x88] sm:$0xff] %v719
      %924 = vst [vmem:[%s199 + $0x90] sm:$0xff] %v724
      %925 = vst [vmem:[%s199 + $0x98] sm:$0xff] %v727
      %926 = vst [vmem:[%s199 + $0xa0] sm:$0xff] %v732
      %927 = vst [vmem:[%s199 + $0xa8] sm:$0xff] %v735
      %928 = vst [vmem:[%s199 + $0xb0] sm:$0xff] %v740
      %929 = vst [vmem:[%s199 + $0xb8] sm:$0xff] %v743
      %930 = vst [vmem:[%s199 + $0xc0] sm:$0xff] %v748
      %931 = vst [vmem:[%s199 + $0xc8] sm:$0xff] %v751
      %932 = vst [vmem:[%s199 + $0xd0] sm:$0xff] %v756
      %933 = vst [vmem:[%s199 + $0xd8] sm:$0xff] %v759
      %934 = vst [vmem:[%s199 + $0xe0] sm:$0xff] %v764
      %935 = vst [vmem:[%s199 + $0xe8] sm:$0xff] %v767
      %936 = vst [vmem:[%s199 + $0xf0] sm:$0xff] %v772
      %937 = vst [vmem:[%s199 + $0xf8] sm:$0xff] %v775
      %938 = vst [vmem:[%s199 + $0x100] sm:$0xff] %v780
      %939 = vst [vmem:[%s199 + $0x108] sm:$0xff] %v783
      %940 = vst [vmem:[%s199 + $0x110] sm:$0xff] %v788
      %941 = vst [vmem:[%s199 + $0x118] sm:$0xff] %v791
      %942 = vst [vmem:[%s199 + $0x120] sm:$0xff] %v796
      %943 = vst [vmem:[%s199 + $0x128] sm:$0xff] %v799
      %944 = vst [vmem:[%s199 + $0x130] sm:$0xff] %v804
      %945 = vst [vmem:[%s199 + $0x138] sm:$0xff] %v807
      %946 = vst [vmem:[%s199 + $0x140] sm:$0xff] %v812
      %947 = vst [vmem:[%s199 + $0x148] sm:$0xff] %v815
      %948 = vst [vmem:[%s199 + $0x150] sm:$0xff] %v820
      %949 = vst [vmem:[%s199 + $0x158] sm:$0xff] %v823
      %950 = vst [vmem:[%s199 + $0x160] sm:$0xff] %v828
      %951 = vst [vmem:[%s199 + $0x168] sm:$0xff] %v831
      %952 = vst [vmem:[%s199 + $0x170] sm:$0xff] %v836
      %953 = vst [vmem:[%s199 + $0x178] sm:$0xff] %v839
      %954 = vst [vmem:[%s199 + $0x180] sm:$0xff] %v844
      %955 = vst [vmem:[%s199 + $0x188] sm:$0xff] %v847
      %956 = vst [vmem:[%s199 + $0x190] sm:$0xff] %v852
      %957 = vst [vmem:[%s199 + $0x198] sm:$0xff] %v855
      %958 = vst [vmem:[%s199 + $0x1a0] sm:$0xff] %v860
      %959 = vst [vmem:[%s199 + $0x1a8] sm:$0xff] %v863
      %960 = vst [vmem:[%s199 + $0x1b0] sm:$0xff] %v868
      %961 = vst [vmem:[%s199 + $0x1b8] sm:$0xff] %v871
      %962 = vst [vmem:[%s199 + $0x1c0] sm:$0xff] %v876
      %963 = vst [vmem:[%s199 + $0x1c8] sm:$0xff] %v879
      %964 = vst [vmem:[%s199 + $0x1d0] sm:$0xff] %v884
      %965 = vst [vmem:[%s199 + $0x1d8] sm:$0xff] %v887
      %966 = vst [vmem:[%s199 + $0x1e0] sm:$0xff] %v892
      %967 = vst [vmem:[%s199 + $0x1e8] sm:$0xff] %v895
      %968 = vst [vmem:[%s199 + $0x1f0] sm:$0xff] %v900
      %969 = vst [vmem:[%s199 + $0x1f8] sm:$0xff] %v903
      %s970 = smul.u32 64, %s15
      %p971 = scmp.lt.s32.totalorder %s970, 255
      %s972 = scalar_select %p971, %s970, 255
      %s973 = smul.addr %s972, 8
      %s974 = scalar_lea.vmem %s4, %s973
      // Predicated region
      $region37: #{forward.10} parent=35 // pred_check
        %p975 = pneg %p122
      $region38: #{forward.10} parent=35 // pred_check_branch
        %977 = sbr.rel (%p975) target = $region40
      $region39: #{forward.10} parent=35 // pred_region
        %s978 = smul.u32 64, %s15
      $region40: #{forward.10} parent=35 // pred_fallthru
        _
    $region36: #{forward.10} parent=5 // pred_fallthru
      _
    %p979 = scmp.le.s32.totalorder 2, %s10
    // Predicated region
    $region41: #{forward.10} parent=5 // pred_check
      %p980 = pneg %p979
    $region42: #{forward.10} parent=5 // pred_check_branch
      %982 = sbr.rel (%p980) target = $region44
    $region43: #{forward.10} parent=5 // pred_region
      %s983 = ssub.s32 %s10, 2
      // Predicated region
      $region45: #{forward.10} parent=43 // pred_check
        %p984 = pneg %p128
      $region46: #{forward.10} parent=43 // pred_check_branch
        %986 = sbr.rel (%p984) target = $region48
      $region47: #{forward.10} parent=43 // pred_region
        %s987 = smul.u32 64, %s16
        %p988 = scmp.lt.s32.totalorder %s987, 255
        %s989 = scalar_select %p988, %s987, 255
        %s990 = smul.addr %s989, 8
        %s991 = scalar_lea.vmem %s4, %s990
      $region48: #{forward.10} parent=43 // pred_fallthru
        _
    $region44: #{forward.10} parent=5 // pred_fallthru
      _
  $region6: #{forward.10} parent=0 // loop_footer
    %s14 = sadd.s32 1, %s10
  $region7: #{forward.10} parent=0 // loop_footer_branch
    %9 = sbr.rel target = $region3
  $region8: #{forward.10} parent=0 // loop_exit
    _

// kernel: forward.11
$region0: #{forward.11}
  #allocation0 [shape = 'u32[]', space=smem, size = 0x4, offset = 0x4, fixed_abs, tag = 'smem constant byte address 0x4 - core index']
  #allocation1 [shape = 'u32[144,128]{1,0:T(1,128)}', space=vmem, size = 0x12000, scoped, tag = 'internal scratch']
  %s0 = inlined_call_operand.vmem [shape: f32[64,128], index: 0, kind: input, shape index: {}]
  %s1 = inlined_call_operand.vmem [shape: f32[1,128], index: 1, kind: input, shape index: {}]
  %s2 = inlined_call_operand.vmem [shape: f32[64,128], index: 2, kind: output, shape index: {}]
  %s3 = sld [smem:[#allocation0]]
  $region18: #{forward.11} parent=0
    _
  %s5 = ssub.s32 1, %s3
  %s6 = scalar_select 0, %s5, %s3
  // Predicated region
  $region2: #{forward.11} parent=0 // pred_check
    _
  $region3: #{forward.11} parent=0 // pred_check_branch
    %8 = sbr.rel (0) target = $region5
  $region4: #{forward.11} parent=0 // pred_region
    _
  $region5: #{forward.11} parent=0 // pred_fallthru
    _
  // Predicated region
  $region6: #{forward.11} parent=0 // pred_check
    _
  $region7: #{forward.11} parent=0 // pred_check_branch
    %10 = sbr.rel (0) target = $region9
  $region8: #{forward.11} parent=0 // pred_region
    _
  $region9: #{forward.11} parent=0 // pred_fallthru
    _
  %v11 = vld [vmem:[%s0] sm:$0xff]
  %v12 = vld [vmem:[%s0 + $0x8] sm:$0xff]
  %v13 = vld [vmem:[%s0 + $0x10] sm:$0xff]
  %v14 = vld [vmem:[%s0 + $0x18] sm:$0xff]
  %v15 = vld [vmem:[%s0 + $0x20] sm:$0xff]
  %v16 = vld [vmem:[%s0 + $0x28] sm:$0xff]
  %v17 = vld [vmem:[%s0 + $0x30] sm:$0xff]
  %v18 = vld [vmem:[%s0 + $0x38] sm:$0xff]
  %v19 = vld [vmem:[%s1] sm:$0x1]
  %v21 = vlaneseq
  %v22 = vshrl.u32 %v21, 7
  %v23 = vsub.s32 0, %v22
  %v24 = vrot.slane %v19, %v23
  %v26 = vadd.f32 %v11, %v24
  %v27 = vadd.f32 %v12, %v24
  %v28 = vadd.f32 %v13, %v24
  %v29 = vadd.f32 %v14, %v24
  %v30 = vadd.f32 %v15, %v24
  %v31 = vadd.f32 %v16, %v24
  %v32 = vadd.f32 %v17, %v24
  %v33 = vadd.f32 %v18, %v24
  %v34 = vtanh.pop %v26
  %v35 = vtanh.pop %v27
  %v36 = vtanh.pop %v28
  %v37 = vtanh.pop %v29
  %v38 = vtanh.pop %v30
  %v39 = vtanh.pop %v31
  %v40 = vtanh.pop %v32
  %v41 = vtanh.pop %v33
  %42 = vst [vmem:[%s2] sm:$0xff] %v34
  %43 = vst [vmem:[%s2 + $0x8] sm:$0xff] %v35
  %44 = vst [vmem:[%s2 + $0x10] sm:$0xff] %v36
  %45 = vst [vmem:[%s2 + $0x18] sm:$0xff] %v37
  %46 = vst [vmem:[%s2 + $0x20] sm:$0xff] %v38
  %47 = vst [vmem:[%s2 + $0x28] sm:$0xff] %v39
  %48 = vst [vmem:[%s2 + $0x30] sm:$0xff] %v40
  %49 = vst [vmem:[%s2 + $0x38] sm:$0xff] %v41
  // Predicated region
  $region10: #{forward.11} parent=0 // pred_check
    _
  $region11: #{forward.11} parent=0 // pred_check_branch
    %51 = sbr.rel (0) target = $region13
  $region12: #{forward.11} parent=0 // pred_region
    _
  $region13: #{forward.11} parent=0 // pred_fallthru
    _
  // Predicated region
  $region14: #{forward.11} parent=0 // pred_check
    _
  $region15: #{forward.11} parent=0 // pred_check_branch
    %53 = sbr.rel (0) target = $region17
  $region16: #{forward.11} parent=0 // pred_region
    _
  $region17: #{forward.11} parent=0 // pred_fallthru
    _

</llo_original>
